<compile_context>
chip_gen: v7x
topology: tpu7x:2x2x1
jax: 0.10.0
libtpu: 0.0.40
codegen_flags: <defaults>
</compile_context>

<pallas_src>
import functools

import jax
import jax.numpy as jnp
import numpy as np
from jax import lax
from jax.experimental import pallas as pl
from jax.experimental.pallas import tpu as pltpu


# ----------------------------------------------------------------------------
# Small helpers
# ----------------------------------------------------------------------------
@functools.lru_cache(maxsize=None)
def _vmem_limit_bytes():
    """~75% of physical VMEM (v5e/v6e ~96 MiB, v7x ~48 MiB); 32 MiB fallback."""
    try:
        cap = pltpu.get_tpu_info().vmem_capacity_bytes
        return int(min(cap * 3 // 4, 100 * 1024 * 1024))
    except Exception:
        return 32 * 1024 * 1024


def _compiler_params(semantics):
    return pltpu.CompilerParams(dimension_semantics=semantics,
                                vmem_limit_bytes=_vmem_limit_bytes())


def _replicated_spec(shape):
    """Full-array block that is identical for every grid step (kept VMEM-resident)."""
    zeros = (0,) * len(shape)
    return pl.BlockSpec(shape, lambda *_, _z=zeros: _z)


def _pick_tile(n, candidates):
    for c in candidates:
        if n % c == 0:
            return c
    return n


def _layer_norm_f32(z, g, b):
    mu = jnp.mean(z, axis=-1, keepdims=True)
    var = jnp.mean(jnp.square(z - mu), axis=-1, keepdims=True)   # biased, like PyTorch
    return (z - mu) * lax.rsqrt(var + 1e-5) * g + b


# ----------------------------------------------------------------------------
# Pallas kernels
# ----------------------------------------------------------------------------
def _attn_kernel(x_ref, wqkv_ref, bqkv_ref, wo_ref, bo_ref, g1_ref, be1_ref,
                 o_ref, ctx_ref, *, num_heads):
    """Self-attention + residual + LayerNorm1 for one batch element.

    x_ref:   (S, D) bf16 activations for this batch element
    wqkv_t:  (D, 3D) bf16  fused Q|K|V projection, pre-transposed for x @ w
    bqkv:    (1, 3D) f32
    wo_t:    (D, D) bf16, bo: (1, D) f32
    g1/be1:  (1, D) f32 LayerNorm affine
    ctx_ref: (S, D) f32 VMEM scratch (per-head context slab)
    """
    S, D = x_ref.shape
    H = num_heads
    Dh = D // H
    scale = 1.0 / float(Dh) ** 0.5

    x_bf = x_ref[...]                       # bf16 MXU operand
    x = x_bf.astype(jnp.float32)            # f32 for residual / LN math

    # fused QKV projection: one (S, D) @ (D, 3D) MXU pass, f32 accumulate
    qkv = jnp.dot(x_bf, wqkv_ref[...],
                  preferred_element_type=jnp.float32) + bqkv_ref[...]    # (S, 3D) f32

    # per-head scores / context (Dh-wide contractions are inherent to MHA);
    # context written into a VMEM scratch slab instead of concatenating narrow slices.
    for h in range(H):                      # H is small and static -> unrolled
        lo = h * Dh
        qh = qkv[:, lo:lo + Dh].astype(jnp.bfloat16)
        kh = qkv[:, D + lo:D + lo + Dh].astype(jnp.bfloat16)
        vh = qkv[:, 2 * D + lo:2 * D + lo + Dh].astype(jnp.bfloat16)
        # scores = q @ k^T -> (S, S); no mask (BERT, bidirectional)
        s = lax.dot_general(qh, kh, (((1,), (1,)), ((), ())),
                            preferred_element_type=jnp.float32) * scale
        s = s - jnp.max(s, axis=-1, keepdims=True)
        e = jnp.exp(s)                                                  # f32 softmax
        p = e * pl.reciprocal(jnp.sum(e, axis=-1, keepdims=True), approx=True)
        ctx_ref[:, lo:lo + Dh] = jnp.dot(p.astype(jnp.bfloat16), vh,
                                         preferred_element_type=jnp.float32)

    attn = jnp.dot(ctx_ref[...].astype(jnp.bfloat16), wo_ref[...],
                   preferred_element_type=jnp.float32) + bo_ref[...]

    h1 = _layer_norm_f32(x + attn, g1_ref[...], be1_ref[...])
    o_ref[...] = h1.astype(jnp.bfloat16)


def _ffn_kernel(h_ref, w1_ref, b1_ref, w2_ref, b2_ref, g2_ref, be2_ref, o_ref):
    """Feed-forward (ReLU) + residual + LayerNorm2 for one (tm, D) row tile."""
    h_bf = h_ref[...]                       # (tm, D) bf16
    h = h_bf.astype(jnp.float32)
    ff = jnp.dot(h_bf, w1_ref[...], preferred_element_type=jnp.float32) + b1_ref[...]
    ff = jnp.maximum(ff, 0.0)
    ff = jnp.dot(ff.astype(jnp.bfloat16), w2_ref[...],
                 preferred_element_type=jnp.float32) + b2_ref[...]
    o_ref[...] = _layer_norm_f32(h + ff, g2_ref[...], be2_ref[...]).astype(jnp.bfloat16)


def _vocab_kernel(x_ref, w_ref, b_ref, o_ref):
    """One (tm, D) x (D, tv) tile of the final vocab projection (f32 logits out)."""
    o_ref[...] = (jnp.dot(x_ref[...], w_ref[...],
                          preferred_element_type=jnp.float32) + b_ref[...])


# ----------------------------------------------------------------------------
# Wrappers (pallas_call with grids / BlockSpecs)
# ----------------------------------------------------------------------------
def attention_block(x2, lp, *, num_heads, seq_len):
    M, D = x2.shape
    B = M // seq_len
    weights = (lp['wqkv_t'], lp['bqkv'], lp['wo_t'], lp['bo'], lp['ln1_g'], lp['ln1_b'])
    in_specs = [pl.BlockSpec((seq_len, D), lambda b: (b, 0))]
    in_specs += [_replicated_spec(w.shape) for w in weights]
    return pl.pallas_call(
        functools.partial(_attn_kernel, num_heads=num_heads),
        out_shape=jax.ShapeDtypeStruct((M, D), jnp.bfloat16),
        grid=(B,),
        in_specs=in_specs,
        out_specs=pl.BlockSpec((seq_len, D), lambda b: (b, 0)),
        scratch_shapes=[pltpu.VMEM((seq_len, D), jnp.float32)],
        input_output_aliases={0: 0},   # residual stream overwrites its own HBM buffer
        compiler_params=_compiler_params(("parallel",)),
    )(x2, *weights)


def ffn_block(x2, lp):
    M, D = x2.shape
    tm = _pick_tile(M, (512, 256, 128))
    weights = (lp['w1_t'], lp['b1'], lp['w2_t'], lp['b2'], lp['ln2_g'], lp['ln2_b'])
    in_specs = [pl.BlockSpec((tm, D), lambda i: (i, 0))]
    in_specs += [_replicated_spec(w.shape) for w in weights]
    return pl.pallas_call(
        _ffn_kernel,
        out_shape=jax.ShapeDtypeStruct((M, D), jnp.bfloat16),
        grid=(M // tm,),
        in_specs=in_specs,
        out_specs=pl.BlockSpec((tm, D), lambda i: (i, 0)),
        input_output_aliases={0: 0},
        compiler_params=_compiler_params(("parallel",)),
    )(x2, *weights)


def vocab_projection(x2, w_t, b):
    """(B*S, D) bf16 -> (B*S, V) f32 logits, lane-dense tiled matmul.

    Grid is (V tiles OUTER, M tiles INNER): the (D, tv) weight tile's block index is
    constant across the inner loop, so it stays VMEM-resident and the large vocab
    weight is read from HBM exactly once while the small activation tile streams.
    """
    M, D = x2.shape
    V = w_t.shape[1]
    tm = _pick_tile(M, (512, 256, 128))
    tv = _pick_tile(V, (1024, 512, 256, 128))
    return pl.pallas_call(
        _vocab_kernel,
        out_shape=jax.ShapeDtypeStruct((M, V), jnp.float32),
        grid=(V // tv, M // tm),
        in_specs=[pl.BlockSpec((tm, D), lambda j, i: (i, 0)),
                  pl.BlockSpec((D, tv), lambda j, i: (0, j)),
                  pl.BlockSpec((1, tv), lambda j, i: (0, j))],
        out_specs=pl.BlockSpec((tm, tv), lambda j, i: (i, j)),
        compiler_params=_compiler_params(("parallel", "parallel")),
    )(x2, w_t, b)


# ----------------------------------------------------------------------------
# One-time parameter prep (hoisted out of the per-forward path)
# ----------------------------------------------------------------------------
def prepare_params(params):
    D = params['tok_emb'].shape[1]
    bf = lambda w: w.astype(jnp.bfloat16)
    prepped = {
        'tok_emb': params['tok_emb'],                   # f32, gather stays in plain JAX
        'pos_emb': params['pos_emb'],
        'out_w_t': bf(params['out_w'].T),               # (D, V) bf16
        'out_b': params['out_b'].reshape(1, -1),        # (1, V) f32
        'layers': [],
    }
    for lp in params['layers']:
        wqkv_t = jnp.concatenate([lp['wq'].T, lp['wk'].T, lp['wv'].T], axis=1)  # (D, 3D)
        bqkv = jnp.concatenate([lp['bq'], lp['bk'], lp['bv']]).reshape(1, 3 * D)
        prepped['layers'].append({
            'wqkv_t': bf(wqkv_t), 'bqkv': bqkv,
            'wo_t': bf(lp['wo'].T), 'bo': lp['bo'].reshape(1, D),
            'ln1_g': lp['ln1_g'].reshape(1, D), 'ln1_b': lp['ln1_b'].reshape(1, D),
            'w1_t': bf(lp['w1'].T), 'b1': lp['b1'].reshape(1, -1),
            'w2_t': bf(lp['w2'].T), 'b2': lp['b2'].reshape(1, D),
            'ln2_g': lp['ln2_g'].reshape(1, D), 'ln2_b': lp['ln2_b'].reshape(1, D),
        })
    return prepped


def bert_forward(tokens, prepped, *, num_heads):
    B, S = tokens.shape
    # embedding gather is glue (data-dependent gather), done in plain JAX, f32
    x = prepped['tok_emb'][tokens] + prepped['pos_emb']           # (B, S, D) f32
    D = x.shape[-1]
    # lane-dense 2-D residual stream, bf16 in HBM between kernels
    x2 = x.reshape(B * S, D).astype(jnp.bfloat16)
    for lp in prepped['layers']:
        x2 = attention_block(x2, lp, num_heads=num_heads, seq_len=S)
        x2 = ffn_block(x2, lp)
    logits = vocab_projection(x2, prepped['out_w_t'], prepped['out_b'])   # (B*S, V) f32
    return logits.reshape(B, S, -1)


# ----------------------------------------------------------------------------
# Pure-JAX reference (correctness check) — no mask, post-norm, ReLU, all f32
# ----------------------------------------------------------------------------
def bert_reference(tokens, params, *, num_heads):
    def ln(z, g, b):
        mu = jnp.mean(z, axis=-1, keepdims=True)
        var = jnp.mean(jnp.square(z - mu), axis=-1, keepdims=True)
        return (z - mu) / jnp.sqrt(var + 1e-5) * g + b

    x = params['tok_emb'][tokens] + params['pos_emb']
    B, S, D = x.shape
    H = num_heads
    Dh = D // H
    for lp in params['layers']:
        q = (x @ lp['wq'].T + lp['bq']).reshape(B, S, H, Dh).transpose(0, 2, 1, 3)
        k = (x @ lp['wk'].T + lp['bk']).reshape(B, S, H, Dh).transpose(0, 2, 1, 3)
        v = (x @ lp['wv'].T + lp['bv']).reshape(B, S, H, Dh).transpose(0, 2, 1, 3)
        s = jnp.einsum('bhqd,bhkd->bhqk', q, k) / jnp.sqrt(jnp.float32(Dh))
        p = jax.nn.softmax(s, axis=-1)
        ctx = jnp.einsum('bhqk,bhkd->bhqd', p, v).transpose(0, 2, 1, 3).reshape(B, S, D)
        attn = ctx @ lp['wo'].T + lp['bo']
        x = ln(x + attn, lp['ln1_g'], lp['ln1_b'])
        ff = jnp.maximum(x @ lp['w1'].T + lp['b1'], 0.0) @ lp['w2'].T + lp['b2']
        x = ln(x + ff, lp['ln2_g'], lp['ln2_b'])
    return x @ params['out_w'].T + params['out_b']


# ----------------------------------------------------------------------------
# Deterministic parameter init
# ----------------------------------------------------------------------------
def init_params(key, *, num_words, seq_len, d_model, n_layers):
    k_tok, k_pos, k_ow, k_ob, k_layers = jax.random.split(key, 5)
    params = {
        'tok_emb': jax.random.normal(k_tok, (num_words, d_model), jnp.float32),
        'pos_emb': jax.random.normal(k_pos, (seq_len, d_model), jnp.float32),
        'out_w': 0.02 * jax.random.normal(k_ow, (num_words, d_model), jnp.float32),
        'out_b': 0.02 * jax.random.normal(k_ob, (num_words,), jnp.float32),
        'layers': [],
    }
    ff = seq_len  # dim_feedforward = seq_len in the PyTorch module
    layer_keys = jax.random.split(k_layers, n_layers)
    for lk in layer_keys:
        ks = jax.random.split(lk, 12)
        d = d_model
        params['layers'].append({
            'wq': 0.02 * jax.random.normal(ks[0], (d, d), jnp.float32),
            'wk': 0.02 * jax.random.normal(ks[1], (d, d), jnp.float32),
            'wv': 0.02 * jax.random.normal(ks[2], (d, d), jnp.float32),
            'bq': 0.02 * jax.random.normal(ks[3], (d,), jnp.float32),
            'bk': 0.02 * jax.random.normal(ks[4], (d,), jnp.float32),
            'bv': 0.02 * jax.random.normal(ks[5], (d,), jnp.float32),
            'wo': 0.02 * jax.random.normal(ks[6], (d, d), jnp.float32),
            'bo': 0.02 * jax.random.normal(ks[7], (d,), jnp.float32),
            'ln1_g': jnp.ones((d,), jnp.float32),
            'ln1_b': jnp.zeros((d,), jnp.float32),
            'w1': 0.02 * jax.random.normal(ks[8], (ff, d), jnp.float32),
            'b1': 0.02 * jax.random.normal(ks[9], (ff,), jnp.float32),
            'w2': 0.02 * jax.random.normal(ks[10], (d, ff), jnp.float32),
            'b2': 0.02 * jax.random.normal(ks[11], (d,), jnp.float32),
            'ln2_g': jnp.ones((d,), jnp.float32),
            'ln2_b': jnp.zeros((d,), jnp.float32),
        })
    return params


# ----------------------------------------------------------------------------
if __name__ == "__main__":
    # (8,128)-aligned small shapes so all blocks are lane/sublane dense.
    BATCH = 2
    SEQ_LEN = 128        # also dim_feedforward (per the PyTorch module)
    NUM_WORDS = 256
    D_MODEL = 128
    N_HEADS = 4
    N_LAYERS = 2

    root = jax.random.PRNGKey(0)
    k_params, k_tokens = jax.random.split(root)
    params = init_params(k_params, num_words=NUM_WORDS, seq_len=SEQ_LEN,
                         d_model=D_MODEL, n_layers=N_LAYERS)
    tokens = jax.random.randint(k_tokens, (BATCH, SEQ_LEN), 0, NUM_WORDS, dtype=jnp.int32)

    # one-time weight layout + bf16 prep (NOT part of the per-forward path)
    prepped = prepare_params(params)

    fwd = jax.jit(functools.partial(bert_forward, num_heads=N_HEADS))
    logits = fwd(tokens, prepped)
    logits = jax.block_until_ready(logits)

    assert logits.shape == (BATCH, SEQ_LEN, NUM_WORDS)
    assert logits.dtype == jnp.float32

    ref = jax.block_until_ready(bert_reference(tokens, params, num_heads=N_HEADS))
    # tolerance covers bf16 MXU operands / bf16 residual stream / approx-reciprocal softmax
    np.testing.assert_allclose(np.asarray(logits), np.asarray(ref), rtol=2e-2, atol=2e-2)

    print("KERNEL_OK")
</pallas_src>

<mosaic_0001>
module attributes {stable_mosaic.version = 11 : i64} {
  func.func @_ffn_kernel(%arg0: i32, %arg1: memref<256x128xbf16, #tpu.memory_space<vmem>>, %arg2: memref<128x128xbf16, #tpu.memory_space<vmem>>, %arg3: memref<1x128xf32, #tpu.memory_space<vmem>>, %arg4: memref<128x128xbf16, #tpu.memory_space<vmem>>, %arg5: memref<1x128xf32, #tpu.memory_space<vmem>>, %arg6: memref<1x128xf32, #tpu.memory_space<vmem>>, %arg7: memref<1x128xf32, #tpu.memory_space<vmem>>, %arg8: memref<256x128xbf16, #tpu.memory_space<vmem>>) attributes {dimension_semantics = [#tpu.dimension_semantics<parallel>], iteration_bounds = array<i64: 1>, scalar_prefetch = 0 : i64, scratch_operands = 0 : i64, tpu.core_type = #tpu.core_type<tc>, window_params = [{transform_indices = @transform_0, window_bounds = array<i64: 256, 128>}, {pipeline_mode = #tpu.pipeline_mode<synchronous>, transform_indices = @transform_1, window_bounds = array<i64: 128, 128>}, {pipeline_mode = #tpu.pipeline_mode<synchronous>, transform_indices = @transform_2, window_bounds = array<i64: 1, 128>}, {pipeline_mode = #tpu.pipeline_mode<synchronous>, transform_indices = @transform_3, window_bounds = array<i64: 128, 128>}, {pipeline_mode = #tpu.pipeline_mode<synchronous>, transform_indices = @transform_4, window_bounds = array<i64: 1, 128>}, {pipeline_mode = #tpu.pipeline_mode<synchronous>, transform_indices = @transform_5, window_bounds = array<i64: 1, 128>}, {pipeline_mode = #tpu.pipeline_mode<synchronous>, transform_indices = @transform_6, window_bounds = array<i64: 1, 128>}, {transform_indices = @transform_7, window_bounds = array<i64: 256, 128>}]} {
    %c0 = arith.constant 0 : index
    %c0_0 = arith.constant 0 : index
    %0 = vector.load %arg1[%c0, %c0_0] : memref<256x128xbf16, #tpu.memory_space<vmem>>, vector<256x128xbf16>
    %1 = arith.extf %0 : vector<256x128xbf16> to vector<256x128xf32>
    %c0_1 = arith.constant 0 : index
    %c0_2 = arith.constant 0 : index
    %2 = vector.load %arg2[%c0_1, %c0_2] : memref<128x128xbf16, #tpu.memory_space<vmem>>, vector<128x128xbf16>
    %cst = arith.constant dense<0.000000e+00> : vector<256x128xf32>
    %3 = tpu.matmul %0, %2, %cst {dimension_numbers = #tpu.dot_dimension_numbers<[1], [0], [0], [1], [0, 0, 1, 1], [], []>} : vector<256x128xbf16>, vector<128x128xbf16>, vector<256x128xf32> -> vector<256x128xf32>
    %c0_3 = arith.constant 0 : index
    %c0_4 = arith.constant 0 : index
    %4 = vector.load %arg3[%c0_3, %c0_4] : memref<1x128xf32, #tpu.memory_space<vmem>>, vector<1x128xf32>
    %5 = vector.broadcast %4 : vector<1x128xf32> to vector<256x128xf32>
    %6 = arith.addf %3, %5 : vector<256x128xf32>
    %cst_5 = arith.constant 0.000000e+00 : f32
    %7 = vector.broadcast %cst_5 : f32 to vector<256x128xf32>
    %8 = arith.maximumf %6, %7 : vector<256x128xf32>
    %9 = arith.truncf %8 : vector<256x128xf32> to vector<256x128xbf16>
    %c0_6 = arith.constant 0 : index
    %c0_7 = arith.constant 0 : index
    %10 = vector.load %arg4[%c0_6, %c0_7] : memref<128x128xbf16, #tpu.memory_space<vmem>>, vector<128x128xbf16>
    %cst_8 = arith.constant dense<0.000000e+00> : vector<256x128xf32>
    %11 = tpu.matmul %9, %10, %cst_8 {dimension_numbers = #tpu.dot_dimension_numbers<[1], [0], [0], [1], [0, 0, 1, 1], [], []>} : vector<256x128xbf16>, vector<128x128xbf16>, vector<256x128xf32> -> vector<256x128xf32>
    %c0_9 = arith.constant 0 : index
    %c0_10 = arith.constant 0 : index
    %12 = vector.load %arg5[%c0_9, %c0_10] : memref<1x128xf32, #tpu.memory_space<vmem>>, vector<1x128xf32>
    %13 = vector.broadcast %12 : vector<1x128xf32> to vector<256x128xf32>
    %14 = arith.addf %11, %13 : vector<256x128xf32>
    %15 = arith.addf %1, %14 : vector<256x128xf32>
    %c0_11 = arith.constant 0 : index
    %c0_12 = arith.constant 0 : index
    %16 = vector.load %arg6[%c0_11, %c0_12] : memref<1x128xf32, #tpu.memory_space<vmem>>, vector<1x128xf32>
    %c0_13 = arith.constant 0 : index
    %c0_14 = arith.constant 0 : index
    %17 = vector.load %arg7[%c0_13, %c0_14] : memref<1x128xf32, #tpu.memory_space<vmem>>, vector<1x128xf32>
    %cst_15 = arith.constant dense<0.000000e+00> : vector<256xf32>
    %18 = vector.multi_reduction <add>, %15, %cst_15 [1] : vector<256x128xf32> to vector<256xf32>
    %19 = vector.shape_cast %18 : vector<256xf32> to vector<256x1xf32>
    %cst_16 = arith.constant 1.280000e+02 : f32
    %20 = vector.broadcast %cst_16 : f32 to vector<256x1xf32>
    %21 = arith.divf %19, %20 : vector<256x1xf32>
    %22 = vector.broadcast %21 : vector<256x1xf32> to vector<256x128xf32>
    %23 = arith.subf %15, %22 : vector<256x128xf32>
    %24 = arith.mulf %23, %23 : vector<256x128xf32>
    %cst_17 = arith.constant dense<0.000000e+00> : vector<256xf32>
    %25 = vector.multi_reduction <add>, %24, %cst_17 [1] : vector<256x128xf32> to vector<256xf32>
    %26 = vector.shape_cast %25 : vector<256xf32> to vector<256x1xf32>
    %cst_18 = arith.constant 1.280000e+02 : f32
    %27 = vector.broadcast %cst_18 : f32 to vector<256x1xf32>
    %28 = arith.divf %26, %27 : vector<256x1xf32>
    %29 = vector.broadcast %21 : vector<256x1xf32> to vector<256x128xf32>
    %30 = arith.subf %15, %29 : vector<256x128xf32>
    %cst_19 = arith.constant 9.99999974E-6 : f32
    %31 = vector.broadcast %cst_19 : f32 to vector<256x1xf32>
    %32 = arith.addf %28, %31 : vector<256x1xf32>
    %33 = math.rsqrt %32 : vector<256x1xf32>
    %34 = vector.broadcast %33 : vector<256x1xf32> to vector<256x128xf32>
    %35 = arith.mulf %30, %34 : vector<256x128xf32>
    %36 = vector.broadcast %16 : vector<1x128xf32> to vector<256x128xf32>
    %37 = arith.mulf %35, %36 : vector<256x128xf32>
    %38 = vector.broadcast %17 : vector<1x128xf32> to vector<256x128xf32>
    %39 = arith.addf %37, %38 : vector<256x128xf32>
    %40 = arith.truncf %39 : vector<256x128xf32> to vector<256x128xbf16>
    %c0_20 = arith.constant 0 : index
    %c0_21 = arith.constant 0 : index
    %41 = vector.load %arg8[%c0_20, %c0_21] : memref<256x128xbf16, #tpu.memory_space<vmem>>, vector<256x128xbf16>
    tpu.vector_store %arg8[%c0_20, %c0_21], %40 {strides = array<i32>} : memref<256x128xbf16, #tpu.memory_space<vmem>>, vector<256x128xbf16>,
    return
  }
  func.func @transform_0(%arg0: i32) -> (i32, i32) {
    %c0_i32 = arith.constant 0 : i32
    %c0_i32_0 = arith.constant 0 : i32
    return %arg0, %c0_i32 : i32, i32
  }
  func.func @transform_1(%arg0: i32) -> (i32, i32) {
    %c0_i32 = arith.constant 0 : i32
    %c0_i32_0 = arith.constant 0 : i32
    %c0_i32_1 = arith.constant 0 : i32
    return %c0_i32, %c0_i32_0 : i32, i32
  }
  func.func @transform_2(%arg0: i32) -> (i32, i32) {
    %c0_i32 = arith.constant 0 : i32
    %c0_i32_0 = arith.constant 0 : i32
    %c0_i32_1 = arith.constant 0 : i32
    return %c0_i32, %c0_i32_0 : i32, i32
  }
  func.func @transform_3(%arg0: i32) -> (i32, i32) {
    %c0_i32 = arith.constant 0 : i32
    %c0_i32_0 = arith.constant 0 : i32
    %c0_i32_1 = arith.constant 0 : i32
    return %c0_i32, %c0_i32_0 : i32, i32
  }
  func.func @transform_4(%arg0: i32) -> (i32, i32) {
    %c0_i32 = arith.constant 0 : i32
    %c0_i32_0 = arith.constant 0 : i32
    %c0_i32_1 = arith.constant 0 : i32
    return %c0_i32, %c0_i32_0 : i32, i32
  }
  func.func @transform_5(%arg0: i32) -> (i32, i32) {
    %c0_i32 = arith.constant 0 : i32
    %c0_i32_0 = arith.constant 0 : i32
    %c0_i32_1 = arith.constant 0 : i32
    return %c0_i32, %c0_i32_0 : i32, i32
  }
  func.func @transform_6(%arg0: i32) -> (i32, i32) {
    %c0_i32 = arith.constant 0 : i32
    %c0_i32_0 = arith.constant 0 : i32
    %c0_i32_1 = arith.constant 0 : i32
    return %c0_i32, %c0_i32_0 : i32, i32
  }
  func.func @transform_7(%arg0: i32) -> (i32, i32) {
    %c0_i32 = arith.constant 0 : i32
    %c0_i32_0 = arith.constant 0 : i32
    return %arg0, %c0_i32 : i32, i32
  }
}

module attributes {stable_mosaic.version = 11 : i64} {
  func.func @_vocab_kernel(%arg0: i32, %arg1: i32, %arg2: memref<256x128xbf16, #tpu.memory_space<vmem>>, %arg3: memref<128x256xbf16, #tpu.memory_space<vmem>>, %arg4: memref<1x256xf32, #tpu.memory_space<vmem>>, %arg5: memref<256x256xf32, #tpu.memory_space<vmem>>) attributes {dimension_semantics = [#tpu.dimension_semantics<parallel>, #tpu.dimension_semantics<parallel>], iteration_bounds = array<i64: 1, 1>, scalar_prefetch = 0 : i64, scratch_operands = 0 : i64, tpu.core_type = #tpu.core_type<tc>, window_params = [{transform_indices = @transform_0, window_bounds = array<i64: 256, 128>}, {transform_indices = @transform_1, window_bounds = array<i64: 128, 256>}, {transform_indices = @transform_2, window_bounds = array<i64: 1, 256>}, {transform_indices = @transform_3, window_bounds = array<i64: 256, 256>}]} {
    %c0 = arith.constant 0 : index
    %c0_0 = arith.constant 0 : index
    %0 = vector.load %arg2[%c0, %c0_0] : memref<256x128xbf16, #tpu.memory_space<vmem>>, vector<256x128xbf16>
    %c0_1 = arith.constant 0 : index
    %c0_2 = arith.constant 0 : index
    %1 = vector.load %arg3[%c0_1, %c0_2] : memref<128x256xbf16, #tpu.memory_space<vmem>>, vector<128x256xbf16>
    %cst = arith.constant dense<0.000000e+00> : vector<256x256xf32>
    %2 = tpu.matmul %0, %1, %cst {dimension_numbers = #tpu.dot_dimension_numbers<[1], [0], [0], [1], [0, 0, 1, 1], [], []>} : vector<256x128xbf16>, vector<128x256xbf16>, vector<256x256xf32> -> vector<256x256xf32>
    %c0_3 = arith.constant 0 : index
    %c0_4 = arith.constant 0 : index
    %3 = vector.load %arg4[%c0_3, %c0_4] : memref<1x256xf32, #tpu.memory_space<vmem>>, vector<1x256xf32>
    %4 = vector.broadcast %3 : vector<1x256xf32> to vector<256x256xf32>
    %5 = arith.addf %2, %4 : vector<256x256xf32>
    %c0_5 = arith.constant 0 : index
    %c0_6 = arith.constant 0 : index
    %6 = vector.load %arg5[%c0_5, %c0_6] : memref<256x256xf32, #tpu.memory_space<vmem>>, vector<256x256xf32>
    tpu.vector_store %arg5[%c0_5, %c0_6], %5 {strides = array<i32>} : memref<256x256xf32, #tpu.memory_space<vmem>>, vector<256x256xf32>,
    return
  }
  func.func @transform_0(%arg0: i32, %arg1: i32) -> (i32, i32) {
    %c0_i32 = arith.constant 0 : i32
    %c0_i32_0 = arith.constant 0 : i32
    return %arg1, %c0_i32 : i32, i32
  }
  func.func @transform_1(%arg0: i32, %arg1: i32) -> (i32, i32) {
    %c0_i32 = arith.constant 0 : i32
    %c0_i32_0 = arith.constant 0 : i32
    return %c0_i32, %arg0 : i32, i32
  }
  func.func @transform_2(%arg0: i32, %arg1: i32) -> (i32, i32) {
    %c0_i32 = arith.constant 0 : i32
    %c0_i32_0 = arith.constant 0 : i32
    return %c0_i32, %arg0 : i32, i32
  }
  func.func @transform_3(%arg0: i32, %arg1: i32) -> (i32, i32) {
    %c0_i32 = arith.constant 0 : i32
    return %arg1, %arg0 : i32, i32
  }
}

module attributes {stable_mosaic.version = 11 : i64} {
  func.func @_attn_kernel(%arg0: i32, %arg1: memref<128x128xbf16, #tpu.memory_space<vmem>>, %arg2: memref<128x384xbf16, #tpu.memory_space<vmem>>, %arg3: memref<1x384xf32, #tpu.memory_space<vmem>>, %arg4: memref<128x128xbf16, #tpu.memory_space<vmem>>, %arg5: memref<1x128xf32, #tpu.memory_space<vmem>>, %arg6: memref<1x128xf32, #tpu.memory_space<vmem>>, %arg7: memref<1x128xf32, #tpu.memory_space<vmem>>, %arg8: memref<128x128xbf16, #tpu.memory_space<vmem>>, %arg9: memref<128x128xf32, #tpu.memory_space<vmem>>) attributes {dimension_semantics = [#tpu.dimension_semantics<parallel>], iteration_bounds = array<i64: 2>, scalar_prefetch = 0 : i64, scratch_operands = 1 : i64, tpu.core_type = #tpu.core_type<tc>, window_params = [{transform_indices = @transform_0, window_bounds = array<i64: 128, 128>}, {pipeline_mode = #tpu.pipeline_mode<synchronous>, transform_indices = @transform_1, window_bounds = array<i64: 128, 384>}, {pipeline_mode = #tpu.pipeline_mode<synchronous>, transform_indices = @transform_2, window_bounds = array<i64: 1, 384>}, {pipeline_mode = #tpu.pipeline_mode<synchronous>, transform_indices = @transform_3, window_bounds = array<i64: 128, 128>}, {pipeline_mode = #tpu.pipeline_mode<synchronous>, transform_indices = @transform_4, window_bounds = array<i64: 1, 128>}, {pipeline_mode = #tpu.pipeline_mode<synchronous>, transform_indices = @transform_5, window_bounds = array<i64: 1, 128>}, {pipeline_mode = #tpu.pipeline_mode<synchronous>, transform_indices = @transform_6, window_bounds = array<i64: 1, 128>}, {transform_indices = @transform_7, window_bounds = array<i64: 128, 128>}]} {
    %c0 = arith.constant 0 : index
    %c0_0 = arith.constant 0 : index
    %0 = vector.load %arg1[%c0, %c0_0] : memref<128x128xbf16, #tpu.memory_space<vmem>>, vector<128x128xbf16>
    %1 = arith.extf %0 : vector<128x128xbf16> to vector<128x128xf32>
    %c0_1 = arith.constant 0 : index
    %c0_2 = arith.constant 0 : index
    %2 = vector.load %arg2[%c0_1, %c0_2] : memref<128x384xbf16, #tpu.memory_space<vmem>>, vector<128x384xbf16>
    %cst = arith.constant dense<0.000000e+00> : vector<128x384xf32>
    %3 = tpu.matmul %0, %2, %cst {dimension_numbers = #tpu.dot_dimension_numbers<[1], [0], [0], [1], [0, 0, 1, 1], [], []>} : vector<128x128xbf16>, vector<128x384xbf16>, vector<128x384xf32> -> vector<128x384xf32>
    %c0_3 = arith.constant 0 : index
    %c0_4 = arith.constant 0 : index
    %4 = vector.load %arg3[%c0_3, %c0_4] : memref<1x384xf32, #tpu.memory_space<vmem>>, vector<1x384xf32>
    %5 = vector.broadcast %4 : vector<1x384xf32> to vector<128x384xf32>
    %6 = arith.addf %3, %5 : vector<128x384xf32>
    %7 = vector.extract_strided_slice %6 {offsets = [0, 0], sizes = [128, 32], strides = [1, 1]} : vector<128x384xf32> to vector<128x32xf32>
    %8 = arith.truncf %7 : vector<128x32xf32> to vector<128x32xbf16>
    %9 = vector.extract_strided_slice %6 {offsets = [0, 128], sizes = [128, 32], strides = [1, 1]} : vector<128x384xf32> to vector<128x32xf32>
    %10 = arith.truncf %9 : vector<128x32xf32> to vector<128x32xbf16>
    %11 = vector.extract_strided_slice %6 {offsets = [0, 256], sizes = [128, 32], strides = [1, 1]} : vector<128x384xf32> to vector<128x32xf32>
    %12 = arith.truncf %11 : vector<128x32xf32> to vector<128x32xbf16>
    %cst_5 = arith.constant dense<0.000000e+00> : vector<128x128xf32>
    %13 = tpu.matmul %8, %10, %cst_5 {dimension_numbers = #tpu.dot_dimension_numbers<[1], [1], [0], [0], [0, 0, 1, 0], [], []>} : vector<128x32xbf16>, vector<128x32xbf16>, vector<128x128xf32> -> vector<128x128xf32>
    %cst_6 = arith.constant 0.176776692 : f32
    %14 = vector.broadcast %cst_6 : f32 to vector<128x128xf32>
    %15 = arith.mulf %13, %14 : vector<128x128xf32>
    %cst_7 = arith.constant dense<0xFF800000> : vector<128xf32>
    %16 = vector.multi_reduction <maximumf>, %15, %cst_7 [1] : vector<128x128xf32> to vector<128xf32>
    %17 = vector.shape_cast %16 : vector<128xf32> to vector<128x1xf32>
    %18 = vector.broadcast %17 : vector<128x1xf32> to vector<128x128xf32>
    %19 = arith.subf %15, %18 : vector<128x128xf32>
    %20 = math.exp %19 : vector<128x128xf32>
    %cst_8 = arith.constant dense<0.000000e+00> : vector<128xf32>
    %21 = vector.multi_reduction <add>, %20, %cst_8 [1] : vector<128x128xf32> to vector<128xf32>
    %22 = vector.shape_cast %21 : vector<128xf32> to vector<128x1xf32>
    %23 = tpu.reciprocal %22 {approx = true} : vector<128x1xf32> -> vector<128x1xf32>
    %24 = vector.broadcast %23 : vector<128x1xf32> to vector<128x128xf32>
    %25 = arith.mulf %20, %24 : vector<128x128xf32>
    %26 = arith.truncf %25 : vector<128x128xf32> to vector<128x128xbf16>
    %cst_9 = arith.constant dense<0.000000e+00> : vector<128x32xf32>
    %27 = tpu.matmul %26, %12, %cst_9 {dimension_numbers = #tpu.dot_dimension_numbers<[1], [0], [0], [1], [0, 0, 1, 1], [], []>} : vector<128x128xbf16>, vector<128x32xbf16>, vector<128x32xf32> -> vector<128x32xf32>
    %c0_10 = arith.constant 0 : index
    %c0_11 = arith.constant 0 : index
    %28 = vector.load %arg9[%c0_10, %c0_11] : memref<128x128xf32, #tpu.memory_space<vmem>>, vector<128x32xf32>
    tpu.vector_store %arg9[%c0_10, %c0_11], %27 {strides = array<i32>} : memref<128x128xf32, #tpu.memory_space<vmem>>, vector<128x32xf32>,
    %29 = vector.extract_strided_slice %6 {offsets = [0, 32], sizes = [128, 32], strides = [1, 1]} : vector<128x384xf32> to vector<128x32xf32>
    %30 = arith.truncf %29 : vector<128x32xf32> to vector<128x32xbf16>
    %31 = vector.extract_strided_slice %6 {offsets = [0, 160], sizes = [128, 32], strides = [1, 1]} : vector<128x384xf32> to vector<128x32xf32>
    %32 = arith.truncf %31 : vector<128x32xf32> to vector<128x32xbf16>
    %33 = vector.extract_strided_slice %6 {offsets = [0, 288], sizes = [128, 32], strides = [1, 1]} : vector<128x384xf32> to vector<128x32xf32>
    %34 = arith.truncf %33 : vector<128x32xf32> to vector<128x32xbf16>
    %cst_12 = arith.constant dense<0.000000e+00> : vector<128x128xf32>
    %35 = tpu.matmul %30, %32, %cst_12 {dimension_numbers = #tpu.dot_dimension_numbers<[1], [1], [0], [0], [0, 0, 1, 0], [], []>} : vector<128x32xbf16>, vector<128x32xbf16>, vector<128x128xf32> -> vector<128x128xf32>
    %cst_13 = arith.constant 0.176776692 : f32
    %36 = vector.broadcast %cst_13 : f32 to vector<128x128xf32>
    %37 = arith.mulf %35, %36 : vector<128x128xf32>
    %cst_14 = arith.constant dense<0xFF800000> : vector<128xf32>
    %38 = vector.multi_reduction <maximumf>, %37, %cst_14 [1] : vector<128x128xf32> to vector<128xf32>
    %39 = vector.shape_cast %38 : vector<128xf32> to vector<128x1xf32>
    %40 = vector.broadcast %39 : vector<128x1xf32> to vector<128x128xf32>
    %41 = arith.subf %37, %40 : vector<128x128xf32>
    %42 = math.exp %41 : vector<128x128xf32>
    %cst_15 = arith.constant dense<0.000000e+00> : vector<128xf32>
    %43 = vector.multi_reduction <add>, %42, %cst_15 [1] : vector<128x128xf32> to vector<128xf32>
    %44 = vector.shape_cast %43 : vector<128xf32> to vector<128x1xf32>
    %45 = tpu.reciprocal %44 {approx = true} : vector<128x1xf32> -> vector<128x1xf32>
    %46 = vector.broadcast %45 : vector<128x1xf32> to vector<128x128xf32>
    %47 = arith.mulf %42, %46 : vector<128x128xf32>
    %48 = arith.truncf %47 : vector<128x128xf32> to vector<128x128xbf16>
    %cst_16 = arith.constant dense<0.000000e+00> : vector<128x32xf32>
    %49 = tpu.matmul %48, %34, %cst_16 {dimension_numbers = #tpu.dot_dimension_numbers<[1], [0], [0], [1], [0, 0, 1, 1], [], []>} : vector<128x128xbf16>, vector<128x32xbf16>, vector<128x32xf32> -> vector<128x32xf32>
    %c0_17 = arith.constant 0 : index
    %c32 = arith.constant 32 : index
    %50 = vector.load %arg9[%c0_17, %c32] : memref<128x128xf32, #tpu.memory_space<vmem>>, vector<128x32xf32>
    tpu.vector_store %arg9[%c0_17, %c32], %49 {strides = array<i32>} : memref<128x128xf32, #tpu.memory_space<vmem>>, vector<128x32xf32>,
    %51 = vector.extract_strided_slice %6 {offsets = [0, 64], sizes = [128, 32], strides = [1, 1]} : vector<128x384xf32> to vector<128x32xf32>
    %52 = arith.truncf %51 : vector<128x32xf32> to vector<128x32xbf16>
    %53 = vector.extract_strided_slice %6 {offsets = [0, 192], sizes = [128, 32], strides = [1, 1]} : vector<128x384xf32> to vector<128x32xf32>
    %54 = arith.truncf %53 : vector<128x32xf32> to vector<128x32xbf16>
    %55 = vector.extract_strided_slice %6 {offsets = [0, 320], sizes = [128, 32], strides = [1, 1]} : vector<128x384xf32> to vector<128x32xf32>
    %56 = arith.truncf %55 : vector<128x32xf32> to vector<128x32xbf16>
    %cst_18 = arith.constant dense<0.000000e+00> : vector<128x128xf32>
    %57 = tpu.matmul %52, %54, %cst_18 {dimension_numbers = #tpu.dot_dimension_numbers<[1], [1], [0], [0], [0, 0, 1, 0], [], []>} : vector<128x32xbf16>, vector<128x32xbf16>, vector<128x128xf32> -> vector<128x128xf32>
    %cst_19 = arith.constant 0.176776692 : f32
    %58 = vector.broadcast %cst_19 : f32 to vector<128x128xf32>
    %59 = arith.mulf %57, %58 : vector<128x128xf32>
    %cst_20 = arith.constant dense<0xFF800000> : vector<128xf32>
    %60 = vector.multi_reduction <maximumf>, %59, %cst_20 [1] : vector<128x128xf32> to vector<128xf32>
    %61 = vector.shape_cast %60 : vector<128xf32> to vector<128x1xf32>
    %62 = vector.broadcast %61 : vector<128x1xf32> to vector<128x128xf32>
    %63 = arith.subf %59, %62 : vector<128x128xf32>
    %64 = math.exp %63 : vector<128x128xf32>
    %cst_21 = arith.constant dense<0.000000e+00> : vector<128xf32>
    %65 = vector.multi_reduction <add>, %64, %cst_21 [1] : vector<128x128xf32> to vector<128xf32>
    %66 = vector.shape_cast %65 : vector<128xf32> to vector<128x1xf32>
    %67 = tpu.reciprocal %66 {approx = true} : vector<128x1xf32> -> vector<128x1xf32>
    %68 = vector.broadcast %67 : vector<128x1xf32> to vector<128x128xf32>
    %69 = arith.mulf %64, %68 : vector<128x128xf32>
    %70 = arith.truncf %69 : vector<128x128xf32> to vector<128x128xbf16>
    %cst_22 = arith.constant dense<0.000000e+00> : vector<128x32xf32>
    %71 = tpu.matmul %70, %56, %cst_22 {dimension_numbers = #tpu.dot_dimension_numbers<[1], [0], [0], [1], [0, 0, 1, 1], [], []>} : vector<128x128xbf16>, vector<128x32xbf16>, vector<128x32xf32> -> vector<128x32xf32>
    %c0_23 = arith.constant 0 : index
    %c64 = arith.constant 64 : index
    %72 = vector.load %arg9[%c0_23, %c64] : memref<128x128xf32, #tpu.memory_space<vmem>>, vector<128x32xf32>
    tpu.vector_store %arg9[%c0_23, %c64], %71 {strides = array<i32>} : memref<128x128xf32, #tpu.memory_space<vmem>>, vector<128x32xf32>,
    %73 = vector.extract_strided_slice %6 {offsets = [0, 96], sizes = [128, 32], strides = [1, 1]} : vector<128x384xf32> to vector<128x32xf32>
    %74 = arith.truncf %73 : vector<128x32xf32> to vector<128x32xbf16>
    %75 = vector.extract_strided_slice %6 {offsets = [0, 224], sizes = [128, 32], strides = [1, 1]} : vector<128x384xf32> to vector<128x32xf32>
    %76 = arith.truncf %75 : vector<128x32xf32> to vector<128x32xbf16>
    %77 = vector.extract_strided_slice %6 {offsets = [0, 352], sizes = [128, 32], strides = [1, 1]} : vector<128x384xf32> to vector<128x32xf32>
    %78 = arith.truncf %77 : vector<128x32xf32> to vector<128x32xbf16>
    %cst_24 = arith.constant dense<0.000000e+00> : vector<128x128xf32>
    %79 = tpu.matmul %74, %76, %cst_24 {dimension_numbers = #tpu.dot_dimension_numbers<[1], [1], [0], [0], [0, 0, 1, 0], [], []>} : vector<128x32xbf16>, vector<128x32xbf16>, vector<128x128xf32> -> vector<128x128xf32>
    %cst_25 = arith.constant 0.176776692 : f32
    %80 = vector.broadcast %cst_25 : f32 to vector<128x128xf32>
    %81 = arith.mulf %79, %80 : vector<128x128xf32>
    %cst_26 = arith.constant dense<0xFF800000> : vector<128xf32>
    %82 = vector.multi_reduction <maximumf>, %81, %cst_26 [1] : vector<128x128xf32> to vector<128xf32>
    %83 = vector.shape_cast %82 : vector<128xf32> to vector<128x1xf32>
    %84 = vector.broadcast %83 : vector<128x1xf32> to vector<128x128xf32>
    %85 = arith.subf %81, %84 : vector<128x128xf32>
    %86 = math.exp %85 : vector<128x128xf32>
    %cst_27 = arith.constant dense<0.000000e+00> : vector<128xf32>
    %87 = vector.multi_reduction <add>, %86, %cst_27 [1] : vector<128x128xf32> to vector<128xf32>
    %88 = vector.shape_cast %87 : vector<128xf32> to vector<128x1xf32>
    %89 = tpu.reciprocal %88 {approx = true} : vector<128x1xf32> -> vector<128x1xf32>
    %90 = vector.broadcast %89 : vector<128x1xf32> to vector<128x128xf32>
    %91 = arith.mulf %86, %90 : vector<128x128xf32>
    %92 = arith.truncf %91 : vector<128x128xf32> to vector<128x128xbf16>
    %cst_28 = arith.constant dense<0.000000e+00> : vector<128x32xf32>
    %93 = tpu.matmul %92, %78, %cst_28 {dimension_numbers = #tpu.dot_dimension_numbers<[1], [0], [0], [1], [0, 0, 1, 1], [], []>} : vector<128x128xbf16>, vector<128x32xbf16>, vector<128x32xf32> -> vector<128x32xf32>
    %c0_29 = arith.constant 0 : index
    %c96 = arith.constant 96 : index
    %94 = vector.load %arg9[%c0_29, %c96] : memref<128x128xf32, #tpu.memory_space<vmem>>, vector<128x32xf32>
    tpu.vector_store %arg9[%c0_29, %c96], %93 {strides = array<i32>} : memref<128x128xf32, #tpu.memory_space<vmem>>, vector<128x32xf32>,
    %c0_30 = arith.constant 0 : index
    %c0_31 = arith.constant 0 : index
    %95 = vector.load %arg9[%c0_30, %c0_31] : memref<128x128xf32, #tpu.memory_space<vmem>>, vector<128x128xf32>
    %96 = arith.truncf %95 : vector<128x128xf32> to vector<128x128xbf16>
    %c0_32 = arith.constant 0 : index
    %c0_33 = arith.constant 0 : index
    %97 = vector.load %arg4[%c0_32, %c0_33] : memref<128x128xbf16, #tpu.memory_space<vmem>>, vector<128x128xbf16>
    %cst_34 = arith.constant dense<0.000000e+00> : vector<128x128xf32>
    %98 = tpu.matmul %96, %97, %cst_34 {dimension_numbers = #tpu.dot_dimension_numbers<[1], [0], [0], [1], [0, 0, 1, 1], [], []>} : vector<128x128xbf16>, vector<128x128xbf16>, vector<128x128xf32> -> vector<128x128xf32>
    %c0_35 = arith.constant 0 : index
    %c0_36 = arith.constant 0 : index
    %99 = vector.load %arg5[%c0_35, %c0_36] : memref<1x128xf32, #tpu.memory_space<vmem>>, vector<1x128xf32>
    %100 = vector.broadcast %99 : vector<1x128xf32> to vector<128x128xf32>
    %101 = arith.addf %98, %100 : vector<128x128xf32>
    %102 = arith.addf %1, %101 : vector<128x128xf32>
    %c0_37 = arith.constant 0 : index
    %c0_38 = arith.constant 0 : index
    %103 = vector.load %arg6[%c0_37, %c0_38] : memref<1x128xf32, #tpu.memory_space<vmem>>, vector<1x128xf32>
    %c0_39 = arith.constant 0 : index
    %c0_40 = arith.constant 0 : index
    %104 = vector.load %arg7[%c0_39, %c0_40] : memref<1x128xf32, #tpu.memory_space<vmem>>, vector<1x128xf32>
    %cst_41 = arith.constant dense<0.000000e+00> : vector<128xf32>
    %105 = vector.multi_reduction <add>, %102, %cst_41 [1] : vector<128x128xf32> to vector<128xf32>
    %106 = vector.shape_cast %105 : vector<128xf32> to vector<128x1xf32>
    %cst_42 = arith.constant 1.280000e+02 : f32
    %107 = vector.broadcast %cst_42 : f32 to vector<128x1xf32>
    %108 = arith.divf %106, %107 : vector<128x1xf32>
    %109 = vector.broadcast %108 : vector<128x1xf32> to vector<128x128xf32>
    %110 = arith.subf %102, %109 : vector<128x128xf32>
    %111 = arith.mulf %110, %110 : vector<128x128xf32>
    %cst_43 = arith.constant dense<0.000000e+00> : vector<128xf32>
    %112 = vector.multi_reduction <add>, %111, %cst_43 [1] : vector<128x128xf32> to vector<128xf32>
    %113 = vector.shape_cast %112 : vector<128xf32> to vector<128x1xf32>
    %cst_44 = arith.constant 1.280000e+02 : f32
    %114 = vector.broadcast %cst_44 : f32 to vector<128x1xf32>
    %115 = arith.divf %113, %114 : vector<128x1xf32>
    %116 = vector.broadcast %108 : vector<128x1xf32> to vector<128x128xf32>
    %117 = arith.subf %102, %116 : vector<128x128xf32>
    %cst_45 = arith.constant 9.99999974E-6 : f32
    %118 = vector.broadcast %cst_45 : f32 to vector<128x1xf32>
    %119 = arith.addf %115, %118 : vector<128x1xf32>
    %120 = math.rsqrt %119 : vector<128x1xf32>
    %121 = vector.broadcast %120 : vector<128x1xf32> to vector<128x128xf32>
    %122 = arith.mulf %117, %121 : vector<128x128xf32>
    %123 = vector.broadcast %103 : vector<1x128xf32> to vector<128x128xf32>
    %124 = arith.mulf %122, %123 : vector<128x128xf32>
    %125 = vector.broadcast %104 : vector<1x128xf32> to vector<128x128xf32>
    %126 = arith.addf %124, %125 : vector<128x128xf32>
    %127 = arith.truncf %126 : vector<128x128xf32> to vector<128x128xbf16>
    %c0_46 = arith.constant 0 : index
    %c0_47 = arith.constant 0 : index
    %128 = vector.load %arg8[%c0_46, %c0_47] : memref<128x128xbf16, #tpu.memory_space<vmem>>, vector<128x128xbf16>
    tpu.vector_store %arg8[%c0_46, %c0_47], %127 {strides = array<i32>} : memref<128x128xbf16, #tpu.memory_space<vmem>>, vector<128x128xbf16>,
    return
  }
  func.func @transform_0(%arg0: i32) -> (i32, i32) {
    %c0_i32 = arith.constant 0 : i32
    %c0_i32_0 = arith.constant 0 : i32
    return %arg0, %c0_i32 : i32, i32
  }
  func.func @transform_1(%arg0: i32) -> (i32, i32) {
    %c0_i32 = arith.constant 0 : i32
    %c0_i32_0 = arith.constant 0 : i32
    %c0_i32_1 = arith.constant 0 : i32
    return %c0_i32, %c0_i32_0 : i32, i32
  }
  func.func @transform_2(%arg0: i32) -> (i32, i32) {
    %c0_i32 = arith.constant 0 : i32
    %c0_i32_0 = arith.constant 0 : i32
    %c0_i32_1 = arith.constant 0 : i32
    return %c0_i32, %c0_i32_0 : i32, i32
  }
  func.func @transform_3(%arg0: i32) -> (i32, i32) {
    %c0_i32 = arith.constant 0 : i32
    %c0_i32_0 = arith.constant 0 : i32
    %c0_i32_1 = arith.constant 0 : i32
    return %c0_i32, %c0_i32_0 : i32, i32
  }
  func.func @transform_4(%arg0: i32) -> (i32, i32) {
    %c0_i32 = arith.constant 0 : i32
    %c0_i32_0 = arith.constant 0 : i32
    %c0_i32_1 = arith.constant 0 : i32
    return %c0_i32, %c0_i32_0 : i32, i32
  }
  func.func @transform_5(%arg0: i32) -> (i32, i32) {
    %c0_i32 = arith.constant 0 : i32
    %c0_i32_0 = arith.constant 0 : i32
    %c0_i32_1 = arith.constant 0 : i32
    return %c0_i32, %c0_i32_0 : i32, i32
  }
  func.func @transform_6(%arg0: i32) -> (i32, i32) {
    %c0_i32 = arith.constant 0 : i32
    %c0_i32_0 = arith.constant 0 : i32
    %c0_i32_1 = arith.constant 0 : i32
    return %c0_i32, %c0_i32_0 : i32, i32
  }
  func.func @transform_7(%arg0: i32) -> (i32, i32) {
    %c0_i32 = arith.constant 0 : i32
    %c0_i32_0 = arith.constant 0 : i32
    return %arg0, %c0_i32 : i32, i32
  }
}

</mosaic_0001>

<llo_original>
// kernel: bert_forward.9
$region0: #{bert_forward.9}
  #allocation0 [shape = 'u32[]', space=smem, size = 0x4, offset = 0x4, fixed_abs, tag = 'smem constant byte address 0x4 - core index']
  #allocation1 [shape = 'u32[144,128]{1,0:T(1,128)}', space=vmem, size = 0x12000, scoped, tag = 'internal scratch']
  %s0 = inlined_call_operand.vmem [shape: bf16[256,128], index: 0, kind: input, shape index: {}]
  %s1 = inlined_call_operand.vmem [shape: bf16[128,256], index: 1, kind: input, shape index: {}]
  %s2 = inlined_call_operand.vmem [shape: f32[1,256], index: 2, kind: input, shape index: {}]
  %s3 = inlined_call_operand.hbm [shape: f32[256,256], index: 3, kind: output, shape index: {}]
  %s4 = sld [smem:[#allocation0]]
  $region22: #{bert_forward.9} parent=0
    _
  %s6 = ssub.s32 1, %s4
  %s7 = scalar_select 0, %s6, %s4
  $region1: #{bert_forward.9} parent=0
    #allocation2 [shape = 'u8[262144]{0}', space=vmem, size = 0x40000, scoped, tag = 'output window, operand 0, single buffered']
    #allocation3 [shape = 's32[1]{0}', space=sflag, size = 0x4, scoped, tag = 'scoped memory for bert_forward.9']
    %8 = vsyncpa [#allocation3], 0
    // Predicated region
    $region2: #{bert_forward.9} parent=1 // pred_check
      _
    $region3: #{bert_forward.9} parent=1 // pred_check_branch
      %10 = sbr.rel (0) target = $region5
    $region4: #{bert_forward.9} parent=1 // pred_region
      _
    $region5: #{bert_forward.9} parent=1 // pred_fallthru
      _
    // Predicated region
    $region6: #{bert_forward.9} parent=1 // pred_check
      _
    $region7: #{bert_forward.9} parent=1 // pred_check_branch
      %12 = sbr.rel (0) target = $region9
    $region8: #{bert_forward.9} parent=1 // pred_region
      _
    $region9: #{bert_forward.9} parent=1 // pred_fallthru
      _
    // Predicated region
    $region10: #{bert_forward.9} parent=1 // pred_check
      _
    $region11: #{bert_forward.9} parent=1 // pred_check_branch
      %14 = sbr.rel (0) target = $region13
    $region12: #{bert_forward.9} parent=1 // pred_region
      _
    $region13: #{bert_forward.9} parent=1 // pred_fallthru
      _
    %v16 = vld [vmem:[%s0] sm:$0xf]
    %v17 = vld [vmem:[%s0 + $0x4] sm:$0xf]
    %v18 = vld [vmem:[%s0 + $0x8] sm:$0xf]
    %v19 = vld [vmem:[%s0 + $0xc] sm:$0xf]
    %v20 = vld [vmem:[%s0 + $0x10] sm:$0xf]
    %v21 = vld [vmem:[%s0 + $0x14] sm:$0xf]
    %v22 = vld [vmem:[%s0 + $0x18] sm:$0xf]
    %v23 = vld [vmem:[%s0 + $0x1c] sm:$0xf]
    %v24 = vld [vmem:[%s0 + $0x20] sm:$0xf]
    %v25 = vld [vmem:[%s0 + $0x24] sm:$0xf]
    %v26 = vld [vmem:[%s0 + $0x28] sm:$0xf]
    %v27 = vld [vmem:[%s0 + $0x2c] sm:$0xf]
    %v28 = vld [vmem:[%s0 + $0x30] sm:$0xf]
    %v29 = vld [vmem:[%s0 + $0x34] sm:$0xf]
    %v30 = vld [vmem:[%s0 + $0x38] sm:$0xf]
    %v31 = vld [vmem:[%s0 + $0x3c] sm:$0xf]
    %v32 = vld [vmem:[%s0 + $0x40] sm:$0xf]
    %v33 = vld [vmem:[%s0 + $0x44] sm:$0xf]
    %v34 = vld [vmem:[%s0 + $0x48] sm:$0xf]
    %v35 = vld [vmem:[%s0 + $0x4c] sm:$0xf]
    %v36 = vld [vmem:[%s0 + $0x50] sm:$0xf]
    %v37 = vld [vmem:[%s0 + $0x54] sm:$0xf]
    %v38 = vld [vmem:[%s0 + $0x58] sm:$0xf]
    %v39 = vld [vmem:[%s0 + $0x5c] sm:$0xf]
    %v40 = vld [vmem:[%s0 + $0x60] sm:$0xf]
    %v41 = vld [vmem:[%s0 + $0x64] sm:$0xf]
    %v42 = vld [vmem:[%s0 + $0x68] sm:$0xf]
    %v43 = vld [vmem:[%s0 + $0x6c] sm:$0xf]
    %v44 = vld [vmem:[%s0 + $0x70] sm:$0xf]
    %v45 = vld [vmem:[%s0 + $0x74] sm:$0xf]
    %v46 = vld [vmem:[%s0 + $0x78] sm:$0xf]
    %v47 = vld [vmem:[%s0 + $0x7c] sm:$0xf]
    %v48 = vld [vmem:[%s1] sm:$0xff]
    %v49 = vld [vmem:[%s1 + $0x8] sm:$0xff]
    %v50 = vld [vmem:[%s1 + $0x10] sm:$0xff]
    %v51 = vld [vmem:[%s1 + $0x18] sm:$0xff]
    %v52 = vld [vmem:[%s1 + $0x20] sm:$0xff]
    %v53 = vld [vmem:[%s1 + $0x28] sm:$0xff]
    %v54 = vld [vmem:[%s1 + $0x30] sm:$0xff]
    %v55 = vld [vmem:[%s1 + $0x38] sm:$0xff]
    %v56 = vld [vmem:[%s1 + $0x40] sm:$0xff]
    %v57 = vld [vmem:[%s1 + $0x48] sm:$0xff]
    %v58 = vld [vmem:[%s1 + $0x50] sm:$0xff]
    %v59 = vld [vmem:[%s1 + $0x58] sm:$0xff]
    %v60 = vld [vmem:[%s1 + $0x60] sm:$0xff]
    %v61 = vld [vmem:[%s1 + $0x68] sm:$0xff]
    %v62 = vld [vmem:[%s1 + $0x70] sm:$0xff]
    %v63 = vld [vmem:[%s1 + $0x78] sm:$0xff]
    %v64 = vld [vmem:[%s2] sm:$0x3]
    %v66 = vlaneseq
    %v67 = vshrl.u32 %v66, 7
    %v68 = vsub.s32 0, %v67
    %v69 = vrot.slane %v64, %v68
    %v70 = vlaneseq
    %v71 = vshrl.u32 %v70, 7
    %v72 = vsub.s32 1, %v71
    %v73 = vrot.slane %v64, %v72
    %v108 = vunpack.c.l.b16 %v16
    %v109 = vunpack.c.l.b16 %v17
    %v110 = vunpack.c.l.b16 %v18
    %v111 = vunpack.c.l.b16 %v19
    %v112 = vunpack.c.l.b16 %v20
    %v113 = vunpack.c.l.b16 %v21
    %v114 = vunpack.c.l.b16 %v22
    %v115 = vunpack.c.l.b16 %v23
    %v116 = vunpack.c.l.b16 %v24
    %v117 = vunpack.c.l.b16 %v25
    %v118 = vunpack.c.l.b16 %v26
    %v119 = vunpack.c.l.b16 %v27
    %v120 = vunpack.c.l.b16 %v28
    %v121 = vunpack.c.l.b16 %v29
    %v122 = vunpack.c.l.b16 %v30
    %v123 = vunpack.c.l.b16 %v31
    %v124 = vunpack.c.l.b16 %v32
    %v125 = vunpack.c.l.b16 %v33
    %v126 = vunpack.c.l.b16 %v34
    %v127 = vunpack.c.l.b16 %v35
    %v128 = vunpack.c.l.b16 %v36
    %v129 = vunpack.c.l.b16 %v37
    %v130 = vunpack.c.l.b16 %v38
    %v131 = vunpack.c.l.b16 %v39
    %v132 = vunpack.c.l.b16 %v40
    %v133 = vunpack.c.l.b16 %v41
    %v134 = vunpack.c.l.b16 %v42
    %v135 = vunpack.c.l.b16 %v43
    %v136 = vunpack.c.l.b16 %v44
    %v137 = vunpack.c.l.b16 %v45
    %v138 = vunpack.c.l.b16 %v46
    %v139 = vunpack.c.l.b16 %v47
    %v140 = vpack.c.b16 %v109, %v108
    %v141 = vpack.c.b16 %v111, %v110
    %v142 = vpack.c.b16 %v113, %v112
    %v143 = vpack.c.b16 %v115, %v114
    %v144 = vpack.c.b16 %v117, %v116
    %v145 = vpack.c.b16 %v119, %v118
    %v146 = vpack.c.b16 %v121, %v120
    %v147 = vpack.c.b16 %v123, %v122
    %v148 = vpack.c.b16 %v125, %v124
    %v149 = vpack.c.b16 %v127, %v126
    %v150 = vpack.c.b16 %v129, %v128
    %v151 = vpack.c.b16 %v131, %v130
    %v152 = vpack.c.b16 %v133, %v132
    %v153 = vpack.c.b16 %v135, %v134
    %v154 = vpack.c.b16 %v137, %v136
    %v155 = vpack.c.b16 %v139, %v138
    %v188 = vunpack.c.l.b16 %v48
    %v189 = vunpack.c.h.b16 %v48
    %v190 = vunpack.c.l.b16 %v49
    %v191 = vunpack.c.h.b16 %v49
    %v192 = vunpack.c.l.b16 %v50
    %v193 = vunpack.c.h.b16 %v50
    %v194 = vunpack.c.l.b16 %v51
    %v195 = vunpack.c.h.b16 %v51
    %v196 = vunpack.c.l.b16 %v52
    %v197 = vunpack.c.h.b16 %v52
    %v198 = vunpack.c.l.b16 %v53
    %v199 = vunpack.c.h.b16 %v53
    %v200 = vunpack.c.l.b16 %v54
    %v201 = vunpack.c.h.b16 %v54
    %v202 = vunpack.c.l.b16 %v55
    %v203 = vunpack.c.h.b16 %v55
    %v204 = vunpack.c.l.b16 %v56
    %v205 = vunpack.c.h.b16 %v56
    %v206 = vunpack.c.l.b16 %v57
    %v207 = vunpack.c.h.b16 %v57
    %v208 = vunpack.c.l.b16 %v58
    %v209 = vunpack.c.h.b16 %v58
    %v210 = vunpack.c.l.b16 %v59
    %v211 = vunpack.c.h.b16 %v59
    %v212 = vunpack.c.l.b16 %v60
    %v213 = vunpack.c.h.b16 %v60
    %v214 = vunpack.c.l.b16 %v61
    %v215 = vunpack.c.h.b16 %v61
    %v216 = vunpack.c.l.b16 %v62
    %v217 = vunpack.c.h.b16 %v62
    %v218 = vunpack.c.l.b16 %v63
    %v219 = vunpack.c.h.b16 %v63
    %v220 = vpack.c.b16 %v190, %v188
    %v221 = vpack.c.b16 %v191, %v189
    %v222 = vpack.c.b16 %v194, %v192
    %v223 = vpack.c.b16 %v195, %v193
    %v224 = vpack.c.b16 %v198, %v196
    %v225 = vpack.c.b16 %v199, %v197
    %v226 = vpack.c.b16 %v202, %v200
    %v227 = vpack.c.b16 %v203, %v201
    %v228 = vpack.c.b16 %v206, %v204
    %v229 = vpack.c.b16 %v207, %v205
    %v230 = vpack.c.b16 %v210, %v208
    %v231 = vpack.c.b16 %v211, %v209
    %v232 = vpack.c.b16 %v214, %v212
    %v233 = vpack.c.b16 %v215, %v213
    %v234 = vpack.c.b16 %v218, %v216
    %v235 = vpack.c.b16 %v219, %v217
    %252 = vmatprep.subr.bf16.mxu0 %v221
    %253 = vmatpush1.bf16.msra.mxu0 %v220
    %254 = vmatprep.subr.bf16.mxu0 %v223
    %255 = vmatpush1.bf16.msra.mxu0 %v222
    %256 = vmatprep.subr.bf16.mxu0 %v225
    %257 = vmatpush1.bf16.msra.mxu0 %v224
    %258 = vmatprep.subr.bf16.mxu0 %v227
    %259 = vmatpush1.bf16.msra.mxu0 %v226
    %260 = vmatprep.subr.bf16.mxu0 %v229
    %261 = vmatpush1.bf16.msra.mxu0 %v228
    %262 = vmatprep.subr.bf16.mxu0 %v231
    %263 = vmatpush1.bf16.msra.mxu0 %v230
    %264 = vmatprep.subr.bf16.mxu0 %v233
    %265 = vmatpush1.bf16.msra.mxu0 %v232
    %266 = vmatprep.subr.bf16.mxu0 %v235
    %267 = vmatpush1.bf16.msra.mxu0 %v234
    %268 = vmatprep.subr.bf16.mxu0 0
    %269 = vmatpush1.bf16.msra.mxu0 0
    %270 = vmatprep.subr.bf16.mxu0 0
    %271 = vmatpush1.bf16.msra.mxu0 0
    %272 = vmatprep.subr.bf16.mxu0 0
    %273 = vmatpush1.bf16.msra.mxu0 0
    %274 = vmatprep.subr.bf16.mxu0 0
    %275 = vmatpush1.bf16.msra.mxu0 0
    %276 = vmatprep.subr.bf16.mxu0 0
    %277 = vmatpush1.bf16.msra.mxu0 0
    %278 = vmatprep.subr.bf16.mxu0 0
    %279 = vmatpush1.bf16.msra.mxu0 0
    %280 = vmatprep.subr.bf16.mxu0 0
    %281 = vmatpush1.bf16.msra.mxu0 0
    %282 = vmatprep.subr.bf16.mxu0 0
    %283 = vmatpush1.bf16.msra.mxu0 0
    %284 = vmatprep.mubr.bf16.mxu0 0
    %285 = vmatmul.mubr.bf16.gmra.mrb[0].mxu0 %v140
    %v286 = vpop.f32.mrb[0].mxu0
    %v287 = vadd.f32 %v69, %v286
    %v288 = vpop.f32.mrb[0].mxu0
    %v289 = vadd.f32 %v73, %v288
    %v290 = vpop.f32.mrb[0].mxu0
    %v291 = vadd.f32 %v69, %v290
    %v292 = vpop.f32.mrb[0].mxu0
    %v293 = vadd.f32 %v73, %v292
    %294 = vmatprep.mubr.bf16.mxu0 0
    %295 = vmatmul.mubr.bf16.gmra.mrb[0].mxu0 %v141
    %v296 = vpop.f32.mrb[0].mxu0
    %v297 = vadd.f32 %v69, %v296
    %v298 = vpop.f32.mrb[0].mxu0
    %v299 = vadd.f32 %v73, %v298
    %v300 = vpop.f32.mrb[0].mxu0
    %v301 = vadd.f32 %v69, %v300
    %v302 = vpop.f32.mrb[0].mxu0
    %v303 = vadd.f32 %v73, %v302
    %304 = vmatprep.mubr.bf16.mxu0 0
    %305 = vmatmul.mubr.bf16.gmra.mrb[0].mxu0 %v142
    %v306 = vpop.f32.mrb[0].mxu0
    %v307 = vadd.f32 %v69, %v306
    %v308 = vpop.f32.mrb[0].mxu0
    %v309 = vadd.f32 %v73, %v308
    %v310 = vpop.f32.mrb[0].mxu0
    %v311 = vadd.f32 %v69, %v310
    %v312 = vpop.f32.mrb[0].mxu0
    %v313 = vadd.f32 %v73, %v312
    %314 = vmatprep.mubr.bf16.mxu0 0
    %315 = vmatmul.mubr.bf16.gmra.mrb[0].mxu0 %v143
    %v316 = vpop.f32.mrb[0].mxu0
    %v317 = vadd.f32 %v69, %v316
    %v318 = vpop.f32.mrb[0].mxu0
    %v319 = vadd.f32 %v73, %v318
    %v320 = vpop.f32.mrb[0].mxu0
    %v321 = vadd.f32 %v69, %v320
    %v322 = vpop.f32.mrb[0].mxu0
    %v323 = vadd.f32 %v73, %v322
    %324 = vmatprep.mubr.bf16.mxu0 0
    %325 = vmatmul.mubr.bf16.gmra.mrb[0].mxu0 %v144
    %v326 = vpop.f32.mrb[0].mxu0
    %v327 = vadd.f32 %v69, %v326
    %v328 = vpop.f32.mrb[0].mxu0
    %v329 = vadd.f32 %v73, %v328
    %v330 = vpop.f32.mrb[0].mxu0
    %v331 = vadd.f32 %v69, %v330
    %v332 = vpop.f32.mrb[0].mxu0
    %v333 = vadd.f32 %v73, %v332
    %334 = vmatprep.mubr.bf16.mxu0 0
    %335 = vmatmul.mubr.bf16.gmra.mrb[0].mxu0 %v145
    %v336 = vpop.f32.mrb[0].mxu0
    %v337 = vadd.f32 %v69, %v336
    %v338 = vpop.f32.mrb[0].mxu0
    %v339 = vadd.f32 %v73, %v338
    %v340 = vpop.f32.mrb[0].mxu0
    %v341 = vadd.f32 %v69, %v340
    %v342 = vpop.f32.mrb[0].mxu0
    %v343 = vadd.f32 %v73, %v342
    %344 = vmatprep.mubr.bf16.mxu0 0
    %345 = vmatmul.mubr.bf16.gmra.mrb[0].mxu0 %v146
    %v346 = vpop.f32.mrb[0].mxu0
    %v347 = vadd.f32 %v69, %v346
    %v348 = vpop.f32.mrb[0].mxu0
    %v349 = vadd.f32 %v73, %v348
    %v350 = vpop.f32.mrb[0].mxu0
    %v351 = vadd.f32 %v69, %v350
    %v352 = vpop.f32.mrb[0].mxu0
    %v353 = vadd.f32 %v73, %v352
    %354 = vmatprep.mubr.bf16.mxu0 0
    %355 = vmatmul.mubr.bf16.gmra.mrb[0].mxu0 %v147
    %v356 = vpop.f32.mrb[0].mxu0
    %v357 = vadd.f32 %v69, %v356
    %v358 = vpop.f32.mrb[0].mxu0
    %v359 = vadd.f32 %v73, %v358
    %v360 = vpop.f32.mrb[0].mxu0
    %v361 = vadd.f32 %v69, %v360
    %v362 = vpop.f32.mrb[0].mxu0
    %v363 = vadd.f32 %v73, %v362
    %364 = vmatprep.mubr.bf16.mxu0 0
    %365 = vmatmul.mubr.bf16.gmra.mrb[0].mxu0 %v148
    %v366 = vpop.f32.mrb[0].mxu0
    %v367 = vadd.f32 %v69, %v366
    %v368 = vpop.f32.mrb[0].mxu0
    %v369 = vadd.f32 %v73, %v368
    %v370 = vpop.f32.mrb[0].mxu0
    %v371 = vadd.f32 %v69, %v370
    %v372 = vpop.f32.mrb[0].mxu0
    %v373 = vadd.f32 %v73, %v372
    %374 = vmatprep.mubr.bf16.mxu0 0
    %375 = vmatmul.mubr.bf16.gmra.mrb[0].mxu0 %v149
    %v376 = vpop.f32.mrb[0].mxu0
    %v377 = vadd.f32 %v69, %v376
    %v378 = vpop.f32.mrb[0].mxu0
    %v379 = vadd.f32 %v73, %v378
    %v380 = vpop.f32.mrb[0].mxu0
    %v381 = vadd.f32 %v69, %v380
    %v382 = vpop.f32.mrb[0].mxu0
    %v383 = vadd.f32 %v73, %v382
    %384 = vmatprep.mubr.bf16.mxu0 0
    %385 = vmatmul.mubr.bf16.gmra.mrb[0].mxu0 %v150
    %v386 = vpop.f32.mrb[0].mxu0
    %v387 = vadd.f32 %v69, %v386
    %v388 = vpop.f32.mrb[0].mxu0
    %v389 = vadd.f32 %v73, %v388
    %v390 = vpop.f32.mrb[0].mxu0
    %v391 = vadd.f32 %v69, %v390
    %v392 = vpop.f32.mrb[0].mxu0
    %v393 = vadd.f32 %v73, %v392
    %394 = vmatprep.mubr.bf16.mxu0 0
    %395 = vmatmul.mubr.bf16.gmra.mrb[0].mxu0 %v151
    %v396 = vpop.f32.mrb[0].mxu0
    %v397 = vadd.f32 %v69, %v396
    %v398 = vpop.f32.mrb[0].mxu0
    %v399 = vadd.f32 %v73, %v398
    %v400 = vpop.f32.mrb[0].mxu0
    %v401 = vadd.f32 %v69, %v400
    %v402 = vpop.f32.mrb[0].mxu0
    %v403 = vadd.f32 %v73, %v402
    %404 = vmatprep.mubr.bf16.mxu0 0
    %405 = vmatmul.mubr.bf16.gmra.mrb[0].mxu0 %v152
    %v406 = vpop.f32.mrb[0].mxu0
    %v407 = vadd.f32 %v69, %v406
    %v408 = vpop.f32.mrb[0].mxu0
    %v409 = vadd.f32 %v73, %v408
    %v410 = vpop.f32.mrb[0].mxu0
    %v411 = vadd.f32 %v69, %v410
    %v412 = vpop.f32.mrb[0].mxu0
    %v413 = vadd.f32 %v73, %v412
    %414 = vmatprep.mubr.bf16.mxu0 0
    %415 = vmatmul.mubr.bf16.gmra.mrb[0].mxu0 %v153
    %v416 = vpop.f32.mrb[0].mxu0
    %v417 = vadd.f32 %v69, %v416
    %v418 = vpop.f32.mrb[0].mxu0
    %v419 = vadd.f32 %v73, %v418
    %v420 = vpop.f32.mrb[0].mxu0
    %v421 = vadd.f32 %v69, %v420
    %v422 = vpop.f32.mrb[0].mxu0
    %v423 = vadd.f32 %v73, %v422
    %424 = vmatprep.mubr.bf16.mxu0 0
    %425 = vmatmul.mubr.bf16.gmra.mrb[0].mxu0 %v154
    %v426 = vpop.f32.mrb[0].mxu0
    %v427 = vadd.f32 %v69, %v426
    %v428 = vpop.f32.mrb[0].mxu0
    %v429 = vadd.f32 %v73, %v428
    %v430 = vpop.f32.mrb[0].mxu0
    %v431 = vadd.f32 %v69, %v430
    %v432 = vpop.f32.mrb[0].mxu0
    %v433 = vadd.f32 %v73, %v432
    %434 = vmatprep.mubr.bf16.mxu0 0
    %435 = vmatmul.mubr.bf16.gmra.mrb[0].mxu0 %v155
    %v436 = vpop.f32.mrb[0].mxu0
    %v437 = vadd.f32 %v69, %v436
    %v438 = vpop.f32.mrb[0].mxu0
    %v439 = vadd.f32 %v73, %v438
    %v440 = vpop.f32.mrb[0].mxu0
    %v441 = vadd.f32 %v69, %v440
    %v442 = vpop.f32.mrb[0].mxu0
    %v443 = vadd.f32 %v73, %v442
    %444 = vdwg.mxu0
    %445 = vst [vmem:[#allocation2] sm:$0xff] %v287
    %446 = vst [vmem:[#allocation2 + $0x8] sm:$0xff] %v289
    %447 = vst [vmem:[#allocation2 + $0x10] sm:$0xff] %v291
    %448 = vst [vmem:[#allocation2 + $0x18] sm:$0xff] %v293
    %449 = vst [vmem:[#allocation2 + $0x20] sm:$0xff] %v297
    %450 = vst [vmem:[#allocation2 + $0x28] sm:$0xff] %v299
    %451 = vst [vmem:[#allocation2 + $0x30] sm:$0xff] %v301
    %452 = vst [vmem:[#allocation2 + $0x38] sm:$0xff] %v303
    %453 = vst [vmem:[#allocation2 + $0x40] sm:$0xff] %v307
    %454 = vst [vmem:[#allocation2 + $0x48] sm:$0xff] %v309
    %455 = vst [vmem:[#allocation2 + $0x50] sm:$0xff] %v311
    %456 = vst [vmem:[#allocation2 + $0x58] sm:$0xff] %v313
    %457 = vst [vmem:[#allocation2 + $0x60] sm:$0xff] %v317
    %458 = vst [vmem:[#allocation2 + $0x68] sm:$0xff] %v319
    %459 = vst [vmem:[#allocation2 + $0x70] sm:$0xff] %v321
    %460 = vst [vmem:[#allocation2 + $0x78] sm:$0xff] %v323
    %461 = vst [vmem:[#allocation2 + $0x80] sm:$0xff] %v327
    %462 = vst [vmem:[#allocation2 + $0x88] sm:$0xff] %v329
    %463 = vst [vmem:[#allocation2 + $0x90] sm:$0xff] %v331
    %464 = vst [vmem:[#allocation2 + $0x98] sm:$0xff] %v333
    %465 = vst [vmem:[#allocation2 + $0xa0] sm:$0xff] %v337
    %466 = vst [vmem:[#allocation2 + $0xa8] sm:$0xff] %v339
    %467 = vst [vmem:[#allocation2 + $0xb0] sm:$0xff] %v341
    %468 = vst [vmem:[#allocation2 + $0xb8] sm:$0xff] %v343
    %469 = vst [vmem:[#allocation2 + $0xc0] sm:$0xff] %v347
    %470 = vst [vmem:[#allocation2 + $0xc8] sm:$0xff] %v349
    %471 = vst [vmem:[#allocation2 + $0xd0] sm:$0xff] %v351
    %472 = vst [vmem:[#allocation2 + $0xd8] sm:$0xff] %v353
    %473 = vst [vmem:[#allocation2 + $0xe0] sm:$0xff] %v357
    %474 = vst [vmem:[#allocation2 + $0xe8] sm:$0xff] %v359
    %475 = vst [vmem:[#allocation2 + $0xf0] sm:$0xff] %v361
    %476 = vst [vmem:[#allocation2 + $0xf8] sm:$0xff] %v363
    %477 = vst [vmem:[#allocation2 + $0x100] sm:$0xff] %v367
    %478 = vst [vmem:[#allocation2 + $0x108] sm:$0xff] %v369
    %479 = vst [vmem:[#allocation2 + $0x110] sm:$0xff] %v371
    %480 = vst [vmem:[#allocation2 + $0x118] sm:$0xff] %v373
    %481 = vst [vmem:[#allocation2 + $0x120] sm:$0xff] %v377
    %482 = vst [vmem:[#allocation2 + $0x128] sm:$0xff] %v379
    %483 = vst [vmem:[#allocation2 + $0x130] sm:$0xff] %v381
    %484 = vst [vmem:[#allocation2 + $0x138] sm:$0xff] %v383
    %485 = vst [vmem:[#allocation2 + $0x140] sm:$0xff] %v387
    %486 = vst [vmem:[#allocation2 + $0x148] sm:$0xff] %v389
    %487 = vst [vmem:[#allocation2 + $0x150] sm:$0xff] %v391
    %488 = vst [vmem:[#allocation2 + $0x158] sm:$0xff] %v393
    %489 = vst [vmem:[#allocation2 + $0x160] sm:$0xff] %v397
    %490 = vst [vmem:[#allocation2 + $0x168] sm:$0xff] %v399
    %491 = vst [vmem:[#allocation2 + $0x170] sm:$0xff] %v401
    %492 = vst [vmem:[#allocation2 + $0x178] sm:$0xff] %v403
    %493 = vst [vmem:[#allocation2 + $0x180] sm:$0xff] %v407
    %494 = vst [vmem:[#allocation2 + $0x188] sm:$0xff] %v409
    %495 = vst [vmem:[#allocation2 + $0x190] sm:$0xff] %v411
    %496 = vst [vmem:[#allocation2 + $0x198] sm:$0xff] %v413
    %497 = vst [vmem:[#allocation2 + $0x1a0] sm:$0xff] %v417
    %498 = vst [vmem:[#allocation2 + $0x1a8] sm:$0xff] %v419
    %499 = vst [vmem:[#allocation2 + $0x1b0] sm:$0xff] %v421
    %500 = vst [vmem:[#allocation2 + $0x1b8] sm:$0xff] %v423
    %501 = vst [vmem:[#allocation2 + $0x1c0] sm:$0xff] %v427
    %502 = vst [vmem:[#allocation2 + $0x1c8] sm:$0xff] %v429
    %503 = vst [vmem:[#allocation2 + $0x1d0] sm:$0xff] %v431
    %504 = vst [vmem:[#allocation2 + $0x1d8] sm:$0xff] %v433
    %505 = vst [vmem:[#allocation2 + $0x1e0] sm:$0xff] %v437
    %506 = vst [vmem:[#allocation2 + $0x1e8] sm:$0xff] %v439
    %507 = vst [vmem:[#allocation2 + $0x1f0] sm:$0xff] %v441
    %508 = vst [vmem:[#allocation2 + $0x1f8] sm:$0xff] %v443
    // Predicated region
    $region14: #{bert_forward.9} parent=1 // pred_check
      _
    $region15: #{bert_forward.9} parent=1 // pred_check_branch
      %510 = sbr.rel (0) target = $region17
    $region16: #{bert_forward.9} parent=1 // pred_region
      %s512 = ssub.s32 8192, 8192
      %513 = vsyncadd [#allocation3], %s512
      %s514 = sshll.u32 [#allocation2], 4
      %s515 = int_to_ptr.vmem [resolvable:$true] %s514
      %520 = dma.vmem_to_hbm [thread:$0]  %s515, 8192, %s3, [#allocation3], 256, 256, 16
    $region17: #{bert_forward.9} parent=1 // pred_fallthru
      _
    // Predicated region
    $region18: #{bert_forward.9} parent=1 // pred_check
      _
    $region19: #{bert_forward.9} parent=1 // pred_check_branch
      %522 = sbr.rel (0) target = $region21
    $region20: #{bert_forward.9} parent=1 // pred_region
      %523 = dma.done [#allocation3], 8192
    $region21: #{bert_forward.9} parent=1 // pred_fallthru
      _
    %524 = vsyncpa [#allocation3], 1

// kernel: bert_forward.6
$region0: #{bert_forward.6}
  #allocation0 [shape = 'u32[]', space=smem, size = 0x4, offset = 0x4, fixed_abs, tag = 'smem constant byte address 0x4 - core index']
  #allocation1 [shape = 'u32[144,128]{1,0:T(1,128)}', space=vmem, size = 0x12000, scoped, tag = 'internal scratch']
  %s0 = inlined_call_operand.vmem [shape: bf16[256,128], index: 0, kind: input, shape index: {}, may-alias: {0,7}]
  %s1 = inlined_call_operand.vmem [shape: bf16[128,128], index: 1, kind: input, shape index: {}]
  %s2 = inlined_call_operand.vmem [shape: f32[1,128], index: 2, kind: input, shape index: {}]
  %s3 = inlined_call_operand.vmem [shape: bf16[128,128], index: 3, kind: input, shape index: {}]
  %s4 = inlined_call_operand.vmem [shape: f32[1,128], index: 4, kind: input, shape index: {}]
  %s5 = inlined_call_operand.vmem [shape: f32[1,128], index: 5, kind: input, shape index: {}]
  %s6 = inlined_call_operand.vmem [shape: f32[1,128], index: 6, kind: input, shape index: {}]
  %s7 = inlined_call_operand.vmem [shape: bf16[256,128], index: 7, kind: output, shape index: {}, may-alias: {0,7}]
  %s8 = sld [smem:[#allocation0]]
  $region38: #{bert_forward.6} parent=0
    _
  %s10 = ssub.s32 1, %s8
  %s11 = scalar_select 0, %s10, %s8
  // Predicated region
  $region2: #{bert_forward.6} parent=0 // pred_check
    _
  $region3: #{bert_forward.6} parent=0 // pred_check_branch
    %13 = sbr.rel (0) target = $region5
  $region4: #{bert_forward.6} parent=0 // pred_region
    _
  $region5: #{bert_forward.6} parent=0 // pred_fallthru
    _
  // Predicated region
  $region6: #{bert_forward.6} parent=0 // pred_check
    _
  $region7: #{bert_forward.6} parent=0 // pred_check_branch
    %15 = sbr.rel (0) target = $region9
  $region8: #{bert_forward.6} parent=0 // pred_region
    _
  $region9: #{bert_forward.6} parent=0 // pred_fallthru
    _
  // Predicated region
  $region10: #{bert_forward.6} parent=0 // pred_check
    _
  $region11: #{bert_forward.6} parent=0 // pred_check_branch
    %17 = sbr.rel (0) target = $region13
  $region12: #{bert_forward.6} parent=0 // pred_region
    _
  $region13: #{bert_forward.6} parent=0 // pred_fallthru
    _
  // Predicated region
  $region14: #{bert_forward.6} parent=0 // pred_check
    _
  $region15: #{bert_forward.6} parent=0 // pred_check_branch
    %19 = sbr.rel (0) target = $region17
  $region16: #{bert_forward.6} parent=0 // pred_region
    _
  $region17: #{bert_forward.6} parent=0 // pred_fallthru
    _
  // Predicated region
  $region18: #{bert_forward.6} parent=0 // pred_check
    _
  $region19: #{bert_forward.6} parent=0 // pred_check_branch
    %21 = sbr.rel (0) target = $region21
  $region20: #{bert_forward.6} parent=0 // pred_region
    _
  $region21: #{bert_forward.6} parent=0 // pred_fallthru
    _
  // Predicated region
  $region22: #{bert_forward.6} parent=0 // pred_check
    _
  $region23: #{bert_forward.6} parent=0 // pred_check_branch
    %23 = sbr.rel (0) target = $region25
  $region24: #{bert_forward.6} parent=0 // pred_region
    _
  $region25: #{bert_forward.6} parent=0 // pred_fallthru
    _
  // Predicated region
  $region26: #{bert_forward.6} parent=0 // pred_check
    _
  $region27: #{bert_forward.6} parent=0 // pred_check_branch
    %25 = sbr.rel (0) target = $region29
  $region28: #{bert_forward.6} parent=0 // pred_region
    _
  $region29: #{bert_forward.6} parent=0 // pred_fallthru
    _
  %v27 = vld [vmem:[%s0] sm:$0xf]
  %v28 = vld [vmem:[%s0 + $0x4] sm:$0xf]
  %v29 = vld [vmem:[%s0 + $0x8] sm:$0xf]
  %v30 = vld [vmem:[%s0 + $0xc] sm:$0xf]
  %v31 = vld [vmem:[%s0 + $0x10] sm:$0xf]
  %v32 = vld [vmem:[%s0 + $0x14] sm:$0xf]
  %v33 = vld [vmem:[%s0 + $0x18] sm:$0xf]
  %v34 = vld [vmem:[%s0 + $0x1c] sm:$0xf]
  %v35 = vld [vmem:[%s0 + $0x20] sm:$0xf]
  %v36 = vld [vmem:[%s0 + $0x24] sm:$0xf]
  %v37 = vld [vmem:[%s0 + $0x28] sm:$0xf]
  %v38 = vld [vmem:[%s0 + $0x2c] sm:$0xf]
  %v39 = vld [vmem:[%s0 + $0x30] sm:$0xf]
  %v40 = vld [vmem:[%s0 + $0x34] sm:$0xf]
  %v41 = vld [vmem:[%s0 + $0x38] sm:$0xf]
  %v42 = vld [vmem:[%s0 + $0x3c] sm:$0xf]
  %v43 = vld [vmem:[%s0 + $0x40] sm:$0xf]
  %v44 = vld [vmem:[%s0 + $0x44] sm:$0xf]
  %v45 = vld [vmem:[%s0 + $0x48] sm:$0xf]
  %v46 = vld [vmem:[%s0 + $0x4c] sm:$0xf]
  %v47 = vld [vmem:[%s0 + $0x50] sm:$0xf]
  %v48 = vld [vmem:[%s0 + $0x54] sm:$0xf]
  %v49 = vld [vmem:[%s0 + $0x58] sm:$0xf]
  %v50 = vld [vmem:[%s0 + $0x5c] sm:$0xf]
  %v51 = vld [vmem:[%s0 + $0x60] sm:$0xf]
  %v52 = vld [vmem:[%s0 + $0x64] sm:$0xf]
  %v53 = vld [vmem:[%s0 + $0x68] sm:$0xf]
  %v54 = vld [vmem:[%s0 + $0x6c] sm:$0xf]
  %v55 = vld [vmem:[%s0 + $0x70] sm:$0xf]
  %v56 = vld [vmem:[%s0 + $0x74] sm:$0xf]
  %v57 = vld [vmem:[%s0 + $0x78] sm:$0xf]
  %v58 = vld [vmem:[%s0 + $0x7c] sm:$0xf]
  %v59 = vunpack.c.l.bf16 %v27
  %v60 = vunpack.c.l.bf16 %v28
  %v61 = vunpack.c.l.bf16 %v29
  %v62 = vunpack.c.l.bf16 %v30
  %v63 = vunpack.c.l.bf16 %v31
  %v64 = vunpack.c.l.bf16 %v32
  %v65 = vunpack.c.l.bf16 %v33
  %v66 = vunpack.c.l.bf16 %v34
  %v67 = vunpack.c.l.bf16 %v35
  %v68 = vunpack.c.l.bf16 %v36
  %v69 = vunpack.c.l.bf16 %v37
  %v70 = vunpack.c.l.bf16 %v38
  %v71 = vunpack.c.l.bf16 %v39
  %v72 = vunpack.c.l.bf16 %v40
  %v73 = vunpack.c.l.bf16 %v41
  %v74 = vunpack.c.l.bf16 %v42
  %v75 = vunpack.c.l.bf16 %v43
  %v76 = vunpack.c.l.bf16 %v44
  %v77 = vunpack.c.l.bf16 %v45
  %v78 = vunpack.c.l.bf16 %v46
  %v79 = vunpack.c.l.bf16 %v47
  %v80 = vunpack.c.l.bf16 %v48
  %v81 = vunpack.c.l.bf16 %v49
  %v82 = vunpack.c.l.bf16 %v50
  %v83 = vunpack.c.l.bf16 %v51
  %v84 = vunpack.c.l.bf16 %v52
  %v85 = vunpack.c.l.bf16 %v53
  %v86 = vunpack.c.l.bf16 %v54
  %v87 = vunpack.c.l.bf16 %v55
  %v88 = vunpack.c.l.bf16 %v56
  %v89 = vunpack.c.l.bf16 %v57
  %v90 = vunpack.c.l.bf16 %v58
  %v91 = vld [vmem:[%s1] sm:$0xf]
  %v92 = vld [vmem:[%s1 + $0x4] sm:$0xf]
  %v93 = vld [vmem:[%s1 + $0x8] sm:$0xf]
  %v94 = vld [vmem:[%s1 + $0xc] sm:$0xf]
  %v95 = vld [vmem:[%s1 + $0x10] sm:$0xf]
  %v96 = vld [vmem:[%s1 + $0x14] sm:$0xf]
  %v97 = vld [vmem:[%s1 + $0x18] sm:$0xf]
  %v98 = vld [vmem:[%s1 + $0x1c] sm:$0xf]
  %v99 = vld [vmem:[%s1 + $0x20] sm:$0xf]
  %v100 = vld [vmem:[%s1 + $0x24] sm:$0xf]
  %v101 = vld [vmem:[%s1 + $0x28] sm:$0xf]
  %v102 = vld [vmem:[%s1 + $0x2c] sm:$0xf]
  %v103 = vld [vmem:[%s1 + $0x30] sm:$0xf]
  %v104 = vld [vmem:[%s1 + $0x34] sm:$0xf]
  %v105 = vld [vmem:[%s1 + $0x38] sm:$0xf]
  %v106 = vld [vmem:[%s1 + $0x3c] sm:$0xf]
  %v107 = vld [vmem:[%s2] sm:$0x1]
  %v109 = vlaneseq
  %v110 = vshrl.u32 %v109, 7
  %v111 = vsub.s32 0, %v110
  %v112 = vrot.slane %v107, %v111
  %v146 = vunpack.c.l.b16 %v27
  %v147 = vunpack.c.l.b16 %v28
  %v148 = vunpack.c.l.b16 %v29
  %v149 = vunpack.c.l.b16 %v30
  %v150 = vunpack.c.l.b16 %v31
  %v151 = vunpack.c.l.b16 %v32
  %v152 = vunpack.c.l.b16 %v33
  %v153 = vunpack.c.l.b16 %v34
  %v154 = vunpack.c.l.b16 %v35
  %v155 = vunpack.c.l.b16 %v36
  %v156 = vunpack.c.l.b16 %v37
  %v157 = vunpack.c.l.b16 %v38
  %v158 = vunpack.c.l.b16 %v39
  %v159 = vunpack.c.l.b16 %v40
  %v160 = vunpack.c.l.b16 %v41
  %v161 = vunpack.c.l.b16 %v42
  %v162 = vunpack.c.l.b16 %v43
  %v163 = vunpack.c.l.b16 %v44
  %v164 = vunpack.c.l.b16 %v45
  %v165 = vunpack.c.l.b16 %v46
  %v166 = vunpack.c.l.b16 %v47
  %v167 = vunpack.c.l.b16 %v48
  %v168 = vunpack.c.l.b16 %v49
  %v169 = vunpack.c.l.b16 %v50
  %v170 = vunpack.c.l.b16 %v51
  %v171 = vunpack.c.l.b16 %v52
  %v172 = vunpack.c.l.b16 %v53
  %v173 = vunpack.c.l.b16 %v54
  %v174 = vunpack.c.l.b16 %v55
  %v175 = vunpack.c.l.b16 %v56
  %v176 = vunpack.c.l.b16 %v57
  %v177 = vunpack.c.l.b16 %v58
  %v178 = vpack.c.b16 %v147, %v146
  %v179 = vpack.c.b16 %v149, %v148
  %v180 = vpack.c.b16 %v151, %v150
  %v181 = vpack.c.b16 %v153, %v152
  %v182 = vpack.c.b16 %v155, %v154
  %v183 = vpack.c.b16 %v157, %v156
  %v184 = vpack.c.b16 %v159, %v158
  %v185 = vpack.c.b16 %v161, %v160
  %v186 = vpack.c.b16 %v163, %v162
  %v187 = vpack.c.b16 %v165, %v164
  %v188 = vpack.c.b16 %v167, %v166
  %v189 = vpack.c.b16 %v169, %v168
  %v190 = vpack.c.b16 %v171, %v170
  %v191 = vpack.c.b16 %v173, %v172
  %v192 = vpack.c.b16 %v175, %v174
  %v193 = vpack.c.b16 %v177, %v176
  %v226 = vunpack.c.l.b16 %v91
  %v227 = vunpack.c.l.b16 %v92
  %v228 = vunpack.c.l.b16 %v93
  %v229 = vunpack.c.l.b16 %v94
  %v230 = vunpack.c.l.b16 %v95
  %v231 = vunpack.c.l.b16 %v96
  %v232 = vunpack.c.l.b16 %v97
  %v233 = vunpack.c.l.b16 %v98
  %v234 = vunpack.c.l.b16 %v99
  %v235 = vunpack.c.l.b16 %v100
  %v236 = vunpack.c.l.b16 %v101
  %v237 = vunpack.c.l.b16 %v102
  %v238 = vunpack.c.l.b16 %v103
  %v239 = vunpack.c.l.b16 %v104
  %v240 = vunpack.c.l.b16 %v105
  %v241 = vunpack.c.l.b16 %v106
  %v242 = vpack.c.b16 %v227, %v226
  %v243 = vpack.c.b16 %v229, %v228
  %v244 = vpack.c.b16 %v231, %v230
  %v245 = vpack.c.b16 %v233, %v232
  %v246 = vpack.c.b16 %v235, %v234
  %v247 = vpack.c.b16 %v237, %v236
  %v248 = vpack.c.b16 %v239, %v238
  %v249 = vpack.c.b16 %v241, %v240
  %258 = vmatprep.subr.bf16.mxu0 0
  %259 = vmatpush1.bf16.msra.mxu0 %v242
  %260 = vmatprep.subr.bf16.mxu0 0
  %261 = vmatpush1.bf16.msra.mxu0 %v243
  %262 = vmatprep.subr.bf16.mxu0 0
  %263 = vmatpush1.bf16.msra.mxu0 %v244
  %264 = vmatprep.subr.bf16.mxu0 0
  %265 = vmatpush1.bf16.msra.mxu0 %v245
  %266 = vmatprep.subr.bf16.mxu0 0
  %267 = vmatpush1.bf16.msra.mxu0 %v246
  %268 = vmatprep.subr.bf16.mxu0 0
  %269 = vmatpush1.bf16.msra.mxu0 %v247
  %270 = vmatprep.subr.bf16.mxu0 0
  %271 = vmatpush1.bf16.msra.mxu0 %v248
  %272 = vmatprep.subr.bf16.mxu0 0
  %273 = vmatpush1.bf16.msra.mxu0 %v249
  %274 = vmatprep.subr.bf16.mxu0 0
  %275 = vmatpush1.bf16.msra.mxu0 0
  %276 = vmatprep.subr.bf16.mxu0 0
  %277 = vmatpush1.bf16.msra.mxu0 0
  %278 = vmatprep.subr.bf16.mxu0 0
  %279 = vmatpush1.bf16.msra.mxu0 0
  %280 = vmatprep.subr.bf16.mxu0 0
  %281 = vmatpush1.bf16.msra.mxu0 0
  %282 = vmatprep.subr.bf16.mxu0 0
  %283 = vmatpush1.bf16.msra.mxu0 0
  %284 = vmatprep.subr.bf16.mxu0 0
  %285 = vmatpush1.bf16.msra.mxu0 0
  %286 = vmatprep.subr.bf16.mxu0 0
  %287 = vmatpush1.bf16.msra.mxu0 0
  %288 = vmatprep.subr.bf16.mxu0 0
  %289 = vmatpush1.bf16.msra.mxu0 0
  %290 = vmatprep.mubr.bf16.mxu0 0
  %291 = vmatmul.mubr.bf16.gmra.mrb[0].mxu0 %v178
  %v292 = vpop.f32.mrb[0].mxu0
  %v293 = vadd.f32 %v112, %v292
  %v294 = vpop.f32.mrb[0].mxu0
  %v295 = vpop.f32.mrb[0].mxu0
  %v296 = vadd.f32 %v112, %v295
  %v297 = vpop.f32.mrb[0].mxu0
  %298 = vmatprep.mubr.bf16.mxu0 0
  %299 = vmatmul.mubr.bf16.gmra.mrb[0].mxu0 %v179
  %v300 = vpop.f32.mrb[0].mxu0
  %v301 = vadd.f32 %v112, %v300
  %v302 = vpop.f32.mrb[0].mxu0
  %v303 = vpop.f32.mrb[0].mxu0
  %v304 = vadd.f32 %v112, %v303
  %v305 = vpop.f32.mrb[0].mxu0
  %306 = vmatprep.mubr.bf16.mxu0 0
  %307 = vmatmul.mubr.bf16.gmra.mrb[0].mxu0 %v180
  %v308 = vpop.f32.mrb[0].mxu0
  %v309 = vadd.f32 %v112, %v308
  %v310 = vpop.f32.mrb[0].mxu0
  %v311 = vpop.f32.mrb[0].mxu0
  %v312 = vadd.f32 %v112, %v311
  %v313 = vpop.f32.mrb[0].mxu0
  %314 = vmatprep.mubr.bf16.mxu0 0
  %315 = vmatmul.mubr.bf16.gmra.mrb[0].mxu0 %v181
  %v316 = vpop.f32.mrb[0].mxu0
  %v317 = vadd.f32 %v112, %v316
  %v318 = vpop.f32.mrb[0].mxu0
  %v319 = vpop.f32.mrb[0].mxu0
  %v320 = vadd.f32 %v112, %v319
  %v321 = vpop.f32.mrb[0].mxu0
  %322 = vmatprep.mubr.bf16.mxu0 0
  %323 = vmatmul.mubr.bf16.gmra.mrb[0].mxu0 %v182
  %v324 = vpop.f32.mrb[0].mxu0
  %v325 = vadd.f32 %v112, %v324
  %v326 = vpop.f32.mrb[0].mxu0
  %v327 = vpop.f32.mrb[0].mxu0
  %v328 = vadd.f32 %v112, %v327
  %v329 = vpop.f32.mrb[0].mxu0
  %330 = vmatprep.mubr.bf16.mxu0 0
  %331 = vmatmul.mubr.bf16.gmra.mrb[0].mxu0 %v183
  %v332 = vpop.f32.mrb[0].mxu0
  %v333 = vadd.f32 %v112, %v332
  %v334 = vpop.f32.mrb[0].mxu0
  %v335 = vpop.f32.mrb[0].mxu0
  %v336 = vadd.f32 %v112, %v335
  %v337 = vpop.f32.mrb[0].mxu0
  %338 = vmatprep.mubr.bf16.mxu0 0
  %339 = vmatmul.mubr.bf16.gmra.mrb[0].mxu0 %v184
  %v340 = vpop.f32.mrb[0].mxu0
  %v341 = vadd.f32 %v112, %v340
  %v342 = vpop.f32.mrb[0].mxu0
  %v343 = vpop.f32.mrb[0].mxu0
  %v344 = vadd.f32 %v112, %v343
  %v345 = vpop.f32.mrb[0].mxu0
  %346 = vmatprep.mubr.bf16.mxu0 0
  %347 = vmatmul.mubr.bf16.gmra.mrb[0].mxu0 %v185
  %v348 = vpop.f32.mrb[0].mxu0
  %v349 = vadd.f32 %v112, %v348
  %v350 = vpop.f32.mrb[0].mxu0
  %v351 = vpop.f32.mrb[0].mxu0
  %v352 = vadd.f32 %v112, %v351
  %v353 = vpop.f32.mrb[0].mxu0
  %354 = vmatprep.mubr.bf16.mxu0 0
  %355 = vmatmul.mubr.bf16.gmra.mrb[0].mxu0 %v186
  %v356 = vpop.f32.mrb[0].mxu0
  %v357 = vadd.f32 %v112, %v356
  %v358 = vpop.f32.mrb[0].mxu0
  %v359 = vpop.f32.mrb[0].mxu0
  %v360 = vadd.f32 %v112, %v359
  %v361 = vpop.f32.mrb[0].mxu0
  %362 = vmatprep.mubr.bf16.mxu0 0
  %363 = vmatmul.mubr.bf16.gmra.mrb[0].mxu0 %v187
  %v364 = vpop.f32.mrb[0].mxu0
  %v365 = vadd.f32 %v112, %v364
  %v366 = vpop.f32.mrb[0].mxu0
  %v367 = vpop.f32.mrb[0].mxu0
  %v368 = vadd.f32 %v112, %v367
  %v369 = vpop.f32.mrb[0].mxu0
  %370 = vmatprep.mubr.bf16.mxu0 0
  %371 = vmatmul.mubr.bf16.gmra.mrb[0].mxu0 %v188
  %v372 = vpop.f32.mrb[0].mxu0
  %v373 = vadd.f32 %v112, %v372
  %v374 = vpop.f32.mrb[0].mxu0
  %v375 = vpop.f32.mrb[0].mxu0
  %v376 = vadd.f32 %v112, %v375
  %v377 = vpop.f32.mrb[0].mxu0
  %378 = vmatprep.mubr.bf16.mxu0 0
  %379 = vmatmul.mubr.bf16.gmra.mrb[0].mxu0 %v189
  %v380 = vpop.f32.mrb[0].mxu0
  %v381 = vadd.f32 %v112, %v380
  %v382 = vpop.f32.mrb[0].mxu0
  %v383 = vpop.f32.mrb[0].mxu0
  %v384 = vadd.f32 %v112, %v383
  %v385 = vpop.f32.mrb[0].mxu0
  %386 = vmatprep.mubr.bf16.mxu0 0
  %387 = vmatmul.mubr.bf16.gmra.mrb[0].mxu0 %v190
  %v388 = vpop.f32.mrb[0].mxu0
  %v389 = vadd.f32 %v112, %v388
  %v390 = vpop.f32.mrb[0].mxu0
  %v391 = vpop.f32.mrb[0].mxu0
  %v392 = vadd.f32 %v112, %v391
  %v393 = vpop.f32.mrb[0].mxu0
  %394 = vmatprep.mubr.bf16.mxu0 0
  %395 = vmatmul.mubr.bf16.gmra.mrb[0].mxu0 %v191
  %v396 = vpop.f32.mrb[0].mxu0
  %v397 = vadd.f32 %v112, %v396
  %v398 = vpop.f32.mrb[0].mxu0
  %v399 = vpop.f32.mrb[0].mxu0
  %v400 = vadd.f32 %v112, %v399
  %v401 = vpop.f32.mrb[0].mxu0
  %402 = vmatprep.mubr.bf16.mxu0 0
  %403 = vmatmul.mubr.bf16.gmra.mrb[0].mxu0 %v192
  %v404 = vpop.f32.mrb[0].mxu0
  %v405 = vadd.f32 %v112, %v404
  %v406 = vpop.f32.mrb[0].mxu0
  %v407 = vpop.f32.mrb[0].mxu0
  %v408 = vadd.f32 %v112, %v407
  %v409 = vpop.f32.mrb[0].mxu0
  %410 = vmatprep.mubr.bf16.mxu0 0
  %411 = vmatmul.mubr.bf16.gmra.mrb[0].mxu0 %v193
  %v412 = vpop.f32.mrb[0].mxu0
  %v413 = vadd.f32 %v112, %v412
  %v414 = vpop.f32.mrb[0].mxu0
  %v415 = vpop.f32.mrb[0].mxu0
  %v416 = vadd.f32 %v112, %v415
  %v417 = vpop.f32.mrb[0].mxu0
  %418 = vdwg.mxu0
  %v419 = vmax.f32 %v293, 0.0
  %v420 = vmax.f32 %v296, 0.0
  %v421 = vmax.f32 %v301, 0.0
  %v422 = vmax.f32 %v304, 0.0
  %v423 = vmax.f32 %v309, 0.0
  %v424 = vmax.f32 %v312, 0.0
  %v425 = vmax.f32 %v317, 0.0
  %v426 = vmax.f32 %v320, 0.0
  %v427 = vmax.f32 %v325, 0.0
  %v428 = vmax.f32 %v328, 0.0
  %v429 = vmax.f32 %v333, 0.0
  %v430 = vmax.f32 %v336, 0.0
  %v431 = vmax.f32 %v341, 0.0
  %v432 = vmax.f32 %v344, 0.0
  %v433 = vmax.f32 %v349, 0.0
  %v434 = vmax.f32 %v352, 0.0
  %v435 = vmax.f32 %v357, 0.0
  %v436 = vmax.f32 %v360, 0.0
  %v437 = vmax.f32 %v365, 0.0
  %v438 = vmax.f32 %v368, 0.0
  %v439 = vmax.f32 %v373, 0.0
  %v440 = vmax.f32 %v376, 0.0
  %v441 = vmax.f32 %v381, 0.0
  %v442 = vmax.f32 %v384, 0.0
  %v443 = vmax.f32 %v389, 0.0
  %v444 = vmax.f32 %v392, 0.0
  %v445 = vmax.f32 %v397, 0.0
  %v446 = vmax.f32 %v400, 0.0
  %v447 = vmax.f32 %v405, 0.0
  %v448 = vmax.f32 %v408, 0.0
  %v449 = vmax.f32 %v413, 0.0
  %v450 = vmax.f32 %v416, 0.0
  %v451 = vpack.c.bf16 %v420, %v419
  %v452 = vpack.c.bf16 %v422, %v421
  %v453 = vpack.c.bf16 %v424, %v423
  %v454 = vpack.c.bf16 %v426, %v425
  %v455 = vpack.c.bf16 %v428, %v427
  %v456 = vpack.c.bf16 %v430, %v429
  %v457 = vpack.c.bf16 %v432, %v431
  %v458 = vpack.c.bf16 %v434, %v433
  %v459 = vpack.c.bf16 %v436, %v435
  %v460 = vpack.c.bf16 %v438, %v437
  %v461 = vpack.c.bf16 %v440, %v439
  %v462 = vpack.c.bf16 %v442, %v441
  %v463 = vpack.c.bf16 %v444, %v443
  %v464 = vpack.c.bf16 %v446, %v445
  %v465 = vpack.c.bf16 %v448, %v447
  %v466 = vpack.c.bf16 %v450, %v449
  %v467 = vld [vmem:[%s3] sm:$0xf]
  %v468 = vld [vmem:[%s3 + $0x4] sm:$0xf]
  %v469 = vld [vmem:[%s3 + $0x8] sm:$0xf]
  %v470 = vld [vmem:[%s3 + $0xc] sm:$0xf]
  %v471 = vld [vmem:[%s3 + $0x10] sm:$0xf]
  %v472 = vld [vmem:[%s3 + $0x14] sm:$0xf]
  %v473 = vld [vmem:[%s3 + $0x18] sm:$0xf]
  %v474 = vld [vmem:[%s3 + $0x1c] sm:$0xf]
  %v475 = vld [vmem:[%s3 + $0x20] sm:$0xf]
  %v476 = vld [vmem:[%s3 + $0x24] sm:$0xf]
  %v477 = vld [vmem:[%s3 + $0x28] sm:$0xf]
  %v478 = vld [vmem:[%s3 + $0x2c] sm:$0xf]
  %v479 = vld [vmem:[%s3 + $0x30] sm:$0xf]
  %v480 = vld [vmem:[%s3 + $0x34] sm:$0xf]
  %v481 = vld [vmem:[%s3 + $0x38] sm:$0xf]
  %v482 = vld [vmem:[%s3 + $0x3c] sm:$0xf]
  %v483 = vld [vmem:[%s4] sm:$0x1]
  %v485 = vlaneseq
  %v486 = vshrl.u32 %v485, 7
  %v487 = vsub.s32 0, %v486
  %v488 = vrot.slane %v483, %v487
  %v506 = vunpack.c.l.b16 %v467
  %v507 = vunpack.c.l.b16 %v468
  %v508 = vunpack.c.l.b16 %v469
  %v509 = vunpack.c.l.b16 %v470
  %v510 = vunpack.c.l.b16 %v471
  %v511 = vunpack.c.l.b16 %v472
  %v512 = vunpack.c.l.b16 %v473
  %v513 = vunpack.c.l.b16 %v474
  %v514 = vunpack.c.l.b16 %v475
  %v515 = vunpack.c.l.b16 %v476
  %v516 = vunpack.c.l.b16 %v477
  %v517 = vunpack.c.l.b16 %v478
  %v518 = vunpack.c.l.b16 %v479
  %v519 = vunpack.c.l.b16 %v480
  %v520 = vunpack.c.l.b16 %v481
  %v521 = vunpack.c.l.b16 %v482
  %v522 = vpack.c.b16 %v507, %v506
  %v523 = vpack.c.b16 %v509, %v508
  %v524 = vpack.c.b16 %v511, %v510
  %v525 = vpack.c.b16 %v513, %v512
  %v526 = vpack.c.b16 %v515, %v514
  %v527 = vpack.c.b16 %v517, %v516
  %v528 = vpack.c.b16 %v519, %v518
  %v529 = vpack.c.b16 %v521, %v520
  %538 = vmatprep.subr.bf16.mxu0 0
  %539 = vmatpush1.bf16.msra.mxu0 %v522
  %540 = vmatprep.subr.bf16.mxu0 0
  %541 = vmatpush1.bf16.msra.mxu0 %v523
  %542 = vmatprep.subr.bf16.mxu0 0
  %543 = vmatpush1.bf16.msra.mxu0 %v524
  %544 = vmatprep.subr.bf16.mxu0 0
  %545 = vmatpush1.bf16.msra.mxu0 %v525
  %546 = vmatprep.subr.bf16.mxu0 0
  %547 = vmatpush1.bf16.msra.mxu0 %v526
  %548 = vmatprep.subr.bf16.mxu0 0
  %549 = vmatpush1.bf16.msra.mxu0 %v527
  %550 = vmatprep.subr.bf16.mxu0 0
  %551 = vmatpush1.bf16.msra.mxu0 %v528
  %552 = vmatprep.subr.bf16.mxu0 0
  %553 = vmatpush1.bf16.msra.mxu0 %v529
  %554 = vmatprep.subr.bf16.mxu0 0
  %555 = vmatpush1.bf16.msra.mxu0 0
  %556 = vmatprep.subr.bf16.mxu0 0
  %557 = vmatpush1.bf16.msra.mxu0 0
  %558 = vmatprep.subr.bf16.mxu0 0
  %559 = vmatpush1.bf16.msra.mxu0 0
  %560 = vmatprep.subr.bf16.mxu0 0
  %561 = vmatpush1.bf16.msra.mxu0 0
  %562 = vmatprep.subr.bf16.mxu0 0
  %563 = vmatpush1.bf16.msra.mxu0 0
  %564 = vmatprep.subr.bf16.mxu0 0
  %565 = vmatpush1.bf16.msra.mxu0 0
  %566 = vmatprep.subr.bf16.mxu0 0
  %567 = vmatpush1.bf16.msra.mxu0 0
  %568 = vmatprep.subr.bf16.mxu0 0
  %569 = vmatpush1.bf16.msra.mxu0 0
  %570 = vmatprep.mubr.bf16.mxu0 0
  %571 = vmatmul.mubr.bf16.gmra.mrb[0].mxu0 %v451
  %v572 = vpop.f32.mrb[0].mxu0
  %v573 = vadd.f32 %v488, %v572
  %v574 = vpop.f32.mrb[0].mxu0
  %v575 = vpop.f32.mrb[0].mxu0
  %v576 = vadd.f32 %v488, %v575
  %v577 = vpop.f32.mrb[0].mxu0
  %578 = vmatprep.mubr.bf16.mxu0 0
  %579 = vmatmul.mubr.bf16.gmra.mrb[0].mxu0 %v452
  %v580 = vpop.f32.mrb[0].mxu0
  %v581 = vadd.f32 %v488, %v580
  %v582 = vpop.f32.mrb[0].mxu0
  %v583 = vpop.f32.mrb[0].mxu0
  %v584 = vadd.f32 %v488, %v583
  %v585 = vpop.f32.mrb[0].mxu0
  %586 = vmatprep.mubr.bf16.mxu0 0
  %587 = vmatmul.mubr.bf16.gmra.mrb[0].mxu0 %v453
  %v588 = vpop.f32.mrb[0].mxu0
  %v589 = vadd.f32 %v488, %v588
  %v590 = vpop.f32.mrb[0].mxu0
  %v591 = vpop.f32.mrb[0].mxu0
  %v592 = vadd.f32 %v488, %v591
  %v593 = vpop.f32.mrb[0].mxu0
  %594 = vmatprep.mubr.bf16.mxu0 0
  %595 = vmatmul.mubr.bf16.gmra.mrb[0].mxu0 %v454
  %v596 = vpop.f32.mrb[0].mxu0
  %v597 = vadd.f32 %v488, %v596
  %v598 = vpop.f32.mrb[0].mxu0
  %v599 = vpop.f32.mrb[0].mxu0
  %v600 = vadd.f32 %v488, %v599
  %v601 = vpop.f32.mrb[0].mxu0
  %602 = vmatprep.mubr.bf16.mxu0 0
  %603 = vmatmul.mubr.bf16.gmra.mrb[0].mxu0 %v455
  %v604 = vpop.f32.mrb[0].mxu0
  %v605 = vadd.f32 %v488, %v604
  %v606 = vpop.f32.mrb[0].mxu0
  %v607 = vpop.f32.mrb[0].mxu0
  %v608 = vadd.f32 %v488, %v607
  %v609 = vpop.f32.mrb[0].mxu0
  %610 = vmatprep.mubr.bf16.mxu0 0
  %611 = vmatmul.mubr.bf16.gmra.mrb[0].mxu0 %v456
  %v612 = vpop.f32.mrb[0].mxu0
  %v613 = vadd.f32 %v488, %v612
  %v614 = vpop.f32.mrb[0].mxu0
  %v615 = vpop.f32.mrb[0].mxu0
  %v616 = vadd.f32 %v488, %v615
  %v617 = vpop.f32.mrb[0].mxu0
  %618 = vmatprep.mubr.bf16.mxu0 0
  %619 = vmatmul.mubr.bf16.gmra.mrb[0].mxu0 %v457
  %v620 = vpop.f32.mrb[0].mxu0
  %v621 = vadd.f32 %v488, %v620
  %v622 = vpop.f32.mrb[0].mxu0
  %v623 = vpop.f32.mrb[0].mxu0
  %v624 = vadd.f32 %v488, %v623
  %v625 = vpop.f32.mrb[0].mxu0
  %626 = vmatprep.mubr.bf16.mxu0 0
  %627 = vmatmul.mubr.bf16.gmra.mrb[0].mxu0 %v458
  %v628 = vpop.f32.mrb[0].mxu0
  %v629 = vadd.f32 %v488, %v628
  %v630 = vpop.f32.mrb[0].mxu0
  %v631 = vpop.f32.mrb[0].mxu0
  %v632 = vadd.f32 %v488, %v631
  %v633 = vpop.f32.mrb[0].mxu0
  %634 = vmatprep.mubr.bf16.mxu0 0
  %635 = vmatmul.mubr.bf16.gmra.mrb[0].mxu0 %v459
  %v636 = vpop.f32.mrb[0].mxu0
  %v637 = vadd.f32 %v488, %v636
  %v638 = vpop.f32.mrb[0].mxu0
  %v639 = vpop.f32.mrb[0].mxu0
  %v640 = vadd.f32 %v488, %v639
  %v641 = vpop.f32.mrb[0].mxu0
  %642 = vmatprep.mubr.bf16.mxu0 0
  %643 = vmatmul.mubr.bf16.gmra.mrb[0].mxu0 %v460
  %v644 = vpop.f32.mrb[0].mxu0
  %v645 = vadd.f32 %v488, %v644
  %v646 = vpop.f32.mrb[0].mxu0
  %v647 = vpop.f32.mrb[0].mxu0
  %v648 = vadd.f32 %v488, %v647
  %v649 = vpop.f32.mrb[0].mxu0
  %650 = vmatprep.mubr.bf16.mxu0 0
  %651 = vmatmul.mubr.bf16.gmra.mrb[0].mxu0 %v461
  %v652 = vpop.f32.mrb[0].mxu0
  %v653 = vadd.f32 %v488, %v652
  %v654 = vpop.f32.mrb[0].mxu0
  %v655 = vpop.f32.mrb[0].mxu0
  %v656 = vadd.f32 %v488, %v655
  %v657 = vpop.f32.mrb[0].mxu0
  %658 = vmatprep.mubr.bf16.mxu0 0
  %659 = vmatmul.mubr.bf16.gmra.mrb[0].mxu0 %v462
  %v660 = vpop.f32.mrb[0].mxu0
  %v661 = vadd.f32 %v488, %v660
  %v662 = vpop.f32.mrb[0].mxu0
  %v663 = vpop.f32.mrb[0].mxu0
  %v664 = vadd.f32 %v488, %v663
  %v665 = vpop.f32.mrb[0].mxu0
  %666 = vmatprep.mubr.bf16.mxu0 0
  %667 = vmatmul.mubr.bf16.gmra.mrb[0].mxu0 %v463
  %v668 = vpop.f32.mrb[0].mxu0
  %v669 = vadd.f32 %v488, %v668
  %v670 = vpop.f32.mrb[0].mxu0
  %v671 = vpop.f32.mrb[0].mxu0
  %v672 = vadd.f32 %v488, %v671
  %v673 = vpop.f32.mrb[0].mxu0
  %674 = vmatprep.mubr.bf16.mxu0 0
  %675 = vmatmul.mubr.bf16.gmra.mrb[0].mxu0 %v464
  %v676 = vpop.f32.mrb[0].mxu0
  %v677 = vadd.f32 %v488, %v676
  %v678 = vpop.f32.mrb[0].mxu0
  %v679 = vpop.f32.mrb[0].mxu0
  %v680 = vadd.f32 %v488, %v679
  %v681 = vpop.f32.mrb[0].mxu0
  %682 = vmatprep.mubr.bf16.mxu0 0
  %683 = vmatmul.mubr.bf16.gmra.mrb[0].mxu0 %v465
  %v684 = vpop.f32.mrb[0].mxu0
  %v685 = vadd.f32 %v488, %v684
  %v686 = vpop.f32.mrb[0].mxu0
  %v687 = vpop.f32.mrb[0].mxu0
  %v688 = vadd.f32 %v488, %v687
  %v689 = vpop.f32.mrb[0].mxu0
  %690 = vmatprep.mubr.bf16.mxu0 0
  %691 = vmatmul.mubr.bf16.gmra.mrb[0].mxu0 %v466
  %v692 = vpop.f32.mrb[0].mxu0
  %v693 = vadd.f32 %v488, %v692
  %v694 = vpop.f32.mrb[0].mxu0
  %v695 = vpop.f32.mrb[0].mxu0
  %v696 = vadd.f32 %v488, %v695
  %v697 = vpop.f32.mrb[0].mxu0
  %698 = vdwg.mxu0
  %v699 = vadd.f32 %v59, %v573
  %v700 = vadd.f32 %v60, %v576
  %v701 = vadd.f32 %v61, %v581
  %v702 = vadd.f32 %v62, %v584
  %v703 = vadd.f32 %v63, %v589
  %v704 = vadd.f32 %v64, %v592
  %v705 = vadd.f32 %v65, %v597
  %v706 = vadd.f32 %v66, %v600
  %v707 = vadd.f32 %v67, %v605
  %v708 = vadd.f32 %v68, %v608
  %v709 = vadd.f32 %v69, %v613
  %v710 = vadd.f32 %v70, %v616
  %v711 = vadd.f32 %v71, %v621
  %v712 = vadd.f32 %v72, %v624
  %v713 = vadd.f32 %v73, %v629
  %v714 = vadd.f32 %v74, %v632
  %v715 = vadd.f32 %v75, %v637
  %v716 = vadd.f32 %v76, %v640
  %v717 = vadd.f32 %v77, %v645
  %v718 = vadd.f32 %v78, %v648
  %v719 = vadd.f32 %v79, %v653
  %v720 = vadd.f32 %v80, %v656
  %v721 = vadd.f32 %v81, %v661
  %v722 = vadd.f32 %v82, %v664
  %v723 = vadd.f32 %v83, %v669
  %v724 = vadd.f32 %v84, %v672
  %v725 = vadd.f32 %v85, %v677
  %v726 = vadd.f32 %v86, %v680
  %v727 = vadd.f32 %v87, %v685
  %v728 = vadd.f32 %v88, %v688
  %v729 = vadd.f32 %v89, %v693
  %v730 = vadd.f32 %v90, %v696
  %v731 = vld [vmem:[%s5] sm:$0x1]
  %v732 = vld [vmem:[%s6] sm:$0x1]
  %733 = vadd.xlane.f32.xlu0 %v699
  %v734 = vpop.xlane.xlu0 %733
  %735 = vadd.xlane.f32.xlu0 %v700
  %v736 = vpop.xlane.xlu0 %735
  %737 = vadd.xlane.f32.xlu0 %v701
  %v738 = vpop.xlane.xlu0 %737
  %739 = vadd.xlane.f32.xlu0 %v702
  %v740 = vpop.xlane.xlu0 %739
  %741 = vadd.xlane.f32.xlu0 %v703
  %v742 = vpop.xlane.xlu0 %741
  %743 = vadd.xlane.f32.xlu0 %v704
  %v744 = vpop.xlane.xlu0 %743
  %745 = vadd.xlane.f32.xlu0 %v705
  %v746 = vpop.xlane.xlu0 %745
  %747 = vadd.xlane.f32.xlu0 %v706
  %v748 = vpop.xlane.xlu0 %747
  %749 = vadd.xlane.f32.xlu0 %v707
  %v750 = vpop.xlane.xlu0 %749
  %751 = vadd.xlane.f32.xlu0 %v708
  %v752 = vpop.xlane.xlu0 %751
  %753 = vadd.xlane.f32.xlu0 %v709
  %v754 = vpop.xlane.xlu0 %753
  %755 = vadd.xlane.f32.xlu0 %v710
  %v756 = vpop.xlane.xlu0 %755
  %757 = vadd.xlane.f32.xlu0 %v711
  %v758 = vpop.xlane.xlu0 %757
  %759 = vadd.xlane.f32.xlu0 %v712
  %v760 = vpop.xlane.xlu0 %759
  %761 = vadd.xlane.f32.xlu0 %v713
  %v762 = vpop.xlane.xlu0 %761
  %763 = vadd.xlane.f32.xlu0 %v714
  %v764 = vpop.xlane.xlu0 %763
  %765 = vadd.xlane.f32.xlu0 %v715
  %v766 = vpop.xlane.xlu0 %765
  %767 = vadd.xlane.f32.xlu0 %v716
  %v768 = vpop.xlane.xlu0 %767
  %769 = vadd.xlane.f32.xlu0 %v717
  %v770 = vpop.xlane.xlu0 %769
  %771 = vadd.xlane.f32.xlu0 %v718
  %v772 = vpop.xlane.xlu0 %771
  %773 = vadd.xlane.f32.xlu0 %v719
  %v774 = vpop.xlane.xlu0 %773
  %775 = vadd.xlane.f32.xlu0 %v720
  %v776 = vpop.xlane.xlu0 %775
  %777 = vadd.xlane.f32.xlu0 %v721
  %v778 = vpop.xlane.xlu0 %777
  %779 = vadd.xlane.f32.xlu0 %v722
  %v780 = vpop.xlane.xlu0 %779
  %781 = vadd.xlane.f32.xlu0 %v723
  %v782 = vpop.xlane.xlu0 %781
  %783 = vadd.xlane.f32.xlu0 %v724
  %v784 = vpop.xlane.xlu0 %783
  %785 = vadd.xlane.f32.xlu0 %v725
  %v786 = vpop.xlane.xlu0 %785
  %787 = vadd.xlane.f32.xlu0 %v726
  %v788 = vpop.xlane.xlu0 %787
  %789 = vadd.xlane.f32.xlu0 %v727
  %v790 = vpop.xlane.xlu0 %789
  %791 = vadd.xlane.f32.xlu0 %v728
  %v792 = vpop.xlane.xlu0 %791
  %793 = vadd.xlane.f32.xlu0 %v729
  %v794 = vpop.xlane.xlu0 %793
  %795 = vadd.xlane.f32.xlu0 %v730
  %v796 = vpop.xlane.xlu0 %795
  %v797 = vrcp.pop 128.0
  %v798 = vmul.f32 %v734, %v797
  %v799 = vmul.f32 %v736, %v797
  %v800 = vmul.f32 %v738, %v797
  %v801 = vmul.f32 %v740, %v797
  %v802 = vmul.f32 %v742, %v797
  %v803 = vmul.f32 %v744, %v797
  %v804 = vmul.f32 %v746, %v797
  %v805 = vmul.f32 %v748, %v797
  %v806 = vmul.f32 %v750, %v797
  %v807 = vmul.f32 %v752, %v797
  %v808 = vmul.f32 %v754, %v797
  %v809 = vmul.f32 %v756, %v797
  %v810 = vmul.f32 %v758, %v797
  %v811 = vmul.f32 %v760, %v797
  %v812 = vmul.f32 %v762, %v797
  %v813 = vmul.f32 %v764, %v797
  %v814 = vmul.f32 %v766, %v797
  %v815 = vmul.f32 %v768, %v797
  %v816 = vmul.f32 %v770, %v797
  %v817 = vmul.f32 %v772, %v797
  %v818 = vmul.f32 %v774, %v797
  %v819 = vmul.f32 %v776, %v797
  %v820 = vmul.f32 %v778, %v797
  %v821 = vmul.f32 %v780, %v797
  %v822 = vmul.f32 %v782, %v797
  %v823 = vmul.f32 %v784, %v797
  %v824 = vmul.f32 %v786, %v797
  %v825 = vmul.f32 %v788, %v797
  %v826 = vmul.f32 %v790, %v797
  %v827 = vmul.f32 %v792, %v797
  %v828 = vmul.f32 %v794, %v797
  %v829 = vmul.f32 %v796, %v797
  %v830 = vsub.f32 %v699, %v798
  %v831 = vsub.f32 %v700, %v799
  %v832 = vsub.f32 %v701, %v800
  %v833 = vsub.f32 %v702, %v801
  %v834 = vsub.f32 %v703, %v802
  %v835 = vsub.f32 %v704, %v803
  %v836 = vsub.f32 %v705, %v804
  %v837 = vsub.f32 %v706, %v805
  %v838 = vsub.f32 %v707, %v806
  %v839 = vsub.f32 %v708, %v807
  %v840 = vsub.f32 %v709, %v808
  %v841 = vsub.f32 %v710, %v809
  %v842 = vsub.f32 %v711, %v810
  %v843 = vsub.f32 %v712, %v811
  %v844 = vsub.f32 %v713, %v812
  %v845 = vsub.f32 %v714, %v813
  %v846 = vsub.f32 %v715, %v814
  %v847 = vsub.f32 %v716, %v815
  %v848 = vsub.f32 %v717, %v816
  %v849 = vsub.f32 %v718, %v817
  %v850 = vsub.f32 %v719, %v818
  %v851 = vsub.f32 %v720, %v819
  %v852 = vsub.f32 %v721, %v820
  %v853 = vsub.f32 %v722, %v821
  %v854 = vsub.f32 %v723, %v822
  %v855 = vsub.f32 %v724, %v823
  %v856 = vsub.f32 %v725, %v824
  %v857 = vsub.f32 %v726, %v825
  %v858 = vsub.f32 %v727, %v826
  %v859 = vsub.f32 %v728, %v827
  %v860 = vsub.f32 %v729, %v828
  %v861 = vsub.f32 %v730, %v829
  %v862 = vmul.f32 %v830, %v830
  %v863 = vmul.f32 %v831, %v831
  %v864 = vmul.f32 %v832, %v832
  %v865 = vmul.f32 %v833, %v833
  %v866 = vmul.f32 %v834, %v834
  %v867 = vmul.f32 %v835, %v835
  %v868 = vmul.f32 %v836, %v836
  %v869 = vmul.f32 %v837, %v837
  %v870 = vmul.f32 %v838, %v838
  %v871 = vmul.f32 %v839, %v839
  %v872 = vmul.f32 %v840, %v840
  %v873 = vmul.f32 %v841, %v841
  %v874 = vmul.f32 %v842, %v842
  %v875 = vmul.f32 %v843, %v843
  %v876 = vmul.f32 %v844, %v844
  %v877 = vmul.f32 %v845, %v845
  %v878 = vmul.f32 %v846, %v846
  %v879 = vmul.f32 %v847, %v847
  %v880 = vmul.f32 %v848, %v848
  %v881 = vmul.f32 %v849, %v849
  %v882 = vmul.f32 %v850, %v850
  %v883 = vmul.f32 %v851, %v851
  %v884 = vmul.f32 %v852, %v852
  %v885 = vmul.f32 %v853, %v853
  %v886 = vmul.f32 %v854, %v854
  %v887 = vmul.f32 %v855, %v855
  %v888 = vmul.f32 %v856, %v856
  %v889 = vmul.f32 %v857, %v857
  %v890 = vmul.f32 %v858, %v858
  %v891 = vmul.f32 %v859, %v859
  %v892 = vmul.f32 %v860, %v860
  %v893 = vmul.f32 %v861, %v861
  %894 = vadd.xlane.f32.xlu0 %v862
  %v895 = vpop.xlane.xlu0 %894
  %896 = vadd.xlane.f32.xlu0 %v863
  %v897 = vpop.xlane.xlu0 %896
  %898 = vadd.xlane.f32.xlu0 %v864
  %v899 = vpop.xlane.xlu0 %898
  %900 = vadd.xlane.f32.xlu0 %v865
  %v901 = vpop.xlane.xlu0 %900
  %902 = vadd.xlane.f32.xlu0 %v866
  %v903 = vpop.xlane.xlu0 %902
  %904 = vadd.xlane.f32.xlu0 %v867
  %v905 = vpop.xlane.xlu0 %904
  %906 = vadd.xlane.f32.xlu0 %v868
  %v907 = vpop.xlane.xlu0 %906
  %908 = vadd.xlane.f32.xlu0 %v869
  %v909 = vpop.xlane.xlu0 %908
  %910 = vadd.xlane.f32.xlu0 %v870
  %v911 = vpop.xlane.xlu0 %910
  %912 = vadd.xlane.f32.xlu0 %v871
  %v913 = vpop.xlane.xlu0 %912
  %914 = vadd.xlane.f32.xlu0 %v872
  %v915 = vpop.xlane.xlu0 %914
  %916 = vadd.xlane.f32.xlu0 %v873
  %v917 = vpop.xlane.xlu0 %916
  %918 = vadd.xlane.f32.xlu0 %v874
  %v919 = vpop.xlane.xlu0 %918
  %920 = vadd.xlane.f32.xlu0 %v875
  %v921 = vpop.xlane.xlu0 %920
  %922 = vadd.xlane.f32.xlu0 %v876
  %v923 = vpop.xlane.xlu0 %922
  %924 = vadd.xlane.f32.xlu0 %v877
  %v925 = vpop.xlane.xlu0 %924
  %926 = vadd.xlane.f32.xlu0 %v878
  %v927 = vpop.xlane.xlu0 %926
  %928 = vadd.xlane.f32.xlu0 %v879
  %v929 = vpop.xlane.xlu0 %928
  %930 = vadd.xlane.f32.xlu0 %v880
  %v931 = vpop.xlane.xlu0 %930
  %932 = vadd.xlane.f32.xlu0 %v881
  %v933 = vpop.xlane.xlu0 %932
  %934 = vadd.xlane.f32.xlu0 %v882
  %v935 = vpop.xlane.xlu0 %934
  %936 = vadd.xlane.f32.xlu0 %v883
  %v937 = vpop.xlane.xlu0 %936
  %938 = vadd.xlane.f32.xlu0 %v884
  %v939 = vpop.xlane.xlu0 %938
  %940 = vadd.xlane.f32.xlu0 %v885
  %v941 = vpop.xlane.xlu0 %940
  %942 = vadd.xlane.f32.xlu0 %v886
  %v943 = vpop.xlane.xlu0 %942
  %944 = vadd.xlane.f32.xlu0 %v887
  %v945 = vpop.xlane.xlu0 %944
  %946 = vadd.xlane.f32.xlu0 %v888
  %v947 = vpop.xlane.xlu0 %946
  %948 = vadd.xlane.f32.xlu0 %v889
  %v949 = vpop.xlane.xlu0 %948
  %950 = vadd.xlane.f32.xlu0 %v890
  %v951 = vpop.xlane.xlu0 %950
  %952 = vadd.xlane.f32.xlu0 %v891
  %v953 = vpop.xlane.xlu0 %952
  %954 = vadd.xlane.f32.xlu0 %v892
  %v955 = vpop.xlane.xlu0 %954
  %956 = vadd.xlane.f32.xlu0 %v893
  %v957 = vpop.xlane.xlu0 %956
  %v958 = vmul.f32 %v895, %v797
  %v959 = vmul.f32 %v897, %v797
  %v960 = vmul.f32 %v899, %v797
  %v961 = vmul.f32 %v901, %v797
  %v962 = vmul.f32 %v903, %v797
  %v963 = vmul.f32 %v905, %v797
  %v964 = vmul.f32 %v907, %v797
  %v965 = vmul.f32 %v909, %v797
  %v966 = vmul.f32 %v911, %v797
  %v967 = vmul.f32 %v913, %v797
  %v968 = vmul.f32 %v915, %v797
  %v969 = vmul.f32 %v917, %v797
  %v970 = vmul.f32 %v919, %v797
  %v971 = vmul.f32 %v921, %v797
  %v972 = vmul.f32 %v923, %v797
  %v973 = vmul.f32 %v925, %v797
  %v974 = vmul.f32 %v927, %v797
  %v975 = vmul.f32 %v929, %v797
  %v976 = vmul.f32 %v931, %v797
  %v977 = vmul.f32 %v933, %v797
  %v978 = vmul.f32 %v935, %v797
  %v979 = vmul.f32 %v937, %v797
  %v980 = vmul.f32 %v939, %v797
  %v981 = vmul.f32 %v941, %v797
  %v982 = vmul.f32 %v943, %v797
  %v983 = vmul.f32 %v945, %v797
  %v984 = vmul.f32 %v947, %v797
  %v985 = vmul.f32 %v949, %v797
  %v986 = vmul.f32 %v951, %v797
  %v987 = vmul.f32 %v953, %v797
  %v988 = vmul.f32 %v955, %v797
  %v989 = vmul.f32 %v957, %v797
  %v990 = vadd.f32 %v958, 1e-05
  %v991 = vadd.f32 %v959, 1e-05
  %v992 = vadd.f32 %v960, 1e-05
  %v993 = vadd.f32 %v961, 1e-05
  %v994 = vadd.f32 %v962, 1e-05
  %v995 = vadd.f32 %v963, 1e-05
  %v996 = vadd.f32 %v964, 1e-05
  %v997 = vadd.f32 %v965, 1e-05
  %v998 = vadd.f32 %v966, 1e-05
  %v999 = vadd.f32 %v967, 1e-05
  %v1000 = vadd.f32 %v968, 1e-05
  %v1001 = vadd.f32 %v969, 1e-05
  %v1002 = vadd.f32 %v970, 1e-05
  %v1003 = vadd.f32 %v971, 1e-05
  %v1004 = vadd.f32 %v972, 1e-05
  %v1005 = vadd.f32 %v973, 1e-05
  %v1006 = vadd.f32 %v974, 1e-05
  %v1007 = vadd.f32 %v975, 1e-05
  %v1008 = vadd.f32 %v976, 1e-05
  %v1009 = vadd.f32 %v977, 1e-05
  %v1010 = vadd.f32 %v978, 1e-05
  %v1011 = vadd.f32 %v979, 1e-05
  %v1012 = vadd.f32 %v980, 1e-05
  %v1013 = vadd.f32 %v981, 1e-05
  %v1014 = vadd.f32 %v982, 1e-05
  %v1015 = vadd.f32 %v983, 1e-05
  %v1016 = vadd.f32 %v984, 1e-05
  %v1017 = vadd.f32 %v985, 1e-05
  %v1018 = vadd.f32 %v986, 1e-05
  %v1019 = vadd.f32 %v987, 1e-05
  %v1020 = vadd.f32 %v988, 1e-05
  %v1021 = vadd.f32 %v989, 1e-05
  %v1022 = vrsqrt.pop %v990
  %v1023 = vrsqrt.pop %v991
  %v1024 = vrsqrt.pop %v992
  %v1025 = vrsqrt.pop %v993
  %v1026 = vrsqrt.pop %v994
  %v1027 = vrsqrt.pop %v995
  %v1028 = vrsqrt.pop %v996
  %v1029 = vrsqrt.pop %v997
  %v1030 = vrsqrt.pop %v998
  %v1031 = vrsqrt.pop %v999
  %v1032 = vrsqrt.pop %v1000
  %v1033 = vrsqrt.pop %v1001
  %v1034 = vrsqrt.pop %v1002
  %v1035 = vrsqrt.pop %v1003
  %v1036 = vrsqrt.pop %v1004
  %v1037 = vrsqrt.pop %v1005
  %v1038 = vrsqrt.pop %v1006
  %v1039 = vrsqrt.pop %v1007
  %v1040 = vrsqrt.pop %v1008
  %v1041 = vrsqrt.pop %v1009
  %v1042 = vrsqrt.pop %v1010
  %v1043 = vrsqrt.pop %v1011
  %v1044 = vrsqrt.pop %v1012
  %v1045 = vrsqrt.pop %v1013
  %v1046 = vrsqrt.pop %v1014
  %v1047 = vrsqrt.pop %v1015
  %v1048 = vrsqrt.pop %v1016
  %v1049 = vrsqrt.pop %v1017
  %v1050 = vrsqrt.pop %v1018
  %v1051 = vrsqrt.pop %v1019
  %v1052 = vrsqrt.pop %v1020
  %v1053 = vrsqrt.pop %v1021
  %v1054 = vmul.f32 %v830, %v1022
  %v1055 = vmul.f32 %v831, %v1023
  %v1056 = vmul.f32 %v832, %v1024
  %v1057 = vmul.f32 %v833, %v1025
  %v1058 = vmul.f32 %v834, %v1026
  %v1059 = vmul.f32 %v835, %v1027
  %v1060 = vmul.f32 %v836, %v1028
  %v1061 = vmul.f32 %v837, %v1029
  %v1062 = vmul.f32 %v838, %v1030
  %v1063 = vmul.f32 %v839, %v1031
  %v1064 = vmul.f32 %v840, %v1032
  %v1065 = vmul.f32 %v841, %v1033
  %v1066 = vmul.f32 %v842, %v1034
  %v1067 = vmul.f32 %v843, %v1035
  %v1068 = vmul.f32 %v844, %v1036
  %v1069 = vmul.f32 %v845, %v1037
  %v1070 = vmul.f32 %v846, %v1038
  %v1071 = vmul.f32 %v847, %v1039
  %v1072 = vmul.f32 %v848, %v1040
  %v1073 = vmul.f32 %v849, %v1041
  %v1074 = vmul.f32 %v850, %v1042
  %v1075 = vmul.f32 %v851, %v1043
  %v1076 = vmul.f32 %v852, %v1044
  %v1077 = vmul.f32 %v853, %v1045
  %v1078 = vmul.f32 %v854, %v1046
  %v1079 = vmul.f32 %v855, %v1047
  %v1080 = vmul.f32 %v856, %v1048
  %v1081 = vmul.f32 %v857, %v1049
  %v1082 = vmul.f32 %v858, %v1050
  %v1083 = vmul.f32 %v859, %v1051
  %v1084 = vmul.f32 %v860, %v1052
  %v1085 = vmul.f32 %v861, %v1053
  %v1087 = vlaneseq
  %v1088 = vshrl.u32 %v1087, 7
  %v1089 = vsub.s32 0, %v1088
  %v1090 = vrot.slane %v731, %v1089
  %v1092 = vmul.f32 %v1054, %v1090
  %v1093 = vmul.f32 %v1055, %v1090
  %v1094 = vmul.f32 %v1056, %v1090
  %v1095 = vmul.f32 %v1057, %v1090
  %v1096 = vmul.f32 %v1058, %v1090
  %v1097 = vmul.f32 %v1059, %v1090
  %v1098 = vmul.f32 %v1060, %v1090
  %v1099 = vmul.f32 %v1061, %v1090
  %v1100 = vmul.f32 %v1062, %v1090
  %v1101 = vmul.f32 %v1063, %v1090
  %v1102 = vmul.f32 %v1064, %v1090
  %v1103 = vmul.f32 %v1065, %v1090
  %v1104 = vmul.f32 %v1066, %v1090
  %v1105 = vmul.f32 %v1067, %v1090
  %v1106 = vmul.f32 %v1068, %v1090
  %v1107 = vmul.f32 %v1069, %v1090
  %v1108 = vmul.f32 %v1070, %v1090
  %v1109 = vmul.f32 %v1071, %v1090
  %v1110 = vmul.f32 %v1072, %v1090
  %v1111 = vmul.f32 %v1073, %v1090
  %v1112 = vmul.f32 %v1074, %v1090
  %v1113 = vmul.f32 %v1075, %v1090
  %v1114 = vmul.f32 %v1076, %v1090
  %v1115 = vmul.f32 %v1077, %v1090
  %v1116 = vmul.f32 %v1078, %v1090
  %v1117 = vmul.f32 %v1079, %v1090
  %v1118 = vmul.f32 %v1080, %v1090
  %v1119 = vmul.f32 %v1081, %v1090
  %v1120 = vmul.f32 %v1082, %v1090
  %v1121 = vmul.f32 %v1083, %v1090
  %v1122 = vmul.f32 %v1084, %v1090
  %v1123 = vmul.f32 %v1085, %v1090
  %v1125 = vlaneseq
  %v1126 = vshrl.u32 %v1125, 7
  %v1127 = vsub.s32 0, %v1126
  %v1128 = vrot.slane %v732, %v1127
  %v1130 = vadd.f32 %v1092, %v1128
  %v1131 = vadd.f32 %v1093, %v1128
  %v1132 = vadd.f32 %v1094, %v1128
  %v1133 = vadd.f32 %v1095, %v1128
  %v1134 = vadd.f32 %v1096, %v1128
  %v1135 = vadd.f32 %v1097, %v1128
  %v1136 = vadd.f32 %v1098, %v1128
  %v1137 = vadd.f32 %v1099, %v1128
  %v1138 = vadd.f32 %v1100, %v1128
  %v1139 = vadd.f32 %v1101, %v1128
  %v1140 = vadd.f32 %v1102, %v1128
  %v1141 = vadd.f32 %v1103, %v1128
  %v1142 = vadd.f32 %v1104, %v1128
  %v1143 = vadd.f32 %v1105, %v1128
  %v1144 = vadd.f32 %v1106, %v1128
  %v1145 = vadd.f32 %v1107, %v1128
  %v1146 = vadd.f32 %v1108, %v1128
  %v1147 = vadd.f32 %v1109, %v1128
  %v1148 = vadd.f32 %v1110, %v1128
  %v1149 = vadd.f32 %v1111, %v1128
  %v1150 = vadd.f32 %v1112, %v1128
  %v1151 = vadd.f32 %v1113, %v1128
  %v1152 = vadd.f32 %v1114, %v1128
  %v1153 = vadd.f32 %v1115, %v1128
  %v1154 = vadd.f32 %v1116, %v1128
  %v1155 = vadd.f32 %v1117, %v1128
  %v1156 = vadd.f32 %v1118, %v1128
  %v1157 = vadd.f32 %v1119, %v1128
  %v1158 = vadd.f32 %v1120, %v1128
  %v1159 = vadd.f32 %v1121, %v1128
  %v1160 = vadd.f32 %v1122, %v1128
  %v1161 = vadd.f32 %v1123, %v1128
  %v1162 = vpack.c.bf16 %v1131, %v1130
  %v1163 = vpack.c.bf16 %v1133, %v1132
  %v1164 = vpack.c.bf16 %v1135, %v1134
  %v1165 = vpack.c.bf16 %v1137, %v1136
  %v1166 = vpack.c.bf16 %v1139, %v1138
  %v1167 = vpack.c.bf16 %v1141, %v1140
  %v1168 = vpack.c.bf16 %v1143, %v1142
  %v1169 = vpack.c.bf16 %v1145, %v1144
  %v1170 = vpack.c.bf16 %v1147, %v1146
  %v1171 = vpack.c.bf16 %v1149, %v1148
  %v1172 = vpack.c.bf16 %v1151, %v1150
  %v1173 = vpack.c.bf16 %v1153, %v1152
  %v1174 = vpack.c.bf16 %v1155, %v1154
  %v1175 = vpack.c.bf16 %v1157, %v1156
  %v1176 = vpack.c.bf16 %v1159, %v1158
  %v1177 = vpack.c.bf16 %v1161, %v1160
  %v1194 = vunpack.c.l.b16 %v1162
  %v1195 = vunpack.c.h.b16 %v1162
  %v1196 = vunpack.c.l.b16 %v1163
  %v1197 = vunpack.c.h.b16 %v1163
  %v1198 = vunpack.c.l.b16 %v1164
  %v1199 = vunpack.c.h.b16 %v1164
  %v1200 = vunpack.c.l.b16 %v1165
  %v1201 = vunpack.c.h.b16 %v1165
  %v1202 = vunpack.c.l.b16 %v1166
  %v1203 = vunpack.c.h.b16 %v1166
  %v1204 = vunpack.c.l.b16 %v1167
  %v1205 = vunpack.c.h.b16 %v1167
  %v1206 = vunpack.c.l.b16 %v1168
  %v1207 = vunpack.c.h.b16 %v1168
  %v1208 = vunpack.c.l.b16 %v1169
  %v1209 = vunpack.c.h.b16 %v1169
  %v1210 = vunpack.c.l.b16 %v1170
  %v1211 = vunpack.c.h.b16 %v1170
  %v1212 = vunpack.c.l.b16 %v1171
  %v1213 = vunpack.c.h.b16 %v1171
  %v1214 = vunpack.c.l.b16 %v1172
  %v1215 = vunpack.c.h.b16 %v1172
  %v1216 = vunpack.c.l.b16 %v1173
  %v1217 = vunpack.c.h.b16 %v1173
  %v1218 = vunpack.c.l.b16 %v1174
  %v1219 = vunpack.c.h.b16 %v1174
  %v1220 = vunpack.c.l.b16 %v1175
  %v1221 = vunpack.c.h.b16 %v1175
  %v1222 = vunpack.c.l.b16 %v1176
  %v1223 = vunpack.c.h.b16 %v1176
  %v1224 = vunpack.c.l.b16 %v1177
  %v1225 = vunpack.c.h.b16 %v1177
  %v1226 = vpack.c.b16 %v1194, %v1194
  %v1227 = vpack.c.b16 %v1195, %v1195
  %v1228 = vpack.c.b16 %v1196, %v1196
  %v1229 = vpack.c.b16 %v1197, %v1197
  %v1230 = vpack.c.b16 %v1198, %v1198
  %v1231 = vpack.c.b16 %v1199, %v1199
  %v1232 = vpack.c.b16 %v1200, %v1200
  %v1233 = vpack.c.b16 %v1201, %v1201
  %v1234 = vpack.c.b16 %v1202, %v1202
  %v1235 = vpack.c.b16 %v1203, %v1203
  %v1236 = vpack.c.b16 %v1204, %v1204
  %v1237 = vpack.c.b16 %v1205, %v1205
  %v1238 = vpack.c.b16 %v1206, %v1206
  %v1239 = vpack.c.b16 %v1207, %v1207
  %v1240 = vpack.c.b16 %v1208, %v1208
  %v1241 = vpack.c.b16 %v1209, %v1209
  %v1242 = vpack.c.b16 %v1210, %v1210
  %v1243 = vpack.c.b16 %v1211, %v1211
  %v1244 = vpack.c.b16 %v1212, %v1212
  %v1245 = vpack.c.b16 %v1213, %v1213
  %v1246 = vpack.c.b16 %v1214, %v1214
  %v1247 = vpack.c.b16 %v1215, %v1215
  %v1248 = vpack.c.b16 %v1216, %v1216
  %v1249 = vpack.c.b16 %v1217, %v1217
  %v1250 = vpack.c.b16 %v1218, %v1218
  %v1251 = vpack.c.b16 %v1219, %v1219
  %v1252 = vpack.c.b16 %v1220, %v1220
  %v1253 = vpack.c.b16 %v1221, %v1221
  %v1254 = vpack.c.b16 %v1222, %v1222
  %v1255 = vpack.c.b16 %v1223, %v1223
  %v1256 = vpack.c.b16 %v1224, %v1224
  %v1257 = vpack.c.b16 %v1225, %v1225
  %1290 = vst [vmem:[%s7] sm:$0xf] %v1226
  %1291 = vst [vmem:[%s7 + $0x4] sm:$0xf] %v1227
  %1292 = vst [vmem:[%s7 + $0x8] sm:$0xf] %v1228
  %1293 = vst [vmem:[%s7 + $0xc] sm:$0xf] %v1229
  %1294 = vst [vmem:[%s7 + $0x10] sm:$0xf] %v1230
  %1295 = vst [vmem:[%s7 + $0x14] sm:$0xf] %v1231
  %1296 = vst [vmem:[%s7 + $0x18] sm:$0xf] %v1232
  %1297 = vst [vmem:[%s7 + $0x1c] sm:$0xf] %v1233
  %1298 = vst [vmem:[%s7 + $0x20] sm:$0xf] %v1234
  %1299 = vst [vmem:[%s7 + $0x24] sm:$0xf] %v1235
  %1300 = vst [vmem:[%s7 + $0x28] sm:$0xf] %v1236
  %1301 = vst [vmem:[%s7 + $0x2c] sm:$0xf] %v1237
  %1302 = vst [vmem:[%s7 + $0x30] sm:$0xf] %v1238
  %1303 = vst [vmem:[%s7 + $0x34] sm:$0xf] %v1239
  %1304 = vst [vmem:[%s7 + $0x38] sm:$0xf] %v1240
  %1305 = vst [vmem:[%s7 + $0x3c] sm:$0xf] %v1241
  %1306 = vst [vmem:[%s7 + $0x40] sm:$0xf] %v1242
  %1307 = vst [vmem:[%s7 + $0x44] sm:$0xf] %v1243
  %1308 = vst [vmem:[%s7 + $0x48] sm:$0xf] %v1244
  %1309 = vst [vmem:[%s7 + $0x4c] sm:$0xf] %v1245
  %1310 = vst [vmem:[%s7 + $0x50] sm:$0xf] %v1246
  %1311 = vst [vmem:[%s7 + $0x54] sm:$0xf] %v1247
  %1312 = vst [vmem:[%s7 + $0x58] sm:$0xf] %v1248
  %1313 = vst [vmem:[%s7 + $0x5c] sm:$0xf] %v1249
  %1314 = vst [vmem:[%s7 + $0x60] sm:$0xf] %v1250
  %1315 = vst [vmem:[%s7 + $0x64] sm:$0xf] %v1251
  %1316 = vst [vmem:[%s7 + $0x68] sm:$0xf] %v1252
  %1317 = vst [vmem:[%s7 + $0x6c] sm:$0xf] %v1253
  %1318 = vst [vmem:[%s7 + $0x70] sm:$0xf] %v1254
  %1319 = vst [vmem:[%s7 + $0x74] sm:$0xf] %v1255
  %1320 = vst [vmem:[%s7 + $0x78] sm:$0xf] %v1256
  %1321 = vst [vmem:[%s7 + $0x7c] sm:$0xf] %v1257
  // Predicated region
  $region30: #{bert_forward.6} parent=0 // pred_check
    _
  $region31: #{bert_forward.6} parent=0 // pred_check_branch
    %1323 = sbr.rel (0) target = $region33
  $region32: #{bert_forward.6} parent=0 // pred_region
    _
  $region33: #{bert_forward.6} parent=0 // pred_fallthru
    _
  // Predicated region
  $region34: #{bert_forward.6} parent=0 // pred_check
    _
  $region35: #{bert_forward.6} parent=0 // pred_check_branch
    %1325 = sbr.rel (0) target = $region37
  $region36: #{bert_forward.6} parent=0 // pred_region
    _
  $region37: #{bert_forward.6} parent=0 // pred_fallthru
    _

// kernel: bert_forward.5
$region0: #{bert_forward.5}
  #allocation0 [shape = 'u32[]', space=smem, size = 0x4, offset = 0x4, fixed_abs, tag = 'smem constant byte address 0x4 - core index']
  #allocation1 [shape = 'u32[144,128]{1,0:T(1,128)}', space=vmem, size = 0x12000, scoped, tag = 'internal scratch']
  #allocation2 [shape = 'f32[128,128]{1,0:T(8,128)}', space=vmem, size = 0x10000, scoped, tag = 'scratch operand']
  %s0 = inlined_call_operand.vmem [shape: bf16[256,128], index: 0, kind: input, shape index: {}, may-alias: {0,7}]
  %s1 = inlined_call_operand.vmem [shape: bf16[128,384], index: 1, kind: input, shape index: {}]
  %s2 = inlined_call_operand.vmem [shape: f32[1,384], index: 2, kind: input, shape index: {}]
  %s3 = inlined_call_operand.vmem [shape: bf16[128,128], index: 3, kind: input, shape index: {}]
  %s4 = inlined_call_operand.vmem [shape: f32[1,128], index: 4, kind: input, shape index: {}]
  %s5 = inlined_call_operand.vmem [shape: f32[1,128], index: 5, kind: input, shape index: {}]
  %s6 = inlined_call_operand.vmem [shape: f32[1,128], index: 6, kind: input, shape index: {}]
  %s7 = inlined_call_operand.vmem [shape: bf16[256,128], index: 7, kind: output, shape index: {}, may-alias: {0,7}]
  %s8 = sld [smem:[#allocation0]]
  $region61: #{bert_forward.5} parent=0
    _
  %s10 = ssub.s32 1, %s8
  %s11 = scalar_select 0, %s10, %s8
  loop: start=0, step=1, limit=4
  $region2: #{bert_forward.5} parent=0 // loop_pre_header
    _
  $region3: #{bert_forward.5} parent=0 // loop_header
    %s13 = sphi 0, %s17
    %p14 = scmp.ge.s32.totalorder %s13, 4
    %s23 = sphi 0, %s25
    %s26 = sphi 0, %s23
    %s27 = sphi 0, %s26
    %s43 = sphi 0, %s27
    %s47 = sphi 0, %s47
    %s49 = sphi 0, %s47
    %s50 = sphi 0, %s49
    %s64 = sphi 0, %s50
    %s68 = sphi 0, %s68
    %s70 = sphi 0, %s68
    %s71 = sphi 0, %s70
    %s85 = sphi 0, %s71
    %s89 = sphi 0, %s89
    %s91 = sphi 0, %s89
    %s92 = sphi 0, %s91
    %s106 = sphi 0, %s92
    %s110 = sphi 0, %s110
    %s112 = sphi 0, %s110
    %s113 = sphi 0, %s112
    %s127 = sphi 0, %s113
    %s131 = sphi 0, %s131
    %s133 = sphi 0, %s131
    %s134 = sphi 0, %s133
    %s148 = sphi 0, %s134
    %s152 = sphi 0, %s152
    %s154 = sphi 0, %s152
    %s155 = sphi 0, %s154
    %s169 = sphi 0, %s155
    %s175 = sphi 0, %s177
    %s178 = sphi 0, %s175
    %s179 = sphi 0, %s178
    %s195 = sphi 0, %s179
  $region4: #{bert_forward.5} parent=0 // loop_header_branch
    %16 = sbr.rel (%p14) target = $region8
  $region5: #{bert_forward.5} parent=0 // loop_body
    %s18 = ssub.s32 %s13, 1
    %s19 = ssub.s32 %s13, 2
    %s20 = sadd.s32 %s13, 1
    %s21 = ssub.s32 %s13, %s20
    %p22 = scmp.eq.s32.totalorder %s21, 0
    %s24 = sadd.s32 %s23, 1
    %s25 = scalar_select %p22, %s23, %s24
    %p28 = pneg %p22
    %p29 = scmp.eq.s32.totalorder %s13, 1
    %p30 = por %p28, %p29
    %p31 = scmp.ne.s32.totalorder %s23, %s26
    %p32 = scmp.eq.s32.totalorder %s13, 0
    %p33 = por %p31, %p32
    %p34 = scmp.ne.s32.totalorder %s23, %s26
    %p35 = scmp.eq.s32.totalorder %s18, 1
    %p36 = por %p34, %p35
    %p37 = scmp.ne.s32.totalorder %s26, %s27
    %p38 = scmp.eq.s32.totalorder %s18, 0
    %p39 = por %p37, %p38
    %p40 = scmp.ne.s32.totalorder %s26, %s27
    %p41 = scmp.eq.s32.totalorder %s19, 1
    %p42 = por %p40, %p41
    %p44 = scmp.ne.s32.totalorder %s27, %s43
    %p45 = scmp.eq.s32.totalorder %s19, 0
    %p46 = por %p44, %p45
    %s48 = sadd.s32 %s47, 1
    %p51 = scmp.eq.s32.totalorder %s13, 1
    %p52 = scmp.ne.s32.totalorder %s47, %s49
    %p53 = scmp.eq.s32.totalorder %s13, 0
    %p54 = por %p52, %p53
    %p55 = scmp.ne.s32.totalorder %s47, %s49
    %p56 = scmp.eq.s32.totalorder %s18, 1
    %p57 = por %p55, %p56
    %p58 = scmp.ne.s32.totalorder %s49, %s50
    %p59 = scmp.eq.s32.totalorder %s18, 0
    %p60 = por %p58, %p59
    %p61 = scmp.ne.s32.totalorder %s49, %s50
    %p62 = scmp.eq.s32.totalorder %s19, 1
    %p63 = por %p61, %p62
    %p65 = scmp.ne.s32.totalorder %s50, %s64
    %p66 = scmp.eq.s32.totalorder %s19, 0
    %p67 = por %p65, %p66
    %s69 = sadd.s32 %s68, 1
    %p72 = scmp.eq.s32.totalorder %s13, 1
    %p73 = scmp.ne.s32.totalorder %s68, %s70
    %p74 = scmp.eq.s32.totalorder %s13, 0
    %p75 = por %p73, %p74
    %p76 = scmp.ne.s32.totalorder %s68, %s70
    %p77 = scmp.eq.s32.totalorder %s18, 1
    %p78 = por %p76, %p77
    %p79 = scmp.ne.s32.totalorder %s70, %s71
    %p80 = scmp.eq.s32.totalorder %s18, 0
    %p81 = por %p79, %p80
    %p82 = scmp.ne.s32.totalorder %s70, %s71
    %p83 = scmp.eq.s32.totalorder %s19, 1
    %p84 = por %p82, %p83
    %p86 = scmp.ne.s32.totalorder %s71, %s85
    %p87 = scmp.eq.s32.totalorder %s19, 0
    %p88 = por %p86, %p87
    %s90 = sadd.s32 %s89, 1
    %p93 = scmp.eq.s32.totalorder %s13, 1
    %p94 = scmp.ne.s32.totalorder %s89, %s91
    %p95 = scmp.eq.s32.totalorder %s13, 0
    %p96 = por %p94, %p95
    %p97 = scmp.ne.s32.totalorder %s89, %s91
    %p98 = scmp.eq.s32.totalorder %s18, 1
    %p99 = por %p97, %p98
    %p100 = scmp.ne.s32.totalorder %s91, %s92
    %p101 = scmp.eq.s32.totalorder %s18, 0
    %p102 = por %p100, %p101
    %p103 = scmp.ne.s32.totalorder %s91, %s92
    %p104 = scmp.eq.s32.totalorder %s19, 1
    %p105 = por %p103, %p104
    %p107 = scmp.ne.s32.totalorder %s92, %s106
    %p108 = scmp.eq.s32.totalorder %s19, 0
    %p109 = por %p107, %p108
    %s111 = sadd.s32 %s110, 1
    %p114 = scmp.eq.s32.totalorder %s13, 1
    %p115 = scmp.ne.s32.totalorder %s110, %s112
    %p116 = scmp.eq.s32.totalorder %s13, 0
    %p117 = por %p115, %p116
    %p118 = scmp.ne.s32.totalorder %s110, %s112
    %p119 = scmp.eq.s32.totalorder %s18, 1
    %p120 = por %p118, %p119
    %p121 = scmp.ne.s32.totalorder %s112, %s113
    %p122 = scmp.eq.s32.totalorder %s18, 0
    %p123 = por %p121, %p122
    %p124 = scmp.ne.s32.totalorder %s112, %s113
    %p125 = scmp.eq.s32.totalorder %s19, 1
    %p126 = por %p124, %p125
    %p128 = scmp.ne.s32.totalorder %s113, %s127
    %p129 = scmp.eq.s32.totalorder %s19, 0
    %p130 = por %p128, %p129
    %s132 = sadd.s32 %s131, 1
    %p135 = scmp.eq.s32.totalorder %s13, 1
    %p136 = scmp.ne.s32.totalorder %s131, %s133
    %p137 = scmp.eq.s32.totalorder %s13, 0
    %p138 = por %p136, %p137
    %p139 = scmp.ne.s32.totalorder %s131, %s133
    %p140 = scmp.eq.s32.totalorder %s18, 1
    %p141 = por %p139, %p140
    %p142 = scmp.ne.s32.totalorder %s133, %s134
    %p143 = scmp.eq.s32.totalorder %s18, 0
    %p144 = por %p142, %p143
    %p145 = scmp.ne.s32.totalorder %s133, %s134
    %p146 = scmp.eq.s32.totalorder %s19, 1
    %p147 = por %p145, %p146
    %p149 = scmp.ne.s32.totalorder %s134, %s148
    %p150 = scmp.eq.s32.totalorder %s19, 0
    %p151 = por %p149, %p150
    %s153 = sadd.s32 %s152, 1
    %p156 = scmp.eq.s32.totalorder %s13, 1
    %p157 = scmp.ne.s32.totalorder %s152, %s154
    %p158 = scmp.eq.s32.totalorder %s13, 0
    %p159 = por %p157, %p158
    %p160 = scmp.ne.s32.totalorder %s152, %s154
    %p161 = scmp.eq.s32.totalorder %s18, 1
    %p162 = por %p160, %p161
    %p163 = scmp.ne.s32.totalorder %s154, %s155
    %p164 = scmp.eq.s32.totalorder %s18, 0
    %p165 = por %p163, %p164
    %p166 = scmp.ne.s32.totalorder %s154, %s155
    %p167 = scmp.eq.s32.totalorder %s19, 1
    %p168 = por %p166, %p167
    %p170 = scmp.ne.s32.totalorder %s155, %s169
    %p171 = scmp.eq.s32.totalorder %s19, 0
    %p172 = por %p170, %p171
    %s173 = ssub.s32 %s13, %s20
    %p174 = scmp.eq.s32.totalorder %s173, 0
    %s176 = sadd.s32 %s175, 1
    %s177 = scalar_select %p174, %s175, %s176
    %p180 = pneg %p174
    %p181 = scmp.eq.s32.totalorder %s13, 1
    %p182 = por %p180, %p181
    %p183 = scmp.ne.s32.totalorder %s175, %s178
    %p184 = scmp.eq.s32.totalorder %s13, 0
    %p185 = por %p183, %p184
    %p186 = scmp.ne.s32.totalorder %s175, %s178
    %p187 = scmp.eq.s32.totalorder %s18, 1
    %p188 = por %p186, %p187
    %p189 = scmp.ne.s32.totalorder %s178, %s179
    %p190 = scmp.eq.s32.totalorder %s18, 0
    %p191 = por %p189, %p190
    %p192 = scmp.ne.s32.totalorder %s178, %s179
    %p193 = scmp.eq.s32.totalorder %s19, 1
    %p194 = por %p192, %p193
    %p196 = scmp.ne.s32.totalorder %s179, %s195
    %p197 = scmp.eq.s32.totalorder %s19, 0
    %p198 = por %p196, %p197
    %p199 = scmp.le.s32.totalorder 1, %s13
    %p200 = scmp.lt.s32.totalorder %s13, 3
    %p201 = pnand %p199, %p200
    %p202 = pneg %p201
    // Predicated region
    $region9: #{bert_forward.5} parent=5 // pred_check
      _
    $region10: #{bert_forward.5} parent=5 // pred_check_branch
      %204 = sbr.rel (%p201) target = $region12
    $region11: #{bert_forward.5} parent=5 // pred_region
      %s205 = ssub.s32 %s13, 1
      // Predicated region
      $region13: #{bert_forward.5} parent=11 // pred_check
        %p206 = pneg %p60
      $region14: #{bert_forward.5} parent=11 // pred_check_branch
        %208 = sbr.rel (%p206) target = $region16
      $region15: #{bert_forward.5} parent=11 // pred_region
        _
      $region16: #{bert_forward.5} parent=11 // pred_fallthru
        _
      // Predicated region
      $region17: #{bert_forward.5} parent=11 // pred_check
        %p209 = pneg %p81
      $region18: #{bert_forward.5} parent=11 // pred_check_branch
        %211 = sbr.rel (%p209) target = $region20
      $region19: #{bert_forward.5} parent=11 // pred_region
        _
      $region20: #{bert_forward.5} parent=11 // pred_fallthru
        _
      // Predicated region
      $region21: #{bert_forward.5} parent=11 // pred_check
        %p212 = pneg %p102
      $region22: #{bert_forward.5} parent=11 // pred_check_branch
        %214 = sbr.rel (%p212) target = $region24
      $region23: #{bert_forward.5} parent=11 // pred_region
        _
      $region24: #{bert_forward.5} parent=11 // pred_fallthru
        _
      // Predicated region
      $region25: #{bert_forward.5} parent=11 // pred_check
        %p215 = pneg %p123
      $region26: #{bert_forward.5} parent=11 // pred_check_branch
        %217 = sbr.rel (%p215) target = $region28
      $region27: #{bert_forward.5} parent=11 // pred_region
        _
      $region28: #{bert_forward.5} parent=11 // pred_fallthru
        _
      // Predicated region
      $region29: #{bert_forward.5} parent=11 // pred_check
        %p218 = pneg %p144
      $region30: #{bert_forward.5} parent=11 // pred_check_branch
        %220 = sbr.rel (%p218) target = $region32
      $region31: #{bert_forward.5} parent=11 // pred_region
        _
      $region32: #{bert_forward.5} parent=11 // pred_fallthru
        _
      // Predicated region
      $region33: #{bert_forward.5} parent=11 // pred_check
        %p221 = pneg %p165
      $region34: #{bert_forward.5} parent=11 // pred_check_branch
        %223 = sbr.rel (%p221) target = $region36
      $region35: #{bert_forward.5} parent=11 // pred_region
        _
      $region36: #{bert_forward.5} parent=11 // pred_fallthru
        _
    $region12: #{bert_forward.5} parent=5 // pred_fallthru
      _
    %p224 = scmp.lt.s32.totalorder %s13, 2
    // Predicated region
    $region37: #{bert_forward.5} parent=5 // pred_check
      %p225 = pneg %p224
    $region38: #{bert_forward.5} parent=5 // pred_check_branch
      %227 = sbr.rel (%p225) target = $region40
    $region39: #{bert_forward.5} parent=5 // pred_region
      // Predicated region
      $region41: #{bert_forward.5} parent=39 // pred_check
        %p228 = pneg %p33
      $region42: #{bert_forward.5} parent=39 // pred_check_branch
        %230 = sbr.rel (%p228) target = $region44
      $region43: #{bert_forward.5} parent=39 // pred_region
        %s231 = smul.u32 16, %s13
        %p232 = scmp.lt.s32.totalorder %s231, 31
        %s233 = scalar_select %p232, %s231, 31
        %s234 = smul.addr %s233, 4
        %s235 = scalar_lea.vmem %s0, %s234
        %s236 = smul.u32 16, %s13
      $region44: #{bert_forward.5} parent=39 // pred_fallthru
        _
    $region40: #{bert_forward.5} parent=5 // pred_fallthru
      _
    %p237 = scmp.le.s32.totalorder 1, %s13
    %p238 = scmp.lt.s32.totalorder %s13, 3
    %p239 = pnand %p237, %p238
    %p240 = pneg %p239
    // Predicated region
    $region45: #{bert_forward.5} parent=5 // pred_check
      _
    $region46: #{bert_forward.5} parent=5 // pred_check_branch
      %242 = sbr.rel (%p239) target = $region48
    $region47: #{bert_forward.5} parent=5 // pred_region
      %s243 = ssub.s32 %s13, 1
      %s244 = smul.u32 16, %s18
      %p245 = scmp.lt.s32.totalorder %s244, 31
      %s246 = scalar_select %p245, %s244, 31
      %s247 = smul.addr %s246, 4
      %s248 = scalar_lea.vmem %s0, %s247
      %p249 = pneg %p39
      %p250 = pneg %p36
      %p251 = pneg %p60
      %p252 = pneg %p57
      %p253 = pneg %p81
      %p254 = pneg %p78
      %p255 = pneg %p102
      %p256 = pneg %p99
      %p257 = pneg %p123
      %p258 = pneg %p120
      %p259 = pneg %p144
      %p260 = pneg %p141
      %p261 = pneg %p165
      %p262 = pneg %p162
      %p263 = pneg %p191
      %p264 = pneg %p188
      %s265 = smul.u32 16, %s18
      %p266 = scmp.lt.s32.totalorder %s265, 31
      %s267 = scalar_select %p266, %s265, 31
      %s268 = smul.addr %s267, 4
      %s269 = scalar_lea.vmem %s7, %s268
      %s270 = smul.u32 16, %s18
      %p271 = scmp.lt.s32.totalorder %s270, 31
      %s272 = scalar_select %p271, %s270, 31
      %s273 = smul.addr %s272, 4
      %s274 = scalar_lea.vmem %s0, %s273
      %s275 = smul.u32 16, %s18
      %s276 = smul.u32 16, %s18
      %p277 = scmp.lt.s32.totalorder %s276, 31
      %s278 = scalar_select %p277, %s276, 31
      %s279 = smul.addr %s278, 4
      %s280 = scalar_lea.vmem %s7, %s279
      %s281 = smul.u32 16, %s18
      %v283 = vld [vmem:[%s274] sm:$0xf]
      %v284 = vld [vmem:[%s274 + $0x4] sm:$0xf]
      %v285 = vld [vmem:[%s274 + $0x8] sm:$0xf]
      %v286 = vld [vmem:[%s274 + $0xc] sm:$0xf]
      %v287 = vld [vmem:[%s274 + $0x10] sm:$0xf]
      %v288 = vld [vmem:[%s274 + $0x14] sm:$0xf]
      %v289 = vld [vmem:[%s274 + $0x18] sm:$0xf]
      %v290 = vld [vmem:[%s274 + $0x1c] sm:$0xf]
      %v291 = vld [vmem:[%s274 + $0x20] sm:$0xf]
      %v292 = vld [vmem:[%s274 + $0x24] sm:$0xf]
      %v293 = vld [vmem:[%s274 + $0x28] sm:$0xf]
      %v294 = vld [vmem:[%s274 + $0x2c] sm:$0xf]
      %v295 = vld [vmem:[%s274 + $0x30] sm:$0xf]
      %v296 = vld [vmem:[%s274 + $0x34] sm:$0xf]
      %v297 = vld [vmem:[%s274 + $0x38] sm:$0xf]
      %v298 = vld [vmem:[%s274 + $0x3c] sm:$0xf]
      %v299 = vunpack.c.l.bf16 %v283
      %v300 = vunpack.c.l.bf16 %v284
      %v301 = vunpack.c.l.bf16 %v285
      %v302 = vunpack.c.l.bf16 %v286
      %v303 = vunpack.c.l.bf16 %v287
      %v304 = vunpack.c.l.bf16 %v288
      %v305 = vunpack.c.l.bf16 %v289
      %v306 = vunpack.c.l.bf16 %v290
      %v307 = vunpack.c.l.bf16 %v291
      %v308 = vunpack.c.l.bf16 %v292
      %v309 = vunpack.c.l.bf16 %v293
      %v310 = vunpack.c.l.bf16 %v294
      %v311 = vunpack.c.l.bf16 %v295
      %v312 = vunpack.c.l.bf16 %v296
      %v313 = vunpack.c.l.bf16 %v297
      %v314 = vunpack.c.l.bf16 %v298
      %v315 = vld [vmem:[%s1] sm:$0xff]
      %v316 = vld [vmem:[%s1 + $0x8] sm:$0xf]
      %v317 = vld [vmem:[%s1 + $0xc] sm:$0xff]
      %v318 = vld [vmem:[%s1 + $0x14] sm:$0xf]
      %v319 = vld [vmem:[%s1 + $0x18] sm:$0xff]
      %v320 = vld [vmem:[%s1 + $0x20] sm:$0xf]
      %v321 = vld [vmem:[%s1 + $0x24] sm:$0xff]
      %v322 = vld [vmem:[%s1 + $0x2c] sm:$0xf]
      %v323 = vld [vmem:[%s1 + $0x30] sm:$0xff]
      %v324 = vld [vmem:[%s1 + $0x38] sm:$0xf]
      %v325 = vld [vmem:[%s1 + $0x3c] sm:$0xff]
      %v326 = vld [vmem:[%s1 + $0x44] sm:$0xf]
      %v327 = vld [vmem:[%s1 + $0x48] sm:$0xff]
      %v328 = vld [vmem:[%s1 + $0x50] sm:$0xf]
      %v329 = vld [vmem:[%s1 + $0x54] sm:$0xff]
      %v330 = vld [vmem:[%s1 + $0x5c] sm:$0xf]
      %v331 = vld [vmem:[%s1 + $0x60] sm:$0xff]
      %v332 = vld [vmem:[%s1 + $0x68] sm:$0xf]
      %v333 = vld [vmem:[%s1 + $0x6c] sm:$0xff]
      %v334 = vld [vmem:[%s1 + $0x74] sm:$0xf]
      %v335 = vld [vmem:[%s1 + $0x78] sm:$0xff]
      %v336 = vld [vmem:[%s1 + $0x80] sm:$0xf]
      %v337 = vld [vmem:[%s1 + $0x84] sm:$0xff]
      %v338 = vld [vmem:[%s1 + $0x8c] sm:$0xf]
      %v339 = vld [vmem:[%s1 + $0x90] sm:$0xff]
      %v340 = vld [vmem:[%s1 + $0x98] sm:$0xf]
      %v341 = vld [vmem:[%s1 + $0x9c] sm:$0xff]
      %v342 = vld [vmem:[%s1 + $0xa4] sm:$0xf]
      %v343 = vld [vmem:[%s1 + $0xa8] sm:$0xff]
      %v344 = vld [vmem:[%s1 + $0xb0] sm:$0xf]
      %v345 = vld [vmem:[%s1 + $0xb4] sm:$0xff]
      %v346 = vld [vmem:[%s1 + $0xbc] sm:$0xf]
      %v347 = vld [vmem:[%s2] sm:$0x7]
      %v349 = vlaneseq
      %v350 = vshrl.u32 %v349, 7
      %v351 = vsub.s32 0, %v350
      %v352 = vrot.slane %v347, %v351
      %v353 = vlaneseq
      %v354 = vshrl.u32 %v353, 7
      %v355 = vsub.s32 1, %v354
      %v356 = vrot.slane %v347, %v355
      %v357 = vlaneseq
      %v358 = vshrl.u32 %v357, 7
      %v359 = vsub.s32 2, %v358
      %v360 = vrot.slane %v347, %v359
      %v380 = vunpack.c.l.b16 %v283
      %v381 = vunpack.c.l.b16 %v284
      %v382 = vunpack.c.l.b16 %v285
      %v383 = vunpack.c.l.b16 %v286
      %v384 = vunpack.c.l.b16 %v287
      %v385 = vunpack.c.l.b16 %v288
      %v386 = vunpack.c.l.b16 %v289
      %v387 = vunpack.c.l.b16 %v290
      %v388 = vunpack.c.l.b16 %v291
      %v389 = vunpack.c.l.b16 %v292
      %v390 = vunpack.c.l.b16 %v293
      %v391 = vunpack.c.l.b16 %v294
      %v392 = vunpack.c.l.b16 %v295
      %v393 = vunpack.c.l.b16 %v296
      %v394 = vunpack.c.l.b16 %v297
      %v395 = vunpack.c.l.b16 %v298
      %v396 = vpack.c.b16 %v381, %v380
      %v397 = vpack.c.b16 %v383, %v382
      %v398 = vpack.c.b16 %v385, %v384
      %v399 = vpack.c.b16 %v387, %v386
      %v400 = vpack.c.b16 %v389, %v388
      %v401 = vpack.c.b16 %v391, %v390
      %v402 = vpack.c.b16 %v393, %v392
      %v403 = vpack.c.b16 %v395, %v394
      %v444 = vunpack.c.l.b16 %v315
      %v445 = vunpack.c.h.b16 %v315
      %v446 = vunpack.c.l.b16 %v316
      %v447 = vunpack.c.l.b16 %v317
      %v448 = vunpack.c.h.b16 %v317
      %v449 = vunpack.c.l.b16 %v318
      %v450 = vunpack.c.l.b16 %v319
      %v451 = vunpack.c.h.b16 %v319
      %v452 = vunpack.c.l.b16 %v320
      %v453 = vunpack.c.l.b16 %v321
      %v454 = vunpack.c.h.b16 %v321
      %v455 = vunpack.c.l.b16 %v322
      %v456 = vunpack.c.l.b16 %v323
      %v457 = vunpack.c.h.b16 %v323
      %v458 = vunpack.c.l.b16 %v324
      %v459 = vunpack.c.l.b16 %v325
      %v460 = vunpack.c.h.b16 %v325
      %v461 = vunpack.c.l.b16 %v326
      %v462 = vunpack.c.l.b16 %v327
      %v463 = vunpack.c.h.b16 %v327
      %v464 = vunpack.c.l.b16 %v328
      %v465 = vunpack.c.l.b16 %v329
      %v466 = vunpack.c.h.b16 %v329
      %v467 = vunpack.c.l.b16 %v330
      %v468 = vunpack.c.l.b16 %v331
      %v469 = vunpack.c.h.b16 %v331
      %v470 = vunpack.c.l.b16 %v332
      %v471 = vunpack.c.l.b16 %v333
      %v472 = vunpack.c.h.b16 %v333
      %v473 = vunpack.c.l.b16 %v334
      %v474 = vunpack.c.l.b16 %v335
      %v475 = vunpack.c.h.b16 %v335
      %v476 = vunpack.c.l.b16 %v336
      %v477 = vunpack.c.l.b16 %v337
      %v478 = vunpack.c.h.b16 %v337
      %v479 = vunpack.c.l.b16 %v338
      %v480 = vunpack.c.l.b16 %v339
      %v481 = vunpack.c.h.b16 %v339
      %v482 = vunpack.c.l.b16 %v340
      %v483 = vunpack.c.l.b16 %v341
      %v484 = vunpack.c.h.b16 %v341
      %v485 = vunpack.c.l.b16 %v342
      %v486 = vunpack.c.l.b16 %v343
      %v487 = vunpack.c.h.b16 %v343
      %v488 = vunpack.c.l.b16 %v344
      %v489 = vunpack.c.l.b16 %v345
      %v490 = vunpack.c.h.b16 %v345
      %v491 = vunpack.c.l.b16 %v346
      %v492 = vpack.c.b16 %v447, %v444
      %v493 = vpack.c.b16 %v448, %v445
      %v494 = vpack.c.b16 %v449, %v446
      %v495 = vpack.c.b16 %v453, %v450
      %v496 = vpack.c.b16 %v454, %v451
      %v497 = vpack.c.b16 %v455, %v452
      %v498 = vpack.c.b16 %v459, %v456
      %v499 = vpack.c.b16 %v460, %v457
      %v500 = vpack.c.b16 %v461, %v458
      %v501 = vpack.c.b16 %v465, %v462
      %v502 = vpack.c.b16 %v466, %v463
      %v503 = vpack.c.b16 %v467, %v464
      %v504 = vpack.c.b16 %v471, %v468
      %v505 = vpack.c.b16 %v472, %v469
      %v506 = vpack.c.b16 %v473, %v470
      %v507 = vpack.c.b16 %v477, %v474
      %v508 = vpack.c.b16 %v478, %v475
      %v509 = vpack.c.b16 %v479, %v476
      %v510 = vpack.c.b16 %v483, %v480
      %v511 = vpack.c.b16 %v484, %v481
      %v512 = vpack.c.b16 %v485, %v482
      %v513 = vpack.c.b16 %v489, %v486
      %v514 = vpack.c.b16 %v490, %v487
      %v515 = vpack.c.b16 %v491, %v488
      %540 = vmatprep.subr.bf16.mxu0 %v493
      %541 = vmatpush1.bf16.msra.mxu0 %v492
      %542 = vmatprep.subr.bf16.mxu0 %v496
      %543 = vmatpush1.bf16.msra.mxu0 %v495
      %544 = vmatprep.subr.bf16.mxu0 %v499
      %545 = vmatpush1.bf16.msra.mxu0 %v498
      %546 = vmatprep.subr.bf16.mxu0 %v502
      %547 = vmatpush1.bf16.msra.mxu0 %v501
      %548 = vmatprep.subr.bf16.mxu0 %v505
      %549 = vmatpush1.bf16.msra.mxu0 %v504
      %550 = vmatprep.subr.bf16.mxu0 %v508
      %551 = vmatpush1.bf16.msra.mxu0 %v507
      %552 = vmatprep.subr.bf16.mxu0 %v511
      %553 = vmatpush1.bf16.msra.mxu0 %v510
      %554 = vmatprep.subr.bf16.mxu0 %v514
      %555 = vmatpush1.bf16.msra.mxu0 %v513
      %556 = vmatprep.subr.bf16.mxu0 0
      %557 = vmatpush1.bf16.msra.mxu0 0
      %558 = vmatprep.subr.bf16.mxu0 0
      %559 = vmatpush1.bf16.msra.mxu0 0
      %560 = vmatprep.subr.bf16.mxu0 0
      %561 = vmatpush1.bf16.msra.mxu0 0
      %562 = vmatprep.subr.bf16.mxu0 0
      %563 = vmatpush1.bf16.msra.mxu0 0
      %564 = vmatprep.subr.bf16.mxu0 0
      %565 = vmatpush1.bf16.msra.mxu0 0
      %566 = vmatprep.subr.bf16.mxu0 0
      %567 = vmatpush1.bf16.msra.mxu0 0
      %568 = vmatprep.subr.bf16.mxu0 0
      %569 = vmatpush1.bf16.msra.mxu0 0
      %570 = vmatprep.subr.bf16.mxu0 0
      %571 = vmatpush1.bf16.msra.mxu0 0
      %572 = vmatprep.mubr.bf16.mxu0 0
      %573 = vmatmul.mubr.bf16.gmra.mrb[0].mxu0 %v396
      %v574 = vpop.f32.mrb[0].mxu0
      %v575 = vadd.f32 %v352, %v574
      %v576 = vpop.f32.mrb[0].mxu0
      %v577 = vadd.f32 %v356, %v576
      %v578 = vpop.f32.mrb[0].mxu0
      %v579 = vadd.f32 %v352, %v578
      %v580 = vpop.f32.mrb[0].mxu0
      %v581 = vadd.f32 %v356, %v580
      %582 = vmatprep.mubr.bf16.mxu0 0
      %583 = vmatmul.mubr.bf16.gmra.mrb[0].mxu0 %v397
      %v584 = vpop.f32.mrb[0].mxu0
      %v585 = vadd.f32 %v352, %v584
      %v586 = vpop.f32.mrb[0].mxu0
      %v587 = vadd.f32 %v356, %v586
      %v588 = vpop.f32.mrb[0].mxu0
      %v589 = vadd.f32 %v352, %v588
      %v590 = vpop.f32.mrb[0].mxu0
      %v591 = vadd.f32 %v356, %v590
      %592 = vmatprep.mubr.bf16.mxu0 0
      %593 = vmatmul.mubr.bf16.gmra.mrb[0].mxu0 %v398
      %v594 = vpop.f32.mrb[0].mxu0
      %v595 = vadd.f32 %v352, %v594
      %v596 = vpop.f32.mrb[0].mxu0
      %v597 = vadd.f32 %v356, %v596
      %v598 = vpop.f32.mrb[0].mxu0
      %v599 = vadd.f32 %v352, %v598
      %v600 = vpop.f32.mrb[0].mxu0
      %v601 = vadd.f32 %v356, %v600
      %602 = vmatprep.mubr.bf16.mxu0 0
      %603 = vmatmul.mubr.bf16.gmra.mrb[0].mxu0 %v399
      %v604 = vpop.f32.mrb[0].mxu0
      %v605 = vadd.f32 %v352, %v604
      %v606 = vpop.f32.mrb[0].mxu0
      %v607 = vadd.f32 %v356, %v606
      %v608 = vpop.f32.mrb[0].mxu0
      %v609 = vadd.f32 %v352, %v608
      %v610 = vpop.f32.mrb[0].mxu0
      %v611 = vadd.f32 %v356, %v610
      %612 = vmatprep.mubr.bf16.mxu0 0
      %613 = vmatmul.mubr.bf16.gmra.mrb[0].mxu0 %v400
      %v614 = vpop.f32.mrb[0].mxu0
      %v615 = vadd.f32 %v352, %v614
      %v616 = vpop.f32.mrb[0].mxu0
      %v617 = vadd.f32 %v356, %v616
      %v618 = vpop.f32.mrb[0].mxu0
      %v619 = vadd.f32 %v352, %v618
      %v620 = vpop.f32.mrb[0].mxu0
      %v621 = vadd.f32 %v356, %v620
      %622 = vmatprep.mubr.bf16.mxu0 0
      %623 = vmatmul.mubr.bf16.gmra.mrb[0].mxu0 %v401
      %v624 = vpop.f32.mrb[0].mxu0
      %v625 = vadd.f32 %v352, %v624
      %v626 = vpop.f32.mrb[0].mxu0
      %v627 = vadd.f32 %v356, %v626
      %v628 = vpop.f32.mrb[0].mxu0
      %v629 = vadd.f32 %v352, %v628
      %v630 = vpop.f32.mrb[0].mxu0
      %v631 = vadd.f32 %v356, %v630
      %632 = vmatprep.mubr.bf16.mxu0 0
      %633 = vmatmul.mubr.bf16.gmra.mrb[0].mxu0 %v402
      %v634 = vpop.f32.mrb[0].mxu0
      %v635 = vadd.f32 %v352, %v634
      %v636 = vpop.f32.mrb[0].mxu0
      %v637 = vadd.f32 %v356, %v636
      %v638 = vpop.f32.mrb[0].mxu0
      %v639 = vadd.f32 %v352, %v638
      %v640 = vpop.f32.mrb[0].mxu0
      %v641 = vadd.f32 %v356, %v640
      %642 = vmatprep.mubr.bf16.mxu0 0
      %643 = vmatmul.mubr.bf16.gmra.mrb[0].mxu0 %v403
      %v644 = vpop.f32.mrb[0].mxu0
      %v645 = vadd.f32 %v352, %v644
      %v646 = vpop.f32.mrb[0].mxu0
      %v647 = vadd.f32 %v356, %v646
      %v648 = vpop.f32.mrb[0].mxu0
      %v649 = vadd.f32 %v352, %v648
      %v650 = vpop.f32.mrb[0].mxu0
      %v651 = vadd.f32 %v356, %v650
      %652 = vdwg.mxu0
      %653 = vmatprep.subr.bf16.mxu0 0
      %654 = vmatpush1.bf16.msra.mxu0 %v494
      %655 = vmatprep.subr.bf16.mxu0 0
      %656 = vmatpush1.bf16.msra.mxu0 %v497
      %657 = vmatprep.subr.bf16.mxu0 0
      %658 = vmatpush1.bf16.msra.mxu0 %v500
      %659 = vmatprep.subr.bf16.mxu0 0
      %660 = vmatpush1.bf16.msra.mxu0 %v503
      %661 = vmatprep.subr.bf16.mxu0 0
      %662 = vmatpush1.bf16.msra.mxu0 %v506
      %663 = vmatprep.subr.bf16.mxu0 0
      %664 = vmatpush1.bf16.msra.mxu0 %v509
      %665 = vmatprep.subr.bf16.mxu0 0
      %666 = vmatpush1.bf16.msra.mxu0 %v512
      %667 = vmatprep.subr.bf16.mxu0 0
      %668 = vmatpush1.bf16.msra.mxu0 %v515
      %669 = vmatprep.subr.bf16.mxu0 0
      %670 = vmatpush1.bf16.msra.mxu0 0
      %671 = vmatprep.subr.bf16.mxu0 0
      %672 = vmatpush1.bf16.msra.mxu0 0
      %673 = vmatprep.subr.bf16.mxu0 0
      %674 = vmatpush1.bf16.msra.mxu0 0
      %675 = vmatprep.subr.bf16.mxu0 0
      %676 = vmatpush1.bf16.msra.mxu0 0
      %677 = vmatprep.subr.bf16.mxu0 0
      %678 = vmatpush1.bf16.msra.mxu0 0
      %679 = vmatprep.subr.bf16.mxu0 0
      %680 = vmatpush1.bf16.msra.mxu0 0
      %681 = vmatprep.subr.bf16.mxu0 0
      %682 = vmatpush1.bf16.msra.mxu0 0
      %683 = vmatprep.subr.bf16.mxu0 0
      %684 = vmatpush1.bf16.msra.mxu0 0
      %685 = vmatprep.mubr.bf16.mxu0 0
      %686 = vmatmul.mubr.bf16.gmra.mrb[0].mxu0 %v396
      %v687 = vpop.f32.mrb[0].mxu0
      %v688 = vadd.f32 %v360, %v687
      %v689 = vpop.f32.mrb[0].mxu0
      %v690 = vpop.f32.mrb[0].mxu0
      %v691 = vadd.f32 %v360, %v690
      %v692 = vpop.f32.mrb[0].mxu0
      %693 = vmatprep.mubr.bf16.mxu0 0
      %694 = vmatmul.mubr.bf16.gmra.mrb[0].mxu0 %v397
      %v695 = vpop.f32.mrb[0].mxu0
      %v696 = vadd.f32 %v360, %v695
      %v697 = vpop.f32.mrb[0].mxu0
      %v698 = vpop.f32.mrb[0].mxu0
      %v699 = vadd.f32 %v360, %v698
      %v700 = vpop.f32.mrb[0].mxu0
      %701 = vmatprep.mubr.bf16.mxu0 0
      %702 = vmatmul.mubr.bf16.gmra.mrb[0].mxu0 %v398
      %v703 = vpop.f32.mrb[0].mxu0
      %v704 = vadd.f32 %v360, %v703
      %v705 = vpop.f32.mrb[0].mxu0
      %v706 = vpop.f32.mrb[0].mxu0
      %v707 = vadd.f32 %v360, %v706
      %v708 = vpop.f32.mrb[0].mxu0
      %709 = vmatprep.mubr.bf16.mxu0 0
      %710 = vmatmul.mubr.bf16.gmra.mrb[0].mxu0 %v399
      %v711 = vpop.f32.mrb[0].mxu0
      %v712 = vadd.f32 %v360, %v711
      %v713 = vpop.f32.mrb[0].mxu0
      %v714 = vpop.f32.mrb[0].mxu0
      %v715 = vadd.f32 %v360, %v714
      %v716 = vpop.f32.mrb[0].mxu0
      %717 = vmatprep.mubr.bf16.mxu0 0
      %718 = vmatmul.mubr.bf16.gmra.mrb[0].mxu0 %v400
      %v719 = vpop.f32.mrb[0].mxu0
      %v720 = vadd.f32 %v360, %v719
      %v721 = vpop.f32.mrb[0].mxu0
      %v722 = vpop.f32.mrb[0].mxu0
      %v723 = vadd.f32 %v360, %v722
      %v724 = vpop.f32.mrb[0].mxu0
      %725 = vmatprep.mubr.bf16.mxu0 0
      %726 = vmatmul.mubr.bf16.gmra.mrb[0].mxu0 %v401
      %v727 = vpop.f32.mrb[0].mxu0
      %v728 = vadd.f32 %v360, %v727
      %v729 = vpop.f32.mrb[0].mxu0
      %v730 = vpop.f32.mrb[0].mxu0
      %v731 = vadd.f32 %v360, %v730
      %v732 = vpop.f32.mrb[0].mxu0
      %733 = vmatprep.mubr.bf16.mxu0 0
      %734 = vmatmul.mubr.bf16.gmra.mrb[0].mxu0 %v402
      %v735 = vpop.f32.mrb[0].mxu0
      %v736 = vadd.f32 %v360, %v735
      %v737 = vpop.f32.mrb[0].mxu0
      %v738 = vpop.f32.mrb[0].mxu0
      %v739 = vadd.f32 %v360, %v738
      %v740 = vpop.f32.mrb[0].mxu0
      %741 = vmatprep.mubr.bf16.mxu0 0
      %742 = vmatmul.mubr.bf16.gmra.mrb[0].mxu0 %v403
      %v743 = vpop.f32.mrb[0].mxu0
      %v744 = vadd.f32 %v360, %v743
      %v745 = vpop.f32.mrb[0].mxu0
      %v746 = vpop.f32.mrb[0].mxu0
      %v747 = vadd.f32 %v360, %v746
      %v748 = vpop.f32.mrb[0].mxu0
      %749 = vdwg.mxu0
      %v750 = vpack.c.bf16 %v579, %v575
      %v751 = vpack.c.bf16 %v589, %v585
      %v752 = vpack.c.bf16 %v599, %v595
      %v753 = vpack.c.bf16 %v609, %v605
      %v754 = vpack.c.bf16 %v619, %v615
      %v755 = vpack.c.bf16 %v629, %v625
      %v756 = vpack.c.bf16 %v639, %v635
      %v757 = vpack.c.bf16 %v649, %v645
      %v758 = vpack.c.bf16 %v581, %v577
      %v759 = vpack.c.bf16 %v591, %v587
      %v760 = vpack.c.bf16 %v601, %v597
      %v761 = vpack.c.bf16 %v611, %v607
      %v762 = vpack.c.bf16 %v621, %v617
      %v763 = vpack.c.bf16 %v631, %v627
      %v764 = vpack.c.bf16 %v641, %v637
      %v765 = vpack.c.bf16 %v651, %v647
      %v766 = vpack.c.bf16 %v691, %v688
      %v767 = vpack.c.bf16 %v699, %v696
      %v768 = vpack.c.bf16 %v707, %v704
      %v769 = vpack.c.bf16 %v715, %v712
      %v770 = vpack.c.bf16 %v723, %v720
      %v771 = vpack.c.bf16 %v731, %v728
      %v772 = vpack.c.bf16 %v739, %v736
      %v773 = vpack.c.bf16 %v747, %v744
      %vm774 = vcmask 261120
      %v776 = vsel %vm774, %v750, 0
      %v779 = vsel %vm774, %v751, 0
      %v782 = vsel %vm774, %v752, 0
      %v785 = vsel %vm774, %v753, 0
      %v788 = vsel %vm774, %v754, 0
      %v791 = vsel %vm774, %v755, 0
      %v794 = vsel %vm774, %v756, 0
      %v797 = vsel %vm774, %v757, 0
      %v800 = vsel %vm774, %v758, 0
      %v803 = vsel %vm774, %v759, 0
      %v806 = vsel %vm774, %v760, 0
      %v809 = vsel %vm774, %v761, 0
      %v812 = vsel %vm774, %v762, 0
      %v815 = vsel %vm774, %v763, 0
      %v818 = vsel %vm774, %v764, 0
      %v821 = vsel %vm774, %v765, 0
      %823 = vmatprep.subr.bf16.mxu0 0
      %824 = vmatpush1.bf16.xpose.msra.mxu0 %v800
      %825 = vmatprep.subr.bf16.mxu0 0
      %826 = vmatpush1.bf16.xpose.msra.mxu0 %v803
      %827 = vmatprep.subr.bf16.mxu0 0
      %828 = vmatpush1.bf16.xpose.msra.mxu0 %v806
      %829 = vmatprep.subr.bf16.mxu0 0
      %830 = vmatpush1.bf16.xpose.msra.mxu0 %v809
      %831 = vmatprep.subr.bf16.mxu0 0
      %832 = vmatpush1.bf16.xpose.msra.mxu0 %v812
      %833 = vmatprep.subr.bf16.mxu0 0
      %834 = vmatpush1.bf16.xpose.msra.mxu0 %v815
      %835 = vmatprep.subr.bf16.mxu0 0
      %836 = vmatpush1.bf16.xpose.msra.mxu0 %v818
      %837 = vmatprep.subr.bf16.mxu0 0
      %838 = vmatpush1.bf16.xpose.msra.mxu0 %v821
      %839 = vmatprep.subr.bf16.mxu0 0
      %840 = vmatpush1.bf16.xpose.msra.mxu0 0
      %841 = vmatprep.subr.bf16.mxu0 0
      %842 = vmatpush1.bf16.xpose.msra.mxu0 0
      %843 = vmatprep.subr.bf16.mxu0 0
      %844 = vmatpush1.bf16.xpose.msra.mxu0 0
      %845 = vmatprep.subr.bf16.mxu0 0
      %846 = vmatpush1.bf16.xpose.msra.mxu0 0
      %847 = vmatprep.subr.bf16.mxu0 0
      %848 = vmatpush1.bf16.xpose.msra.mxu0 0
      %849 = vmatprep.subr.bf16.mxu0 0
      %850 = vmatpush1.bf16.xpose.msra.mxu0 0
      %851 = vmatprep.subr.bf16.mxu0 0
      %852 = vmatpush1.bf16.xpose.msra.mxu0 0
      %853 = vmatprep.subr.bf16.mxu0 0
      %854 = vmatpush1.bf16.xpose.msra.mxu0 0
      %855 = vmatprep.mubr.bf16.mxu0 0
      %856 = vmatmul.mubr.bf16.gmra.mrb[0].mxu0 %v776
      %v857 = vpop.f32.mrb[0].mxu0
      %v858 = vadd.f32 0.0, %v857
      %v859 = vpop.f32.mrb[0].mxu0
      %v860 = vpop.f32.mrb[0].mxu0
      %v861 = vadd.f32 0.0, %v860
      %v862 = vpop.f32.mrb[0].mxu0
      %863 = vmatprep.mubr.bf16.mxu0 0
      %864 = vmatmul.mubr.bf16.gmra.mrb[0].mxu0 %v779
      %v865 = vpop.f32.mrb[0].mxu0
      %v866 = vadd.f32 0.0, %v865
      %v867 = vpop.f32.mrb[0].mxu0
      %v868 = vpop.f32.mrb[0].mxu0
      %v869 = vadd.f32 0.0, %v868
      %v870 = vpop.f32.mrb[0].mxu0
      %871 = vmatprep.mubr.bf16.mxu0 0
      %872 = vmatmul.mubr.bf16.gmra.mrb[0].mxu0 %v782
      %v873 = vpop.f32.mrb[0].mxu0
      %v874 = vadd.f32 0.0, %v873
      %v875 = vpop.f32.mrb[0].mxu0
      %v876 = vpop.f32.mrb[0].mxu0
      %v877 = vadd.f32 0.0, %v876
      %v878 = vpop.f32.mrb[0].mxu0
      %879 = vmatprep.mubr.bf16.mxu0 0
      %880 = vmatmul.mubr.bf16.gmra.mrb[0].mxu0 %v785
      %v881 = vpop.f32.mrb[0].mxu0
      %v882 = vadd.f32 0.0, %v881
      %v883 = vpop.f32.mrb[0].mxu0
      %v884 = vpop.f32.mrb[0].mxu0
      %v885 = vadd.f32 0.0, %v884
      %v886 = vpop.f32.mrb[0].mxu0
      %887 = vmatprep.mubr.bf16.mxu0 0
      %888 = vmatmul.mubr.bf16.gmra.mrb[0].mxu0 %v788
      %v889 = vpop.f32.mrb[0].mxu0
      %v890 = vadd.f32 0.0, %v889
      %v891 = vpop.f32.mrb[0].mxu0
      %v892 = vpop.f32.mrb[0].mxu0
      %v893 = vadd.f32 0.0, %v892
      %v894 = vpop.f32.mrb[0].mxu0
      %895 = vmatprep.mubr.bf16.mxu0 0
      %896 = vmatmul.mubr.bf16.gmra.mrb[0].mxu0 %v791
      %v897 = vpop.f32.mrb[0].mxu0
      %v898 = vadd.f32 0.0, %v897
      %v899 = vpop.f32.mrb[0].mxu0
      %v900 = vpop.f32.mrb[0].mxu0
      %v901 = vadd.f32 0.0, %v900
      %v902 = vpop.f32.mrb[0].mxu0
      %903 = vmatprep.mubr.bf16.mxu0 0
      %904 = vmatmul.mubr.bf16.gmra.mrb[0].mxu0 %v794
      %v905 = vpop.f32.mrb[0].mxu0
      %v906 = vadd.f32 0.0, %v905
      %v907 = vpop.f32.mrb[0].mxu0
      %v908 = vpop.f32.mrb[0].mxu0
      %v909 = vadd.f32 0.0, %v908
      %v910 = vpop.f32.mrb[0].mxu0
      %911 = vmatprep.mubr.bf16.mxu0 0
      %912 = vmatmul.mubr.bf16.gmra.mrb[0].mxu0 %v797
      %v913 = vpop.f32.mrb[0].mxu0
      %v914 = vadd.f32 0.0, %v913
      %v915 = vpop.f32.mrb[0].mxu0
      %v916 = vpop.f32.mrb[0].mxu0
      %v917 = vadd.f32 0.0, %v916
      %v918 = vpop.f32.mrb[0].mxu0
      %919 = vdwg.mxu0
      %v920 = vmul.f32 %v858, 0.17677669
      %v921 = vmul.f32 %v861, 0.17677669
      %v922 = vmul.f32 %v866, 0.17677669
      %v923 = vmul.f32 %v869, 0.17677669
      %v924 = vmul.f32 %v874, 0.17677669
      %v925 = vmul.f32 %v877, 0.17677669
      %v926 = vmul.f32 %v882, 0.17677669
      %v927 = vmul.f32 %v885, 0.17677669
      %v928 = vmul.f32 %v890, 0.17677669
      %v929 = vmul.f32 %v893, 0.17677669
      %v930 = vmul.f32 %v898, 0.17677669
      %v931 = vmul.f32 %v901, 0.17677669
      %v932 = vmul.f32 %v906, 0.17677669
      %v933 = vmul.f32 %v909, 0.17677669
      %v934 = vmul.f32 %v914, 0.17677669
      %v935 = vmul.f32 %v917, 0.17677669
      %936 = vmax.xlane.f32.xlu0 %v920
      %v937 = vpop.xlane.xlu0 %936
      %938 = vmax.xlane.f32.xlu0 %v921
      %v939 = vpop.xlane.xlu0 %938
      %940 = vmax.xlane.f32.xlu0 %v922
      %v941 = vpop.xlane.xlu0 %940
      %942 = vmax.xlane.f32.xlu0 %v923
      %v943 = vpop.xlane.xlu0 %942
      %944 = vmax.xlane.f32.xlu0 %v924
      %v945 = vpop.xlane.xlu0 %944
      %946 = vmax.xlane.f32.xlu0 %v925
      %v947 = vpop.xlane.xlu0 %946
      %948 = vmax.xlane.f32.xlu0 %v926
      %v949 = vpop.xlane.xlu0 %948
      %950 = vmax.xlane.f32.xlu0 %v927
      %v951 = vpop.xlane.xlu0 %950
      %952 = vmax.xlane.f32.xlu0 %v928
      %v953 = vpop.xlane.xlu0 %952
      %954 = vmax.xlane.f32.xlu0 %v929
      %v955 = vpop.xlane.xlu0 %954
      %956 = vmax.xlane.f32.xlu0 %v930
      %v957 = vpop.xlane.xlu0 %956
      %958 = vmax.xlane.f32.xlu0 %v931
      %v959 = vpop.xlane.xlu0 %958
      %960 = vmax.xlane.f32.xlu0 %v932
      %v961 = vpop.xlane.xlu0 %960
      %962 = vmax.xlane.f32.xlu0 %v933
      %v963 = vpop.xlane.xlu0 %962
      %964 = vmax.xlane.f32.xlu0 %v934
      %v965 = vpop.xlane.xlu0 %964
      %966 = vmax.xlane.f32.xlu0 %v935
      %v967 = vpop.xlane.xlu0 %966
      %v968 = vsub.f32 %v920, %v937
      %v969 = vsub.f32 %v921, %v939
      %v970 = vsub.f32 %v922, %v941
      %v971 = vsub.f32 %v923, %v943
      %v972 = vsub.f32 %v924, %v945
      %v973 = vsub.f32 %v925, %v947
      %v974 = vsub.f32 %v926, %v949
      %v975 = vsub.f32 %v927, %v951
      %v976 = vsub.f32 %v928, %v953
      %v977 = vsub.f32 %v929, %v955
      %v978 = vsub.f32 %v930, %v957
      %v979 = vsub.f32 %v931, %v959
      %v980 = vsub.f32 %v932, %v961
      %v981 = vsub.f32 %v933, %v963
      %v982 = vsub.f32 %v934, %v965
      %v983 = vsub.f32 %v935, %v967
      %v984 = vmul.f32 %v968, 1.442695
      %v985 = vpow.pop %v984
      %v986 = vmul.f32 %v969, 1.442695
      %v987 = vpow.pop %v986
      %v988 = vmul.f32 %v970, 1.442695
      %v989 = vpow.pop %v988
      %v990 = vmul.f32 %v971, 1.442695
      %v991 = vpow.pop %v990
      %v992 = vmul.f32 %v972, 1.442695
      %v993 = vpow.pop %v992
      %v994 = vmul.f32 %v973, 1.442695
      %v995 = vpow.pop %v994
      %v996 = vmul.f32 %v974, 1.442695
      %v997 = vpow.pop %v996
      %v998 = vmul.f32 %v975, 1.442695
      %v999 = vpow.pop %v998
      %v1000 = vmul.f32 %v976, 1.442695
      %v1001 = vpow.pop %v1000
      %v1002 = vmul.f32 %v977, 1.442695
      %v1003 = vpow.pop %v1002
      %v1004 = vmul.f32 %v978, 1.442695
      %v1005 = vpow.pop %v1004
      %v1006 = vmul.f32 %v979, 1.442695
      %v1007 = vpow.pop %v1006
      %v1008 = vmul.f32 %v980, 1.442695
      %v1009 = vpow.pop %v1008
      %v1010 = vmul.f32 %v981, 1.442695
      %v1011 = vpow.pop %v1010
      %v1012 = vmul.f32 %v982, 1.442695
      %v1013 = vpow.pop %v1012
      %v1014 = vmul.f32 %v983, 1.442695
      %v1015 = vpow.pop %v1014
      %1016 = vadd.xlane.f32.xlu0 %v985
      %v1017 = vpop.xlane.xlu0 %1016
      %1018 = vadd.xlane.f32.xlu0 %v987
      %v1019 = vpop.xlane.xlu0 %1018
      %1020 = vadd.xlane.f32.xlu0 %v989
      %v1021 = vpop.xlane.xlu0 %1020
      %1022 = vadd.xlane.f32.xlu0 %v991
      %v1023 = vpop.xlane.xlu0 %1022
      %1024 = vadd.xlane.f32.xlu0 %v993
      %v1025 = vpop.xlane.xlu0 %1024
      %1026 = vadd.xlane.f32.xlu0 %v995
      %v1027 = vpop.xlane.xlu0 %1026
      %1028 = vadd.xlane.f32.xlu0 %v997
      %v1029 = vpop.xlane.xlu0 %1028
      %1030 = vadd.xlane.f32.xlu0 %v999
      %v1031 = vpop.xlane.xlu0 %1030
      %1032 = vadd.xlane.f32.xlu0 %v1001
      %v1033 = vpop.xlane.xlu0 %1032
      %1034 = vadd.xlane.f32.xlu0 %v1003
      %v1035 = vpop.xlane.xlu0 %1034
      %1036 = vadd.xlane.f32.xlu0 %v1005
      %v1037 = vpop.xlane.xlu0 %1036
      %1038 = vadd.xlane.f32.xlu0 %v1007
      %v1039 = vpop.xlane.xlu0 %1038
      %1040 = vadd.xlane.f32.xlu0 %v1009
      %v1041 = vpop.xlane.xlu0 %1040
      %1042 = vadd.xlane.f32.xlu0 %v1011
      %v1043 = vpop.xlane.xlu0 %1042
      %1044 = vadd.xlane.f32.xlu0 %v1013
      %v1045 = vpop.xlane.xlu0 %1044
      %1046 = vadd.xlane.f32.xlu0 %v1015
      %v1047 = vpop.xlane.xlu0 %1046
      %v1048 = vrcp.pop %v1017
      %v1049 = vrcp.pop %v1019
      %v1050 = vrcp.pop %v1021
      %v1051 = vrcp.pop %v1023
      %v1052 = vrcp.pop %v1025
      %v1053 = vrcp.pop %v1027
      %v1054 = vrcp.pop %v1029
      %v1055 = vrcp.pop %v1031
      %v1056 = vrcp.pop %v1033
      %v1057 = vrcp.pop %v1035
      %v1058 = vrcp.pop %v1037
      %v1059 = vrcp.pop %v1039
      %v1060 = vrcp.pop %v1041
      %v1061 = vrcp.pop %v1043
      %v1062 = vrcp.pop %v1045
      %v1063 = vrcp.pop %v1047
      %v1064 = vmul.f32 %v985, %v1048
      %v1065 = vmul.f32 %v987, %v1049
      %v1066 = vmul.f32 %v989, %v1050
      %v1067 = vmul.f32 %v991, %v1051
      %v1068 = vmul.f32 %v993, %v1052
      %v1069 = vmul.f32 %v995, %v1053
      %v1070 = vmul.f32 %v997, %v1054
      %v1071 = vmul.f32 %v999, %v1055
      %v1072 = vmul.f32 %v1001, %v1056
      %v1073 = vmul.f32 %v1003, %v1057
      %v1074 = vmul.f32 %v1005, %v1058
      %v1075 = vmul.f32 %v1007, %v1059
      %v1076 = vmul.f32 %v1009, %v1060
      %v1077 = vmul.f32 %v1011, %v1061
      %v1078 = vmul.f32 %v1013, %v1062
      %v1079 = vmul.f32 %v1015, %v1063
      %v1080 = vpack.c.bf16 %v1065, %v1064
      %v1081 = vpack.c.bf16 %v1067, %v1066
      %v1082 = vpack.c.bf16 %v1069, %v1068
      %v1083 = vpack.c.bf16 %v1071, %v1070
      %v1084 = vpack.c.bf16 %v1073, %v1072
      %v1085 = vpack.c.bf16 %v1075, %v1074
      %v1086 = vpack.c.bf16 %v1077, %v1076
      %v1087 = vpack.c.bf16 %v1079, %v1078
      %1088 = vmatprep.subr.bf16.mxu0 0
      %1089 = vmatpush1.bf16.msra.mxu0 %v766
      %1090 = vmatprep.subr.bf16.mxu0 0
      %1091 = vmatpush1.bf16.msra.mxu0 %v767
      %1092 = vmatprep.subr.bf16.mxu0 0
      %1093 = vmatpush1.bf16.msra.mxu0 %v768
      %1094 = vmatprep.subr.bf16.mxu0 0
      %1095 = vmatpush1.bf16.msra.mxu0 %v769
      %1096 = vmatprep.subr.bf16.mxu0 0
      %1097 = vmatpush1.bf16.msra.mxu0 %v770
      %1098 = vmatprep.subr.bf16.mxu0 0
      %1099 = vmatpush1.bf16.msra.mxu0 %v771
      %1100 = vmatprep.subr.bf16.mxu0 0
      %1101 = vmatpush1.bf16.msra.mxu0 %v772
      %1102 = vmatprep.subr.bf16.mxu0 0
      %1103 = vmatpush1.bf16.msra.mxu0 %v773
      %1104 = vmatprep.subr.bf16.mxu0 0
      %1105 = vmatpush1.bf16.msra.mxu0 0
      %1106 = vmatprep.subr.bf16.mxu0 0
      %1107 = vmatpush1.bf16.msra.mxu0 0
      %1108 = vmatprep.subr.bf16.mxu0 0
      %1109 = vmatpush1.bf16.msra.mxu0 0
      %1110 = vmatprep.subr.bf16.mxu0 0
      %1111 = vmatpush1.bf16.msra.mxu0 0
      %1112 = vmatprep.subr.bf16.mxu0 0
      %1113 = vmatpush1.bf16.msra.mxu0 0
      %1114 = vmatprep.subr.bf16.mxu0 0
      %1115 = vmatpush1.bf16.msra.mxu0 0
      %1116 = vmatprep.subr.bf16.mxu0 0
      %1117 = vmatpush1.bf16.msra.mxu0 0
      %1118 = vmatprep.subr.bf16.mxu0 0
      %1119 = vmatpush1.bf16.msra.mxu0 0
      %1120 = vmatprep.mubr.bf16.mxu0 0
      %1121 = vmatmul.mubr.bf16.gmra.mrb[0].mxu0 %v1080
      %v1122 = vpop.f32.mrb[0].mxu0
      %v1123 = vadd.f32 0.0, %v1122
      %v1124 = vpop.f32.mrb[0].mxu0
      %v1125 = vpop.f32.mrb[0].mxu0
      %v1126 = vadd.f32 0.0, %v1125
      %v1127 = vpop.f32.mrb[0].mxu0
      %1128 = vmatprep.mubr.bf16.mxu0 0
      %1129 = vmatmul.mubr.bf16.gmra.mrb[0].mxu0 %v1081
      %v1130 = vpop.f32.mrb[0].mxu0
      %v1131 = vadd.f32 0.0, %v1130
      %v1132 = vpop.f32.mrb[0].mxu0
      %v1133 = vpop.f32.mrb[0].mxu0
      %v1134 = vadd.f32 0.0, %v1133
      %v1135 = vpop.f32.mrb[0].mxu0
      %1136 = vmatprep.mubr.bf16.mxu0 0
      %1137 = vmatmul.mubr.bf16.gmra.mrb[0].mxu0 %v1082
      %v1138 = vpop.f32.mrb[0].mxu0
      %v1139 = vadd.f32 0.0, %v1138
      %v1140 = vpop.f32.mrb[0].mxu0
      %v1141 = vpop.f32.mrb[0].mxu0
      %v1142 = vadd.f32 0.0, %v1141
      %v1143 = vpop.f32.mrb[0].mxu0
      %1144 = vmatprep.mubr.bf16.mxu0 0
      %1145 = vmatmul.mubr.bf16.gmra.mrb[0].mxu0 %v1083
      %v1146 = vpop.f32.mrb[0].mxu0
      %v1147 = vadd.f32 0.0, %v1146
      %v1148 = vpop.f32.mrb[0].mxu0
      %v1149 = vpop.f32.mrb[0].mxu0
      %v1150 = vadd.f32 0.0, %v1149
      %v1151 = vpop.f32.mrb[0].mxu0
      %1152 = vmatprep.mubr.bf16.mxu0 0
      %1153 = vmatmul.mubr.bf16.gmra.mrb[0].mxu0 %v1084
      %v1154 = vpop.f32.mrb[0].mxu0
      %v1155 = vadd.f32 0.0, %v1154
      %v1156 = vpop.f32.mrb[0].mxu0
      %v1157 = vpop.f32.mrb[0].mxu0
      %v1158 = vadd.f32 0.0, %v1157
      %v1159 = vpop.f32.mrb[0].mxu0
      %1160 = vmatprep.mubr.bf16.mxu0 0
      %1161 = vmatmul.mubr.bf16.gmra.mrb[0].mxu0 %v1085
      %v1162 = vpop.f32.mrb[0].mxu0
      %v1163 = vadd.f32 0.0, %v1162
      %v1164 = vpop.f32.mrb[0].mxu0
      %v1165 = vpop.f32.mrb[0].mxu0
      %v1166 = vadd.f32 0.0, %v1165
      %v1167 = vpop.f32.mrb[0].mxu0
      %1168 = vmatprep.mubr.bf16.mxu0 0
      %1169 = vmatmul.mubr.bf16.gmra.mrb[0].mxu0 %v1086
      %v1170 = vpop.f32.mrb[0].mxu0
      %v1171 = vadd.f32 0.0, %v1170
      %v1172 = vpop.f32.mrb[0].mxu0
      %v1173 = vpop.f32.mrb[0].mxu0
      %v1174 = vadd.f32 0.0, %v1173
      %v1175 = vpop.f32.mrb[0].mxu0
      %1176 = vmatprep.mubr.bf16.mxu0 0
      %1177 = vmatmul.mubr.bf16.gmra.mrb[0].mxu0 %v1087
      %v1178 = vpop.f32.mrb[0].mxu0
      %v1179 = vadd.f32 0.0, %v1178
      %v1180 = vpop.f32.mrb[0].mxu0
      %v1181 = vpop.f32.mrb[0].mxu0
      %v1182 = vadd.f32 0.0, %v1181
      %v1183 = vpop.f32.mrb[0].mxu0
      %1184 = vdwg.mxu0
      %1185 = vst.msk [vmem:[#allocation2] sm:$0xff] %vm774, %v1123
      %1186 = vst.msk [vmem:[#allocation2 + $0x8] sm:$0xff] %vm774, %v1126
      %1187 = vst.msk [vmem:[#allocation2 + $0x10] sm:$0xff] %vm774, %v1131
      %1188 = vst.msk [vmem:[#allocation2 + $0x18] sm:$0xff] %vm774, %v1134
      %1189 = vst.msk [vmem:[#allocation2 + $0x20] sm:$0xff] %vm774, %v1139
      %1190 = vst.msk [vmem:[#allocation2 + $0x28] sm:$0xff] %vm774, %v1142
      %1191 = vst.msk [vmem:[#allocation2 + $0x30] sm:$0xff] %vm774, %v1147
      %1192 = vst.msk [vmem:[#allocation2 + $0x38] sm:$0xff] %vm774, %v1150
      %1193 = vst.msk [vmem:[#allocation2 + $0x40] sm:$0xff] %vm774, %v1155
      %1194 = vst.msk [vmem:[#allocation2 + $0x48] sm:$0xff] %vm774, %v1158
      %1195 = vst.msk [vmem:[#allocation2 + $0x50] sm:$0xff] %vm774, %v1163
      %1196 = vst.msk [vmem:[#allocation2 + $0x58] sm:$0xff] %vm774, %v1166
      %1197 = vst.msk [vmem:[#allocation2 + $0x60] sm:$0xff] %vm774, %v1171
      %1198 = vst.msk [vmem:[#allocation2 + $0x68] sm:$0xff] %vm774, %v1174
      %1199 = vst.msk [vmem:[#allocation2 + $0x70] sm:$0xff] %vm774, %v1179
      %1200 = vst.msk [vmem:[#allocation2 + $0x78] sm:$0xff] %vm774, %v1182
      %1209 = vrot.lane.b32.xlu0 %v750, 96
      %v1210 = vpop.permute.xlu0 %1209
      %1211 = vrot.lane.b32.xlu0 %v751, 96
      %v1212 = vpop.permute.xlu0 %1211
      %1213 = vrot.lane.b32.xlu0 %v752, 96
      %v1214 = vpop.permute.xlu0 %1213
      %1215 = vrot.lane.b32.xlu0 %v753, 96
      %v1216 = vpop.permute.xlu0 %1215
      %1217 = vrot.lane.b32.xlu0 %v754, 96
      %v1218 = vpop.permute.xlu0 %1217
      %1219 = vrot.lane.b32.xlu0 %v755, 96
      %v1220 = vpop.permute.xlu0 %1219
      %1221 = vrot.lane.b32.xlu0 %v756, 96
      %v1222 = vpop.permute.xlu0 %1221
      %1223 = vrot.lane.b32.xlu0 %v757, 96
      %v1224 = vpop.permute.xlu0 %1223
      %1233 = vrot.lane.b32.xlu0 %v758, 96
      %v1234 = vpop.permute.xlu0 %1233
      %1235 = vrot.lane.b32.xlu0 %v759, 96
      %v1236 = vpop.permute.xlu0 %1235
      %1237 = vrot.lane.b32.xlu0 %v760, 96
      %v1238 = vpop.permute.xlu0 %1237
      %1239 = vrot.lane.b32.xlu0 %v761, 96
      %v1240 = vpop.permute.xlu0 %1239
      %1241 = vrot.lane.b32.xlu0 %v762, 96
      %v1242 = vpop.permute.xlu0 %1241
      %1243 = vrot.lane.b32.xlu0 %v763, 96
      %v1244 = vpop.permute.xlu0 %1243
      %1245 = vrot.lane.b32.xlu0 %v764, 96
      %v1246 = vpop.permute.xlu0 %1245
      %1247 = vrot.lane.b32.xlu0 %v765, 96
      %v1248 = vpop.permute.xlu0 %1247
      %v1250 = vsel %vm774, %v1210, 0
      %v1253 = vsel %vm774, %v1212, 0
      %v1256 = vsel %vm774, %v1214, 0
      %v1259 = vsel %vm774, %v1216, 0
      %v1262 = vsel %vm774, %v1218, 0
      %v1265 = vsel %vm774, %v1220, 0
      %v1268 = vsel %vm774, %v1222, 0
      %v1271 = vsel %vm774, %v1224, 0
      %v1274 = vsel %vm774, %v1234, 0
      %v1277 = vsel %vm774, %v1236, 0
      %v1280 = vsel %vm774, %v1238, 0
      %v1283 = vsel %vm774, %v1240, 0
      %v1286 = vsel %vm774, %v1242, 0
      %v1289 = vsel %vm774, %v1244, 0
      %v1292 = vsel %vm774, %v1246, 0
      %v1295 = vsel %vm774, %v1248, 0
      %1297 = vmatprep.subr.bf16.mxu0 0
      %1298 = vmatpush1.bf16.xpose.msra.mxu0 %v1274
      %1299 = vmatprep.subr.bf16.mxu0 0
      %1300 = vmatpush1.bf16.xpose.msra.mxu0 %v1277
      %1301 = vmatprep.subr.bf16.mxu0 0
      %1302 = vmatpush1.bf16.xpose.msra.mxu0 %v1280
      %1303 = vmatprep.subr.bf16.mxu0 0
      %1304 = vmatpush1.bf16.xpose.msra.mxu0 %v1283
      %1305 = vmatprep.subr.bf16.mxu0 0
      %1306 = vmatpush1.bf16.xpose.msra.mxu0 %v1286
      %1307 = vmatprep.subr.bf16.mxu0 0
      %1308 = vmatpush1.bf16.xpose.msra.mxu0 %v1289
      %1309 = vmatprep.subr.bf16.mxu0 0
      %1310 = vmatpush1.bf16.xpose.msra.mxu0 %v1292
      %1311 = vmatprep.subr.bf16.mxu0 0
      %1312 = vmatpush1.bf16.xpose.msra.mxu0 %v1295
      %1313 = vmatprep.subr.bf16.mxu0 0
      %1314 = vmatpush1.bf16.xpose.msra.mxu0 0
      %1315 = vmatprep.subr.bf16.mxu0 0
      %1316 = vmatpush1.bf16.xpose.msra.mxu0 0
      %1317 = vmatprep.subr.bf16.mxu0 0
      %1318 = vmatpush1.bf16.xpose.msra.mxu0 0
      %1319 = vmatprep.subr.bf16.mxu0 0
      %1320 = vmatpush1.bf16.xpose.msra.mxu0 0
      %1321 = vmatprep.subr.bf16.mxu0 0
      %1322 = vmatpush1.bf16.xpose.msra.mxu0 0
      %1323 = vmatprep.subr.bf16.mxu0 0
      %1324 = vmatpush1.bf16.xpose.msra.mxu0 0
      %1325 = vmatprep.subr.bf16.mxu0 0
      %1326 = vmatpush1.bf16.xpose.msra.mxu0 0
      %1327 = vmatprep.subr.bf16.mxu0 0
      %1328 = vmatpush1.bf16.xpose.msra.mxu0 0
      %1329 = vmatprep.mubr.bf16.mxu0 0
      %1330 = vmatmul.mubr.bf16.gmra.mrb[0].mxu0 %v1250
      %v1331 = vpop.f32.mrb[0].mxu0
      %v1332 = vadd.f32 0.0, %v1331
      %v1333 = vpop.f32.mrb[0].mxu0
      %v1334 = vpop.f32.mrb[0].mxu0
      %v1335 = vadd.f32 0.0, %v1334
      %v1336 = vpop.f32.mrb[0].mxu0
      %1337 = vmatprep.mubr.bf16.mxu0 0
      %1338 = vmatmul.mubr.bf16.gmra.mrb[0].mxu0 %v1253
      %v1339 = vpop.f32.mrb[0].mxu0
      %v1340 = vadd.f32 0.0, %v1339
      %v1341 = vpop.f32.mrb[0].mxu0
      %v1342 = vpop.f32.mrb[0].mxu0
      %v1343 = vadd.f32 0.0, %v1342
      %v1344 = vpop.f32.mrb[0].mxu0
      %1345 = vmatprep.mubr.bf16.mxu0 0
      %1346 = vmatmul.mubr.bf16.gmra.mrb[0].mxu0 %v1256
      %v1347 = vpop.f32.mrb[0].mxu0
      %v1348 = vadd.f32 0.0, %v1347
      %v1349 = vpop.f32.mrb[0].mxu0
      %v1350 = vpop.f32.mrb[0].mxu0
      %v1351 = vadd.f32 0.0, %v1350
      %v1352 = vpop.f32.mrb[0].mxu0
      %1353 = vmatprep.mubr.bf16.mxu0 0
      %1354 = vmatmul.mubr.bf16.gmra.mrb[0].mxu0 %v1259
      %v1355 = vpop.f32.mrb[0].mxu0
      %v1356 = vadd.f32 0.0, %v1355
      %v1357 = vpop.f32.mrb[0].mxu0
      %v1358 = vpop.f32.mrb[0].mxu0
      %v1359 = vadd.f32 0.0, %v1358
      %v1360 = vpop.f32.mrb[0].mxu0
      %1361 = vmatprep.mubr.bf16.mxu0 0
      %1362 = vmatmul.mubr.bf16.gmra.mrb[0].mxu0 %v1262
      %v1363 = vpop.f32.mrb[0].mxu0
      %v1364 = vadd.f32 0.0, %v1363
      %v1365 = vpop.f32.mrb[0].mxu0
      %v1366 = vpop.f32.mrb[0].mxu0
      %v1367 = vadd.f32 0.0, %v1366
      %v1368 = vpop.f32.mrb[0].mxu0
      %1369 = vmatprep.mubr.bf16.mxu0 0
      %1370 = vmatmul.mubr.bf16.gmra.mrb[0].mxu0 %v1265
      %v1371 = vpop.f32.mrb[0].mxu0
      %v1372 = vadd.f32 0.0, %v1371
      %v1373 = vpop.f32.mrb[0].mxu0
      %v1374 = vpop.f32.mrb[0].mxu0
      %v1375 = vadd.f32 0.0, %v1374
      %v1376 = vpop.f32.mrb[0].mxu0
      %1377 = vmatprep.mubr.bf16.mxu0 0
      %1378 = vmatmul.mubr.bf16.gmra.mrb[0].mxu0 %v1268
      %v1379 = vpop.f32.mrb[0].mxu0
      %v1380 = vadd.f32 0.0, %v1379
      %v1381 = vpop.f32.mrb[0].mxu0
      %v1382 = vpop.f32.mrb[0].mxu0
      %v1383 = vadd.f32 0.0, %v1382
      %v1384 = vpop.f32.mrb[0].mxu0
      %1385 = vmatprep.mubr.bf16.mxu0 0
      %1386 = vmatmul.mubr.bf16.gmra.mrb[0].mxu0 %v1271
      %v1387 = vpop.f32.mrb[0].mxu0
      %v1388 = vadd.f32 0.0, %v1387
      %v1389 = vpop.f32.mrb[0].mxu0
      %v1390 = vpop.f32.mrb[0].mxu0
      %v1391 = vadd.f32 0.0, %v1390
      %v1392 = vpop.f32.mrb[0].mxu0
      %1393 = vdwg.mxu0
      %v1394 = vmul.f32 %v1332, 0.17677669
      %v1395 = vmul.f32 %v1335, 0.17677669
      %v1396 = vmul.f32 %v1340, 0.17677669
      %v1397 = vmul.f32 %v1343, 0.17677669
      %v1398 = vmul.f32 %v1348, 0.17677669
      %v1399 = vmul.f32 %v1351, 0.17677669
      %v1400 = vmul.f32 %v1356, 0.17677669
      %v1401 = vmul.f32 %v1359, 0.17677669
      %v1402 = vmul.f32 %v1364, 0.17677669
      %v1403 = vmul.f32 %v1367, 0.17677669
      %v1404 = vmul.f32 %v1372, 0.17677669
      %v1405 = vmul.f32 %v1375, 0.17677669
      %v1406 = vmul.f32 %v1380, 0.17677669
      %v1407 = vmul.f32 %v1383, 0.17677669
      %v1408 = vmul.f32 %v1388, 0.17677669
      %v1409 = vmul.f32 %v1391, 0.17677669
      %1410 = vmax.xlane.f32.xlu0 %v1394
      %v1411 = vpop.xlane.xlu0 %1410
      %1412 = vmax.xlane.f32.xlu0 %v1395
      %v1413 = vpop.xlane.xlu0 %1412
      %1414 = vmax.xlane.f32.xlu0 %v1396
      %v1415 = vpop.xlane.xlu0 %1414
      %1416 = vmax.xlane.f32.xlu0 %v1397
      %v1417 = vpop.xlane.xlu0 %1416
      %1418 = vmax.xlane.f32.xlu0 %v1398
      %v1419 = vpop.xlane.xlu0 %1418
      %1420 = vmax.xlane.f32.xlu0 %v1399
      %v1421 = vpop.xlane.xlu0 %1420
      %1422 = vmax.xlane.f32.xlu0 %v1400
      %v1423 = vpop.xlane.xlu0 %1422
      %1424 = vmax.xlane.f32.xlu0 %v1401
      %v1425 = vpop.xlane.xlu0 %1424
      %1426 = vmax.xlane.f32.xlu0 %v1402
      %v1427 = vpop.xlane.xlu0 %1426
      %1428 = vmax.xlane.f32.xlu0 %v1403
      %v1429 = vpop.xlane.xlu0 %1428
      %1430 = vmax.xlane.f32.xlu0 %v1404
      %v1431 = vpop.xlane.xlu0 %1430
      %1432 = vmax.xlane.f32.xlu0 %v1405
      %v1433 = vpop.xlane.xlu0 %1432
      %1434 = vmax.xlane.f32.xlu0 %v1406
      %v1435 = vpop.xlane.xlu0 %1434
      %1436 = vmax.xlane.f32.xlu0 %v1407
      %v1437 = vpop.xlane.xlu0 %1436
      %1438 = vmax.xlane.f32.xlu0 %v1408
      %v1439 = vpop.xlane.xlu0 %1438
      %1440 = vmax.xlane.f32.xlu0 %v1409
      %v1441 = vpop.xlane.xlu0 %1440
      %v1442 = vsub.f32 %v1394, %v1411
      %v1443 = vsub.f32 %v1395, %v1413
      %v1444 = vsub.f32 %v1396, %v1415
      %v1445 = vsub.f32 %v1397, %v1417
      %v1446 = vsub.f32 %v1398, %v1419
      %v1447 = vsub.f32 %v1399, %v1421
      %v1448 = vsub.f32 %v1400, %v1423
      %v1449 = vsub.f32 %v1401, %v1425
      %v1450 = vsub.f32 %v1402, %v1427
      %v1451 = vsub.f32 %v1403, %v1429
      %v1452 = vsub.f32 %v1404, %v1431
      %v1453 = vsub.f32 %v1405, %v1433
      %v1454 = vsub.f32 %v1406, %v1435
      %v1455 = vsub.f32 %v1407, %v1437
      %v1456 = vsub.f32 %v1408, %v1439
      %v1457 = vsub.f32 %v1409, %v1441
      %v1458 = vmul.f32 %v1442, 1.442695
      %v1459 = vpow.pop %v1458
      %v1460 = vmul.f32 %v1443, 1.442695
      %v1461 = vpow.pop %v1460
      %v1462 = vmul.f32 %v1444, 1.442695
      %v1463 = vpow.pop %v1462
      %v1464 = vmul.f32 %v1445, 1.442695
      %v1465 = vpow.pop %v1464
      %v1466 = vmul.f32 %v1446, 1.442695
      %v1467 = vpow.pop %v1466
      %v1468 = vmul.f32 %v1447, 1.442695
      %v1469 = vpow.pop %v1468
      %v1470 = vmul.f32 %v1448, 1.442695
      %v1471 = vpow.pop %v1470
      %v1472 = vmul.f32 %v1449, 1.442695
      %v1473 = vpow.pop %v1472
      %v1474 = vmul.f32 %v1450, 1.442695
      %v1475 = vpow.pop %v1474
      %v1476 = vmul.f32 %v1451, 1.442695
      %v1477 = vpow.pop %v1476
      %v1478 = vmul.f32 %v1452, 1.442695
      %v1479 = vpow.pop %v1478
      %v1480 = vmul.f32 %v1453, 1.442695
      %v1481 = vpow.pop %v1480
      %v1482 = vmul.f32 %v1454, 1.442695
      %v1483 = vpow.pop %v1482
      %v1484 = vmul.f32 %v1455, 1.442695
      %v1485 = vpow.pop %v1484
      %v1486 = vmul.f32 %v1456, 1.442695
      %v1487 = vpow.pop %v1486
      %v1488 = vmul.f32 %v1457, 1.442695
      %v1489 = vpow.pop %v1488
      %1490 = vadd.xlane.f32.xlu0 %v1459
      %v1491 = vpop.xlane.xlu0 %1490
      %1492 = vadd.xlane.f32.xlu0 %v1461
      %v1493 = vpop.xlane.xlu0 %1492
      %1494 = vadd.xlane.f32.xlu0 %v1463
      %v1495 = vpop.xlane.xlu0 %1494
      %1496 = vadd.xlane.f32.xlu0 %v1465
      %v1497 = vpop.xlane.xlu0 %1496
      %1498 = vadd.xlane.f32.xlu0 %v1467
      %v1499 = vpop.xlane.xlu0 %1498
      %1500 = vadd.xlane.f32.xlu0 %v1469
      %v1501 = vpop.xlane.xlu0 %1500
      %1502 = vadd.xlane.f32.xlu0 %v1471
      %v1503 = vpop.xlane.xlu0 %1502
      %1504 = vadd.xlane.f32.xlu0 %v1473
      %v1505 = vpop.xlane.xlu0 %1504
      %1506 = vadd.xlane.f32.xlu0 %v1475
      %v1507 = vpop.xlane.xlu0 %1506
      %1508 = vadd.xlane.f32.xlu0 %v1477
      %v1509 = vpop.xlane.xlu0 %1508
      %1510 = vadd.xlane.f32.xlu0 %v1479
      %v1511 = vpop.xlane.xlu0 %1510
      %1512 = vadd.xlane.f32.xlu0 %v1481
      %v1513 = vpop.xlane.xlu0 %1512
      %1514 = vadd.xlane.f32.xlu0 %v1483
      %v1515 = vpop.xlane.xlu0 %1514
      %1516 = vadd.xlane.f32.xlu0 %v1485
      %v1517 = vpop.xlane.xlu0 %1516
      %1518 = vadd.xlane.f32.xlu0 %v1487
      %v1519 = vpop.xlane.xlu0 %1518
      %1520 = vadd.xlane.f32.xlu0 %v1489
      %v1521 = vpop.xlane.xlu0 %1520
      %v1522 = vrcp.pop %v1491
      %v1523 = vrcp.pop %v1493
      %v1524 = vrcp.pop %v1495
      %v1525 = vrcp.pop %v1497
      %v1526 = vrcp.pop %v1499
      %v1527 = vrcp.pop %v1501
      %v1528 = vrcp.pop %v1503
      %v1529 = vrcp.pop %v1505
      %v1530 = vrcp.pop %v1507
      %v1531 = vrcp.pop %v1509
      %v1532 = vrcp.pop %v1511
      %v1533 = vrcp.pop %v1513
      %v1534 = vrcp.pop %v1515
      %v1535 = vrcp.pop %v1517
      %v1536 = vrcp.pop %v1519
      %v1537 = vrcp.pop %v1521
      %v1538 = vmul.f32 %v1459, %v1522
      %v1539 = vmul.f32 %v1461, %v1523
      %v1540 = vmul.f32 %v1463, %v1524
      %v1541 = vmul.f32 %v1465, %v1525
      %v1542 = vmul.f32 %v1467, %v1526
      %v1543 = vmul.f32 %v1469, %v1527
      %v1544 = vmul.f32 %v1471, %v1528
      %v1545 = vmul.f32 %v1473, %v1529
      %v1546 = vmul.f32 %v1475, %v1530
      %v1547 = vmul.f32 %v1477, %v1531
      %v1548 = vmul.f32 %v1479, %v1532
      %v1549 = vmul.f32 %v1481, %v1533
      %v1550 = vmul.f32 %v1483, %v1534
      %v1551 = vmul.f32 %v1485, %v1535
      %v1552 = vmul.f32 %v1487, %v1536
      %v1553 = vmul.f32 %v1489, %v1537
      %v1554 = vpack.c.bf16 %v1539, %v1538
      %v1555 = vpack.c.bf16 %v1541, %v1540
      %v1556 = vpack.c.bf16 %v1543, %v1542
      %v1557 = vpack.c.bf16 %v1545, %v1544
      %v1558 = vpack.c.bf16 %v1547, %v1546
      %v1559 = vpack.c.bf16 %v1549, %v1548
      %v1560 = vpack.c.bf16 %v1551, %v1550
      %v1561 = vpack.c.bf16 %v1553, %v1552
      %1570 = vrot.lane.b32.xlu0 %v766, 96
      %v1571 = vpop.permute.xlu0 %1570
      %1572 = vrot.lane.b32.xlu0 %v767, 96
      %v1573 = vpop.permute.xlu0 %1572
      %1574 = vrot.lane.b32.xlu0 %v768, 96
      %v1575 = vpop.permute.xlu0 %1574
      %1576 = vrot.lane.b32.xlu0 %v769, 96
      %v1577 = vpop.permute.xlu0 %1576
      %1578 = vrot.lane.b32.xlu0 %v770, 96
      %v1579 = vpop.permute.xlu0 %1578
      %1580 = vrot.lane.b32.xlu0 %v771, 96
      %v1581 = vpop.permute.xlu0 %1580
      %1582 = vrot.lane.b32.xlu0 %v772, 96
      %v1583 = vpop.permute.xlu0 %1582
      %1584 = vrot.lane.b32.xlu0 %v773, 96
      %v1585 = vpop.permute.xlu0 %1584
      %1594 = vmatprep.subr.bf16.mxu0 0
      %1595 = vmatpush1.bf16.msra.mxu0 %v1571
      %1596 = vmatprep.subr.bf16.mxu0 0
      %1597 = vmatpush1.bf16.msra.mxu0 %v1573
      %1598 = vmatprep.subr.bf16.mxu0 0
      %1599 = vmatpush1.bf16.msra.mxu0 %v1575
      %1600 = vmatprep.subr.bf16.mxu0 0
      %1601 = vmatpush1.bf16.msra.mxu0 %v1577
      %1602 = vmatprep.subr.bf16.mxu0 0
      %1603 = vmatpush1.bf16.msra.mxu0 %v1579
      %1604 = vmatprep.subr.bf16.mxu0 0
      %1605 = vmatpush1.bf16.msra.mxu0 %v1581
      %1606 = vmatprep.subr.bf16.mxu0 0
      %1607 = vmatpush1.bf16.msra.mxu0 %v1583
      %1608 = vmatprep.subr.bf16.mxu0 0
      %1609 = vmatpush1.bf16.msra.mxu0 %v1585
      %1610 = vmatprep.subr.bf16.mxu0 0
      %1611 = vmatpush1.bf16.msra.mxu0 0
      %1612 = vmatprep.subr.bf16.mxu0 0
      %1613 = vmatpush1.bf16.msra.mxu0 0
      %1614 = vmatprep.subr.bf16.mxu0 0
      %1615 = vmatpush1.bf16.msra.mxu0 0
      %1616 = vmatprep.subr.bf16.mxu0 0
      %1617 = vmatpush1.bf16.msra.mxu0 0
      %1618 = vmatprep.subr.bf16.mxu0 0
      %1619 = vmatpush1.bf16.msra.mxu0 0
      %1620 = vmatprep.subr.bf16.mxu0 0
      %1621 = vmatpush1.bf16.msra.mxu0 0
      %1622 = vmatprep.subr.bf16.mxu0 0
      %1623 = vmatpush1.bf16.msra.mxu0 0
      %1624 = vmatprep.subr.bf16.mxu0 0
      %1625 = vmatpush1.bf16.msra.mxu0 0
      %1626 = vmatprep.mubr.bf16.mxu0 0
      %1627 = vmatmul.mubr.bf16.gmra.mrb[0].mxu0 %v1554
      %v1628 = vpop.f32.mrb[0].mxu0
      %v1629 = vadd.f32 0.0, %v1628
      %v1630 = vpop.f32.mrb[0].mxu0
      %v1631 = vpop.f32.mrb[0].mxu0
      %v1632 = vadd.f32 0.0, %v1631
      %v1633 = vpop.f32.mrb[0].mxu0
      %1634 = vmatprep.mubr.bf16.mxu0 0
      %1635 = vmatmul.mubr.bf16.gmra.mrb[0].mxu0 %v1555
      %v1636 = vpop.f32.mrb[0].mxu0
      %v1637 = vadd.f32 0.0, %v1636
      %v1638 = vpop.f32.mrb[0].mxu0
      %v1639 = vpop.f32.mrb[0].mxu0
      %v1640 = vadd.f32 0.0, %v1639
      %v1641 = vpop.f32.mrb[0].mxu0
      %1642 = vmatprep.mubr.bf16.mxu0 0
      %1643 = vmatmul.mubr.bf16.gmra.mrb[0].mxu0 %v1556
      %v1644 = vpop.f32.mrb[0].mxu0
      %v1645 = vadd.f32 0.0, %v1644
      %v1646 = vpop.f32.mrb[0].mxu0
      %v1647 = vpop.f32.mrb[0].mxu0
      %v1648 = vadd.f32 0.0, %v1647
      %v1649 = vpop.f32.mrb[0].mxu0
      %1650 = vmatprep.mubr.bf16.mxu0 0
      %1651 = vmatmul.mubr.bf16.gmra.mrb[0].mxu0 %v1557
      %v1652 = vpop.f32.mrb[0].mxu0
      %v1653 = vadd.f32 0.0, %v1652
      %v1654 = vpop.f32.mrb[0].mxu0
      %v1655 = vpop.f32.mrb[0].mxu0
      %v1656 = vadd.f32 0.0, %v1655
      %v1657 = vpop.f32.mrb[0].mxu0
      %1658 = vmatprep.mubr.bf16.mxu0 0
      %1659 = vmatmul.mubr.bf16.gmra.mrb[0].mxu0 %v1558
      %v1660 = vpop.f32.mrb[0].mxu0
      %v1661 = vadd.f32 0.0, %v1660
      %v1662 = vpop.f32.mrb[0].mxu0
      %v1663 = vpop.f32.mrb[0].mxu0
      %v1664 = vadd.f32 0.0, %v1663
      %v1665 = vpop.f32.mrb[0].mxu0
      %1666 = vmatprep.mubr.bf16.mxu0 0
      %1667 = vmatmul.mubr.bf16.gmra.mrb[0].mxu0 %v1559
      %v1668 = vpop.f32.mrb[0].mxu0
      %v1669 = vadd.f32 0.0, %v1668
      %v1670 = vpop.f32.mrb[0].mxu0
      %v1671 = vpop.f32.mrb[0].mxu0
      %v1672 = vadd.f32 0.0, %v1671
      %v1673 = vpop.f32.mrb[0].mxu0
      %1674 = vmatprep.mubr.bf16.mxu0 0
      %1675 = vmatmul.mubr.bf16.gmra.mrb[0].mxu0 %v1560
      %v1676 = vpop.f32.mrb[0].mxu0
      %v1677 = vadd.f32 0.0, %v1676
      %v1678 = vpop.f32.mrb[0].mxu0
      %v1679 = vpop.f32.mrb[0].mxu0
      %v1680 = vadd.f32 0.0, %v1679
      %v1681 = vpop.f32.mrb[0].mxu0
      %1682 = vmatprep.mubr.bf16.mxu0 0
      %1683 = vmatmul.mubr.bf16.gmra.mrb[0].mxu0 %v1561
      %v1684 = vpop.f32.mrb[0].mxu0
      %v1685 = vadd.f32 0.0, %v1684
      %v1686 = vpop.f32.mrb[0].mxu0
      %v1687 = vpop.f32.mrb[0].mxu0
      %v1688 = vadd.f32 0.0, %v1687
      %v1689 = vpop.f32.mrb[0].mxu0
      %1690 = vdwg.mxu0
      %1707 = vrot.lane.b32.xlu0 %v1629, 32
      %v1708 = vpop.permute.xlu0 %1707
      %1709 = vrot.lane.b32.xlu0 %v1632, 32
      %v1710 = vpop.permute.xlu0 %1709
      %1711 = vrot.lane.b32.xlu0 %v1637, 32
      %v1712 = vpop.permute.xlu0 %1711
      %1713 = vrot.lane.b32.xlu0 %v1640, 32
      %v1714 = vpop.permute.xlu0 %1713
      %1715 = vrot.lane.b32.xlu0 %v1645, 32
      %v1716 = vpop.permute.xlu0 %1715
      %1717 = vrot.lane.b32.xlu0 %v1648, 32
      %v1718 = vpop.permute.xlu0 %1717
      %1719 = vrot.lane.b32.xlu0 %v1653, 32
      %v1720 = vpop.permute.xlu0 %1719
      %1721 = vrot.lane.b32.xlu0 %v1656, 32
      %v1722 = vpop.permute.xlu0 %1721
      %1723 = vrot.lane.b32.xlu0 %v1661, 32
      %v1724 = vpop.permute.xlu0 %1723
      %1725 = vrot.lane.b32.xlu0 %v1664, 32
      %v1726 = vpop.permute.xlu0 %1725
      %1727 = vrot.lane.b32.xlu0 %v1669, 32
      %v1728 = vpop.permute.xlu0 %1727
      %1729 = vrot.lane.b32.xlu0 %v1672, 32
      %v1730 = vpop.permute.xlu0 %1729
      %1731 = vrot.lane.b32.xlu0 %v1677, 32
      %v1732 = vpop.permute.xlu0 %1731
      %1733 = vrot.lane.b32.xlu0 %v1680, 32
      %v1734 = vpop.permute.xlu0 %1733
      %1735 = vrot.lane.b32.xlu0 %v1685, 32
      %v1736 = vpop.permute.xlu0 %1735
      %1737 = vrot.lane.b32.xlu0 %v1688, 32
      %v1738 = vpop.permute.xlu0 %1737
      %vm1755 = vcmask 523520
      %1756 = vst.msk [vmem:[#allocation2] sm:$0xff] %vm1755, %v1708
      %1757 = vst.msk [vmem:[#allocation2 + $0x8] sm:$0xff] %vm1755, %v1710
      %1758 = vst.msk [vmem:[#allocation2 + $0x10] sm:$0xff] %vm1755, %v1712
      %1759 = vst.msk [vmem:[#allocation2 + $0x18] sm:$0xff] %vm1755, %v1714
      %1760 = vst.msk [vmem:[#allocation2 + $0x20] sm:$0xff] %vm1755, %v1716
      %1761 = vst.msk [vmem:[#allocation2 + $0x28] sm:$0xff] %vm1755, %v1718
      %1762 = vst.msk [vmem:[#allocation2 + $0x30] sm:$0xff] %vm1755, %v1720
      %1763 = vst.msk [vmem:[#allocation2 + $0x38] sm:$0xff] %vm1755, %v1722
      %1764 = vst.msk [vmem:[#allocation2 + $0x40] sm:$0xff] %vm1755, %v1724
      %1765 = vst.msk [vmem:[#allocation2 + $0x48] sm:$0xff] %vm1755, %v1726
      %1766 = vst.msk [vmem:[#allocation2 + $0x50] sm:$0xff] %vm1755, %v1728
      %1767 = vst.msk [vmem:[#allocation2 + $0x58] sm:$0xff] %vm1755, %v1730
      %1768 = vst.msk [vmem:[#allocation2 + $0x60] sm:$0xff] %vm1755, %v1732
      %1769 = vst.msk [vmem:[#allocation2 + $0x68] sm:$0xff] %vm1755, %v1734
      %1770 = vst.msk [vmem:[#allocation2 + $0x70] sm:$0xff] %vm1755, %v1736
      %1771 = vst.msk [vmem:[#allocation2 + $0x78] sm:$0xff] %vm1755, %v1738
      %1772 = vrot.lane.b32.xlu0 %v750, 64
      %v1773 = vpop.permute.xlu0 %1772
      %1774 = vrot.lane.b32.xlu0 %v751, 64
      %v1775 = vpop.permute.xlu0 %1774
      %1776 = vrot.lane.b32.xlu0 %v752, 64
      %v1777 = vpop.permute.xlu0 %1776
      %1778 = vrot.lane.b32.xlu0 %v753, 64
      %v1779 = vpop.permute.xlu0 %1778
      %1780 = vrot.lane.b32.xlu0 %v754, 64
      %v1781 = vpop.permute.xlu0 %1780
      %1782 = vrot.lane.b32.xlu0 %v755, 64
      %v1783 = vpop.permute.xlu0 %1782
      %1784 = vrot.lane.b32.xlu0 %v756, 64
      %v1785 = vpop.permute.xlu0 %1784
      %1786 = vrot.lane.b32.xlu0 %v757, 64
      %v1787 = vpop.permute.xlu0 %1786
      %1788 = vrot.lane.b32.xlu0 %v758, 64
      %v1789 = vpop.permute.xlu0 %1788
      %1790 = vrot.lane.b32.xlu0 %v759, 64
      %v1791 = vpop.permute.xlu0 %1790
      %1792 = vrot.lane.b32.xlu0 %v760, 64
      %v1793 = vpop.permute.xlu0 %1792
      %1794 = vrot.lane.b32.xlu0 %v761, 64
      %v1795 = vpop.permute.xlu0 %1794
      %1796 = vrot.lane.b32.xlu0 %v762, 64
      %v1797 = vpop.permute.xlu0 %1796
      %1798 = vrot.lane.b32.xlu0 %v763, 64
      %v1799 = vpop.permute.xlu0 %1798
      %1800 = vrot.lane.b32.xlu0 %v764, 64
      %v1801 = vpop.permute.xlu0 %1800
      %1802 = vrot.lane.b32.xlu0 %v765, 64
      %v1803 = vpop.permute.xlu0 %1802
      %v1805 = vsel %vm774, %v1773, 0
      %v1808 = vsel %vm774, %v1775, 0
      %v1811 = vsel %vm774, %v1777, 0
      %v1814 = vsel %vm774, %v1779, 0
      %v1817 = vsel %vm774, %v1781, 0
      %v1820 = vsel %vm774, %v1783, 0
      %v1823 = vsel %vm774, %v1785, 0
      %v1826 = vsel %vm774, %v1787, 0
      %v1829 = vsel %vm774, %v1789, 0
      %v1832 = vsel %vm774, %v1791, 0
      %v1835 = vsel %vm774, %v1793, 0
      %v1838 = vsel %vm774, %v1795, 0
      %v1841 = vsel %vm774, %v1797, 0
      %v1844 = vsel %vm774, %v1799, 0
      %v1847 = vsel %vm774, %v1801, 0
      %v1850 = vsel %vm774, %v1803, 0
      %1852 = vmatprep.subr.bf16.mxu0 0
      %1853 = vmatpush1.bf16.xpose.msra.mxu0 %v1829
      %1854 = vmatprep.subr.bf16.mxu0 0
      %1855 = vmatpush1.bf16.xpose.msra.mxu0 %v1832
      %1856 = vmatprep.subr.bf16.mxu0 0
      %1857 = vmatpush1.bf16.xpose.msra.mxu0 %v1835
      %1858 = vmatprep.subr.bf16.mxu0 0
      %1859 = vmatpush1.bf16.xpose.msra.mxu0 %v1838
      %1860 = vmatprep.subr.bf16.mxu0 0
      %1861 = vmatpush1.bf16.xpose.msra.mxu0 %v1841
      %1862 = vmatprep.subr.bf16.mxu0 0
      %1863 = vmatpush1.bf16.xpose.msra.mxu0 %v1844
      %1864 = vmatprep.subr.bf16.mxu0 0
      %1865 = vmatpush1.bf16.xpose.msra.mxu0 %v1847
      %1866 = vmatprep.subr.bf16.mxu0 0
      %1867 = vmatpush1.bf16.xpose.msra.mxu0 %v1850
      %1868 = vmatprep.subr.bf16.mxu0 0
      %1869 = vmatpush1.bf16.xpose.msra.mxu0 0
      %1870 = vmatprep.subr.bf16.mxu0 0
      %1871 = vmatpush1.bf16.xpose.msra.mxu0 0
      %1872 = vmatprep.subr.bf16.mxu0 0
      %1873 = vmatpush1.bf16.xpose.msra.mxu0 0
      %1874 = vmatprep.subr.bf16.mxu0 0
      %1875 = vmatpush1.bf16.xpose.msra.mxu0 0
      %1876 = vmatprep.subr.bf16.mxu0 0
      %1877 = vmatpush1.bf16.xpose.msra.mxu0 0
      %1878 = vmatprep.subr.bf16.mxu0 0
      %1879 = vmatpush1.bf16.xpose.msra.mxu0 0
      %1880 = vmatprep.subr.bf16.mxu0 0
      %1881 = vmatpush1.bf16.xpose.msra.mxu0 0
      %1882 = vmatprep.subr.bf16.mxu0 0
      %1883 = vmatpush1.bf16.xpose.msra.mxu0 0
      %1884 = vmatprep.mubr.bf16.mxu0 0
      %1885 = vmatmul.mubr.bf16.gmra.mrb[0].mxu0 %v1805
      %v1886 = vpop.f32.mrb[0].mxu0
      %v1887 = vadd.f32 0.0, %v1886
      %v1888 = vpop.f32.mrb[0].mxu0
      %v1889 = vpop.f32.mrb[0].mxu0
      %v1890 = vadd.f32 0.0, %v1889
      %v1891 = vpop.f32.mrb[0].mxu0
      %1892 = vmatprep.mubr.bf16.mxu0 0
      %1893 = vmatmul.mubr.bf16.gmra.mrb[0].mxu0 %v1808
      %v1894 = vpop.f32.mrb[0].mxu0
      %v1895 = vadd.f32 0.0, %v1894
      %v1896 = vpop.f32.mrb[0].mxu0
      %v1897 = vpop.f32.mrb[0].mxu0
      %v1898 = vadd.f32 0.0, %v1897
      %v1899 = vpop.f32.mrb[0].mxu0
      %1900 = vmatprep.mubr.bf16.mxu0 0
      %1901 = vmatmul.mubr.bf16.gmra.mrb[0].mxu0 %v1811
      %v1902 = vpop.f32.mrb[0].mxu0
      %v1903 = vadd.f32 0.0, %v1902
      %v1904 = vpop.f32.mrb[0].mxu0
      %v1905 = vpop.f32.mrb[0].mxu0
      %v1906 = vadd.f32 0.0, %v1905
      %v1907 = vpop.f32.mrb[0].mxu0
      %1908 = vmatprep.mubr.bf16.mxu0 0
      %1909 = vmatmul.mubr.bf16.gmra.mrb[0].mxu0 %v1814
      %v1910 = vpop.f32.mrb[0].mxu0
      %v1911 = vadd.f32 0.0, %v1910
      %v1912 = vpop.f32.mrb[0].mxu0
      %v1913 = vpop.f32.mrb[0].mxu0
      %v1914 = vadd.f32 0.0, %v1913
      %v1915 = vpop.f32.mrb[0].mxu0
      %1916 = vmatprep.mubr.bf16.mxu0 0
      %1917 = vmatmul.mubr.bf16.gmra.mrb[0].mxu0 %v1817
      %v1918 = vpop.f32.mrb[0].mxu0
      %v1919 = vadd.f32 0.0, %v1918
      %v1920 = vpop.f32.mrb[0].mxu0
      %v1921 = vpop.f32.mrb[0].mxu0
      %v1922 = vadd.f32 0.0, %v1921
      %v1923 = vpop.f32.mrb[0].mxu0
      %1924 = vmatprep.mubr.bf16.mxu0 0
      %1925 = vmatmul.mubr.bf16.gmra.mrb[0].mxu0 %v1820
      %v1926 = vpop.f32.mrb[0].mxu0
      %v1927 = vadd.f32 0.0, %v1926
      %v1928 = vpop.f32.mrb[0].mxu0
      %v1929 = vpop.f32.mrb[0].mxu0
      %v1930 = vadd.f32 0.0, %v1929
      %v1931 = vpop.f32.mrb[0].mxu0
      %1932 = vmatprep.mubr.bf16.mxu0 0
      %1933 = vmatmul.mubr.bf16.gmra.mrb[0].mxu0 %v1823
      %v1934 = vpop.f32.mrb[0].mxu0
      %v1935 = vadd.f32 0.0, %v1934
      %v1936 = vpop.f32.mrb[0].mxu0
      %v1937 = vpop.f32.mrb[0].mxu0
      %v1938 = vadd.f32 0.0, %v1937
      %v1939 = vpop.f32.mrb[0].mxu0
      %1940 = vmatprep.mubr.bf16.mxu0 0
      %1941 = vmatmul.mubr.bf16.gmra.mrb[0].mxu0 %v1826
      %v1942 = vpop.f32.mrb[0].mxu0
      %v1943 = vadd.f32 0.0, %v1942
      %v1944 = vpop.f32.mrb[0].mxu0
      %v1945 = vpop.f32.mrb[0].mxu0
      %v1946 = vadd.f32 0.0, %v1945
      %v1947 = vpop.f32.mrb[0].mxu0
      %1948 = vdwg.mxu0
      %v1949 = vmul.f32 %v1887, 0.17677669
      %v1950 = vmul.f32 %v1890, 0.17677669
      %v1951 = vmul.f32 %v1895, 0.17677669
      %v1952 = vmul.f32 %v1898, 0.17677669
      %v1953 = vmul.f32 %v1903, 0.17677669
      %v1954 = vmul.f32 %v1906, 0.17677669
      %v1955 = vmul.f32 %v1911, 0.17677669
      %v1956 = vmul.f32 %v1914, 0.17677669
      %v1957 = vmul.f32 %v1919, 0.17677669
      %v1958 = vmul.f32 %v1922, 0.17677669
      %v1959 = vmul.f32 %v1927, 0.17677669
      %v1960 = vmul.f32 %v1930, 0.17677669
      %v1961 = vmul.f32 %v1935, 0.17677669
      %v1962 = vmul.f32 %v1938, 0.17677669
      %v1963 = vmul.f32 %v1943, 0.17677669
      %v1964 = vmul.f32 %v1946, 0.17677669
      %1965 = vmax.xlane.f32.xlu0 %v1949
      %v1966 = vpop.xlane.xlu0 %1965
      %1967 = vmax.xlane.f32.xlu0 %v1950
      %v1968 = vpop.xlane.xlu0 %1967
      %1969 = vmax.xlane.f32.xlu0 %v1951
      %v1970 = vpop.xlane.xlu0 %1969
      %1971 = vmax.xlane.f32.xlu0 %v1952
      %v1972 = vpop.xlane.xlu0 %1971
      %1973 = vmax.xlane.f32.xlu0 %v1953
      %v1974 = vpop.xlane.xlu0 %1973
      %1975 = vmax.xlane.f32.xlu0 %v1954
      %v1976 = vpop.xlane.xlu0 %1975
      %1977 = vmax.xlane.f32.xlu0 %v1955
      %v1978 = vpop.xlane.xlu0 %1977
      %1979 = vmax.xlane.f32.xlu0 %v1956
      %v1980 = vpop.xlane.xlu0 %1979
      %1981 = vmax.xlane.f32.xlu0 %v1957
      %v1982 = vpop.xlane.xlu0 %1981
      %1983 = vmax.xlane.f32.xlu0 %v1958
      %v1984 = vpop.xlane.xlu0 %1983
      %1985 = vmax.xlane.f32.xlu0 %v1959
      %v1986 = vpop.xlane.xlu0 %1985
      %1987 = vmax.xlane.f32.xlu0 %v1960
      %v1988 = vpop.xlane.xlu0 %1987
      %1989 = vmax.xlane.f32.xlu0 %v1961
      %v1990 = vpop.xlane.xlu0 %1989
      %1991 = vmax.xlane.f32.xlu0 %v1962
      %v1992 = vpop.xlane.xlu0 %1991
      %1993 = vmax.xlane.f32.xlu0 %v1963
      %v1994 = vpop.xlane.xlu0 %1993
      %1995 = vmax.xlane.f32.xlu0 %v1964
      %v1996 = vpop.xlane.xlu0 %1995
      %v1997 = vsub.f32 %v1949, %v1966
      %v1998 = vsub.f32 %v1950, %v1968
      %v1999 = vsub.f32 %v1951, %v1970
      %v2000 = vsub.f32 %v1952, %v1972
      %v2001 = vsub.f32 %v1953, %v1974
      %v2002 = vsub.f32 %v1954, %v1976
      %v2003 = vsub.f32 %v1955, %v1978
      %v2004 = vsub.f32 %v1956, %v1980
      %v2005 = vsub.f32 %v1957, %v1982
      %v2006 = vsub.f32 %v1958, %v1984
      %v2007 = vsub.f32 %v1959, %v1986
      %v2008 = vsub.f32 %v1960, %v1988
      %v2009 = vsub.f32 %v1961, %v1990
      %v2010 = vsub.f32 %v1962, %v1992
      %v2011 = vsub.f32 %v1963, %v1994
      %v2012 = vsub.f32 %v1964, %v1996
      %v2013 = vmul.f32 %v1997, 1.442695
      %v2014 = vpow.pop %v2013
      %v2015 = vmul.f32 %v1998, 1.442695
      %v2016 = vpow.pop %v2015
      %v2017 = vmul.f32 %v1999, 1.442695
      %v2018 = vpow.pop %v2017
      %v2019 = vmul.f32 %v2000, 1.442695
      %v2020 = vpow.pop %v2019
      %v2021 = vmul.f32 %v2001, 1.442695
      %v2022 = vpow.pop %v2021
      %v2023 = vmul.f32 %v2002, 1.442695
      %v2024 = vpow.pop %v2023
      %v2025 = vmul.f32 %v2003, 1.442695
      %v2026 = vpow.pop %v2025
      %v2027 = vmul.f32 %v2004, 1.442695
      %v2028 = vpow.pop %v2027
      %v2029 = vmul.f32 %v2005, 1.442695
      %v2030 = vpow.pop %v2029
      %v2031 = vmul.f32 %v2006, 1.442695
      %v2032 = vpow.pop %v2031
      %v2033 = vmul.f32 %v2007, 1.442695
      %v2034 = vpow.pop %v2033
      %v2035 = vmul.f32 %v2008, 1.442695
      %v2036 = vpow.pop %v2035
      %v2037 = vmul.f32 %v2009, 1.442695
      %v2038 = vpow.pop %v2037
      %v2039 = vmul.f32 %v2010, 1.442695
      %v2040 = vpow.pop %v2039
      %v2041 = vmul.f32 %v2011, 1.442695
      %v2042 = vpow.pop %v2041
      %v2043 = vmul.f32 %v2012, 1.442695
      %v2044 = vpow.pop %v2043
      %2045 = vadd.xlane.f32.xlu0 %v2014
      %v2046 = vpop.xlane.xlu0 %2045
      %2047 = vadd.xlane.f32.xlu0 %v2016
      %v2048 = vpop.xlane.xlu0 %2047
      %2049 = vadd.xlane.f32.xlu0 %v2018
      %v2050 = vpop.xlane.xlu0 %2049
      %2051 = vadd.xlane.f32.xlu0 %v2020
      %v2052 = vpop.xlane.xlu0 %2051
      %2053 = vadd.xlane.f32.xlu0 %v2022
      %v2054 = vpop.xlane.xlu0 %2053
      %2055 = vadd.xlane.f32.xlu0 %v2024
      %v2056 = vpop.xlane.xlu0 %2055
      %2057 = vadd.xlane.f32.xlu0 %v2026
      %v2058 = vpop.xlane.xlu0 %2057
      %2059 = vadd.xlane.f32.xlu0 %v2028
      %v2060 = vpop.xlane.xlu0 %2059
      %2061 = vadd.xlane.f32.xlu0 %v2030
      %v2062 = vpop.xlane.xlu0 %2061
      %2063 = vadd.xlane.f32.xlu0 %v2032
      %v2064 = vpop.xlane.xlu0 %2063
      %2065 = vadd.xlane.f32.xlu0 %v2034
      %v2066 = vpop.xlane.xlu0 %2065
      %2067 = vadd.xlane.f32.xlu0 %v2036
      %v2068 = vpop.xlane.xlu0 %2067
      %2069 = vadd.xlane.f32.xlu0 %v2038
      %v2070 = vpop.xlane.xlu0 %2069
      %2071 = vadd.xlane.f32.xlu0 %v2040
      %v2072 = vpop.xlane.xlu0 %2071
      %2073 = vadd.xlane.f32.xlu0 %v2042
      %v2074 = vpop.xlane.xlu0 %2073
      %2075 = vadd.xlane.f32.xlu0 %v2044
      %v2076 = vpop.xlane.xlu0 %2075
      %v2077 = vrcp.pop %v2046
      %v2078 = vrcp.pop %v2048
      %v2079 = vrcp.pop %v2050
      %v2080 = vrcp.pop %v2052
      %v2081 = vrcp.pop %v2054
      %v2082 = vrcp.pop %v2056
      %v2083 = vrcp.pop %v2058
      %v2084 = vrcp.pop %v2060
      %v2085 = vrcp.pop %v2062
      %v2086 = vrcp.pop %v2064
      %v2087 = vrcp.pop %v2066
      %v2088 = vrcp.pop %v2068
      %v2089 = vrcp.pop %v2070
      %v2090 = vrcp.pop %v2072
      %v2091 = vrcp.pop %v2074
      %v2092 = vrcp.pop %v2076
      %v2093 = vmul.f32 %v2014, %v2077
      %v2094 = vmul.f32 %v2016, %v2078
      %v2095 = vmul.f32 %v2018, %v2079
      %v2096 = vmul.f32 %v2020, %v2080
      %v2097 = vmul.f32 %v2022, %v2081
      %v2098 = vmul.f32 %v2024, %v2082
      %v2099 = vmul.f32 %v2026, %v2083
      %v2100 = vmul.f32 %v2028, %v2084
      %v2101 = vmul.f32 %v2030, %v2085
      %v2102 = vmul.f32 %v2032, %v2086
      %v2103 = vmul.f32 %v2034, %v2087
      %v2104 = vmul.f32 %v2036, %v2088
      %v2105 = vmul.f32 %v2038, %v2089
      %v2106 = vmul.f32 %v2040, %v2090
      %v2107 = vmul.f32 %v2042, %v2091
      %v2108 = vmul.f32 %v2044, %v2092
      %v2109 = vpack.c.bf16 %v2094, %v2093
      %v2110 = vpack.c.bf16 %v2096, %v2095
      %v2111 = vpack.c.bf16 %v2098, %v2097
      %v2112 = vpack.c.bf16 %v2100, %v2099
      %v2113 = vpack.c.bf16 %v2102, %v2101
      %v2114 = vpack.c.bf16 %v2104, %v2103
      %v2115 = vpack.c.bf16 %v2106, %v2105
      %v2116 = vpack.c.bf16 %v2108, %v2107
      %2117 = vrot.lane.b32.xlu0 %v766, 64
      %v2118 = vpop.permute.xlu0 %2117
      %2119 = vrot.lane.b32.xlu0 %v767, 64
      %v2120 = vpop.permute.xlu0 %2119
      %2121 = vrot.lane.b32.xlu0 %v768, 64
      %v2122 = vpop.permute.xlu0 %2121
      %2123 = vrot.lane.b32.xlu0 %v769, 64
      %v2124 = vpop.permute.xlu0 %2123
      %2125 = vrot.lane.b32.xlu0 %v770, 64
      %v2126 = vpop.permute.xlu0 %2125
      %2127 = vrot.lane.b32.xlu0 %v771, 64
      %v2128 = vpop.permute.xlu0 %2127
      %2129 = vrot.lane.b32.xlu0 %v772, 64
      %v2130 = vpop.permute.xlu0 %2129
      %2131 = vrot.lane.b32.xlu0 %v773, 64
      %v2132 = vpop.permute.xlu0 %2131
      %2141 = vmatprep.subr.bf16.mxu0 0
      %2142 = vmatpush1.bf16.msra.mxu0 %v2118
      %2143 = vmatprep.subr.bf16.mxu0 0
      %2144 = vmatpush1.bf16.msra.mxu0 %v2120
      %2145 = vmatprep.subr.bf16.mxu0 0
      %2146 = vmatpush1.bf16.msra.mxu0 %v2122
      %2147 = vmatprep.subr.bf16.mxu0 0
      %2148 = vmatpush1.bf16.msra.mxu0 %v2124
      %2149 = vmatprep.subr.bf16.mxu0 0
      %2150 = vmatpush1.bf16.msra.mxu0 %v2126
      %2151 = vmatprep.subr.bf16.mxu0 0
      %2152 = vmatpush1.bf16.msra.mxu0 %v2128
      %2153 = vmatprep.subr.bf16.mxu0 0
      %2154 = vmatpush1.bf16.msra.mxu0 %v2130
      %2155 = vmatprep.subr.bf16.mxu0 0
      %2156 = vmatpush1.bf16.msra.mxu0 %v2132
      %2157 = vmatprep.subr.bf16.mxu0 0
      %2158 = vmatpush1.bf16.msra.mxu0 0
      %2159 = vmatprep.subr.bf16.mxu0 0
      %2160 = vmatpush1.bf16.msra.mxu0 0
      %2161 = vmatprep.subr.bf16.mxu0 0
      %2162 = vmatpush1.bf16.msra.mxu0 0
      %2163 = vmatprep.subr.bf16.mxu0 0
      %2164 = vmatpush1.bf16.msra.mxu0 0
      %2165 = vmatprep.subr.bf16.mxu0 0
      %2166 = vmatpush1.bf16.msra.mxu0 0
      %2167 = vmatprep.subr.bf16.mxu0 0
      %2168 = vmatpush1.bf16.msra.mxu0 0
      %2169 = vmatprep.subr.bf16.mxu0 0
      %2170 = vmatpush1.bf16.msra.mxu0 0
      %2171 = vmatprep.subr.bf16.mxu0 0
      %2172 = vmatpush1.bf16.msra.mxu0 0
      %2173 = vmatprep.mubr.bf16.mxu0 0
      %2174 = vmatmul.mubr.bf16.gmra.mrb[0].mxu0 %v2109
      %v2175 = vpop.f32.mrb[0].mxu0
      %v2176 = vadd.f32 0.0, %v2175
      %v2177 = vpop.f32.mrb[0].mxu0
      %v2178 = vpop.f32.mrb[0].mxu0
      %v2179 = vadd.f32 0.0, %v2178
      %v2180 = vpop.f32.mrb[0].mxu0
      %2181 = vmatprep.mubr.bf16.mxu0 0
      %2182 = vmatmul.mubr.bf16.gmra.mrb[0].mxu0 %v2110
      %v2183 = vpop.f32.mrb[0].mxu0
      %v2184 = vadd.f32 0.0, %v2183
      %v2185 = vpop.f32.mrb[0].mxu0
      %v2186 = vpop.f32.mrb[0].mxu0
      %v2187 = vadd.f32 0.0, %v2186
      %v2188 = vpop.f32.mrb[0].mxu0
      %2189 = vmatprep.mubr.bf16.mxu0 0
      %2190 = vmatmul.mubr.bf16.gmra.mrb[0].mxu0 %v2111
      %v2191 = vpop.f32.mrb[0].mxu0
      %v2192 = vadd.f32 0.0, %v2191
      %v2193 = vpop.f32.mrb[0].mxu0
      %v2194 = vpop.f32.mrb[0].mxu0
      %v2195 = vadd.f32 0.0, %v2194
      %v2196 = vpop.f32.mrb[0].mxu0
      %2197 = vmatprep.mubr.bf16.mxu0 0
      %2198 = vmatmul.mubr.bf16.gmra.mrb[0].mxu0 %v2112
      %v2199 = vpop.f32.mrb[0].mxu0
      %v2200 = vadd.f32 0.0, %v2199
      %v2201 = vpop.f32.mrb[0].mxu0
      %v2202 = vpop.f32.mrb[0].mxu0
      %v2203 = vadd.f32 0.0, %v2202
      %v2204 = vpop.f32.mrb[0].mxu0
      %2205 = vmatprep.mubr.bf16.mxu0 0
      %2206 = vmatmul.mubr.bf16.gmra.mrb[0].mxu0 %v2113
      %v2207 = vpop.f32.mrb[0].mxu0
      %v2208 = vadd.f32 0.0, %v2207
      %v2209 = vpop.f32.mrb[0].mxu0
      %v2210 = vpop.f32.mrb[0].mxu0
      %v2211 = vadd.f32 0.0, %v2210
      %v2212 = vpop.f32.mrb[0].mxu0
      %2213 = vmatprep.mubr.bf16.mxu0 0
      %2214 = vmatmul.mubr.bf16.gmra.mrb[0].mxu0 %v2114
      %v2215 = vpop.f32.mrb[0].mxu0
      %v2216 = vadd.f32 0.0, %v2215
      %v2217 = vpop.f32.mrb[0].mxu0
      %v2218 = vpop.f32.mrb[0].mxu0
      %v2219 = vadd.f32 0.0, %v2218
      %v2220 = vpop.f32.mrb[0].mxu0
      %2221 = vmatprep.mubr.bf16.mxu0 0
      %2222 = vmatmul.mubr.bf16.gmra.mrb[0].mxu0 %v2115
      %v2223 = vpop.f32.mrb[0].mxu0
      %v2224 = vadd.f32 0.0, %v2223
      %v2225 = vpop.f32.mrb[0].mxu0
      %v2226 = vpop.f32.mrb[0].mxu0
      %v2227 = vadd.f32 0.0, %v2226
      %v2228 = vpop.f32.mrb[0].mxu0
      %2229 = vmatprep.mubr.bf16.mxu0 0
      %2230 = vmatmul.mubr.bf16.gmra.mrb[0].mxu0 %v2116
      %v2231 = vpop.f32.mrb[0].mxu0
      %v2232 = vadd.f32 0.0, %v2231
      %v2233 = vpop.f32.mrb[0].mxu0
      %v2234 = vpop.f32.mrb[0].mxu0
      %v2235 = vadd.f32 0.0, %v2234
      %v2236 = vpop.f32.mrb[0].mxu0
      %2237 = vdwg.mxu0
      %2254 = vrot.lane.b32.xlu0 %v2176, 64
      %v2255 = vpop.permute.xlu0 %2254
      %2256 = vrot.lane.b32.xlu0 %v2179, 64
      %v2257 = vpop.permute.xlu0 %2256
      %2258 = vrot.lane.b32.xlu0 %v2184, 64
      %v2259 = vpop.permute.xlu0 %2258
      %2260 = vrot.lane.b32.xlu0 %v2187, 64
      %v2261 = vpop.permute.xlu0 %2260
      %2262 = vrot.lane.b32.xlu0 %v2192, 64
      %v2263 = vpop.permute.xlu0 %2262
      %2264 = vrot.lane.b32.xlu0 %v2195, 64
      %v2265 = vpop.permute.xlu0 %2264
      %2266 = vrot.lane.b32.xlu0 %v2200, 64
      %v2267 = vpop.permute.xlu0 %2266
      %2268 = vrot.lane.b32.xlu0 %v2203, 64
      %v2269 = vpop.permute.xlu0 %2268
      %2270 = vrot.lane.b32.xlu0 %v2208, 64
      %v2271 = vpop.permute.xlu0 %2270
      %2272 = vrot.lane.b32.xlu0 %v2211, 64
      %v2273 = vpop.permute.xlu0 %2272
      %2274 = vrot.lane.b32.xlu0 %v2216, 64
      %v2275 = vpop.permute.xlu0 %2274
      %2276 = vrot.lane.b32.xlu0 %v2219, 64
      %v2277 = vpop.permute.xlu0 %2276
      %2278 = vrot.lane.b32.xlu0 %v2224, 64
      %v2279 = vpop.permute.xlu0 %2278
      %2280 = vrot.lane.b32.xlu0 %v2227, 64
      %v2281 = vpop.permute.xlu0 %2280
      %2282 = vrot.lane.b32.xlu0 %v2232, 64
      %v2283 = vpop.permute.xlu0 %2282
      %2284 = vrot.lane.b32.xlu0 %v2235, 64
      %v2285 = vpop.permute.xlu0 %2284
      %vm2302 = vcmask 785920
      %2303 = vst.msk [vmem:[#allocation2] sm:$0xff] %vm2302, %v2255
      %2304 = vst.msk [vmem:[#allocation2 + $0x8] sm:$0xff] %vm2302, %v2257
      %2305 = vst.msk [vmem:[#allocation2 + $0x10] sm:$0xff] %vm2302, %v2259
      %2306 = vst.msk [vmem:[#allocation2 + $0x18] sm:$0xff] %vm2302, %v2261
      %2307 = vst.msk [vmem:[#allocation2 + $0x20] sm:$0xff] %vm2302, %v2263
      %2308 = vst.msk [vmem:[#allocation2 + $0x28] sm:$0xff] %vm2302, %v2265
      %2309 = vst.msk [vmem:[#allocation2 + $0x30] sm:$0xff] %vm2302, %v2267
      %2310 = vst.msk [vmem:[#allocation2 + $0x38] sm:$0xff] %vm2302, %v2269
      %2311 = vst.msk [vmem:[#allocation2 + $0x40] sm:$0xff] %vm2302, %v2271
      %2312 = vst.msk [vmem:[#allocation2 + $0x48] sm:$0xff] %vm2302, %v2273
      %2313 = vst.msk [vmem:[#allocation2 + $0x50] sm:$0xff] %vm2302, %v2275
      %2314 = vst.msk [vmem:[#allocation2 + $0x58] sm:$0xff] %vm2302, %v2277
      %2315 = vst.msk [vmem:[#allocation2 + $0x60] sm:$0xff] %vm2302, %v2279
      %2316 = vst.msk [vmem:[#allocation2 + $0x68] sm:$0xff] %vm2302, %v2281
      %2317 = vst.msk [vmem:[#allocation2 + $0x70] sm:$0xff] %vm2302, %v2283
      %2318 = vst.msk [vmem:[#allocation2 + $0x78] sm:$0xff] %vm2302, %v2285
      %2319 = vrot.lane.b32.xlu0 %v750, 32
      %v2320 = vpop.permute.xlu0 %2319
      %2321 = vrot.lane.b32.xlu0 %v751, 32
      %v2322 = vpop.permute.xlu0 %2321
      %2323 = vrot.lane.b32.xlu0 %v752, 32
      %v2324 = vpop.permute.xlu0 %2323
      %2325 = vrot.lane.b32.xlu0 %v753, 32
      %v2326 = vpop.permute.xlu0 %2325
      %2327 = vrot.lane.b32.xlu0 %v754, 32
      %v2328 = vpop.permute.xlu0 %2327
      %2329 = vrot.lane.b32.xlu0 %v755, 32
      %v2330 = vpop.permute.xlu0 %2329
      %2331 = vrot.lane.b32.xlu0 %v756, 32
      %v2332 = vpop.permute.xlu0 %2331
      %2333 = vrot.lane.b32.xlu0 %v757, 32
      %v2334 = vpop.permute.xlu0 %2333
      %2335 = vrot.lane.b32.xlu0 %v758, 32
      %v2336 = vpop.permute.xlu0 %2335
      %2337 = vrot.lane.b32.xlu0 %v759, 32
      %v2338 = vpop.permute.xlu0 %2337
      %2339 = vrot.lane.b32.xlu0 %v760, 32
      %v2340 = vpop.permute.xlu0 %2339
      %2341 = vrot.lane.b32.xlu0 %v761, 32
      %v2342 = vpop.permute.xlu0 %2341
      %2343 = vrot.lane.b32.xlu0 %v762, 32
      %v2344 = vpop.permute.xlu0 %2343
      %2345 = vrot.lane.b32.xlu0 %v763, 32
      %v2346 = vpop.permute.xlu0 %2345
      %2347 = vrot.lane.b32.xlu0 %v764, 32
      %v2348 = vpop.permute.xlu0 %2347
      %2349 = vrot.lane.b32.xlu0 %v765, 32
      %v2350 = vpop.permute.xlu0 %2349
      %v2352 = vsel %vm774, %v2320, 0
      %v2355 = vsel %vm774, %v2322, 0
      %v2358 = vsel %vm774, %v2324, 0
      %v2361 = vsel %vm774, %v2326, 0
      %v2364 = vsel %vm774, %v2328, 0
      %v2367 = vsel %vm774, %v2330, 0
      %v2370 = vsel %vm774, %v2332, 0
      %v2373 = vsel %vm774, %v2334, 0
      %v2376 = vsel %vm774, %v2336, 0
      %v2379 = vsel %vm774, %v2338, 0
      %v2382 = vsel %vm774, %v2340, 0
      %v2385 = vsel %vm774, %v2342, 0
      %v2388 = vsel %vm774, %v2344, 0
      %v2391 = vsel %vm774, %v2346, 0
      %v2394 = vsel %vm774, %v2348, 0
      %v2397 = vsel %vm774, %v2350, 0
      %2399 = vmatprep.subr.bf16.mxu0 0
      %2400 = vmatpush1.bf16.xpose.msra.mxu0 %v2376
      %2401 = vmatprep.subr.bf16.mxu0 0
      %2402 = vmatpush1.bf16.xpose.msra.mxu0 %v2379
      %2403 = vmatprep.subr.bf16.mxu0 0
      %2404 = vmatpush1.bf16.xpose.msra.mxu0 %v2382
      %2405 = vmatprep.subr.bf16.mxu0 0
      %2406 = vmatpush1.bf16.xpose.msra.mxu0 %v2385
      %2407 = vmatprep.subr.bf16.mxu0 0
      %2408 = vmatpush1.bf16.xpose.msra.mxu0 %v2388
      %2409 = vmatprep.subr.bf16.mxu0 0
      %2410 = vmatpush1.bf16.xpose.msra.mxu0 %v2391
      %2411 = vmatprep.subr.bf16.mxu0 0
      %2412 = vmatpush1.bf16.xpose.msra.mxu0 %v2394
      %2413 = vmatprep.subr.bf16.mxu0 0
      %2414 = vmatpush1.bf16.xpose.msra.mxu0 %v2397
      %2415 = vmatprep.subr.bf16.mxu0 0
      %2416 = vmatpush1.bf16.xpose.msra.mxu0 0
      %2417 = vmatprep.subr.bf16.mxu0 0
      %2418 = vmatpush1.bf16.xpose.msra.mxu0 0
      %2419 = vmatprep.subr.bf16.mxu0 0
      %2420 = vmatpush1.bf16.xpose.msra.mxu0 0
      %2421 = vmatprep.subr.bf16.mxu0 0
      %2422 = vmatpush1.bf16.xpose.msra.mxu0 0
      %2423 = vmatprep.subr.bf16.mxu0 0
      %2424 = vmatpush1.bf16.xpose.msra.mxu0 0
      %2425 = vmatprep.subr.bf16.mxu0 0
      %2426 = vmatpush1.bf16.xpose.msra.mxu0 0
      %2427 = vmatprep.subr.bf16.mxu0 0
      %2428 = vmatpush1.bf16.xpose.msra.mxu0 0
      %2429 = vmatprep.subr.bf16.mxu0 0
      %2430 = vmatpush1.bf16.xpose.msra.mxu0 0
      %2431 = vmatprep.mubr.bf16.mxu0 0
      %2432 = vmatmul.mubr.bf16.gmra.mrb[0].mxu0 %v2352
      %v2433 = vpop.f32.mrb[0].mxu0
      %v2434 = vadd.f32 0.0, %v2433
      %v2435 = vpop.f32.mrb[0].mxu0
      %v2436 = vpop.f32.mrb[0].mxu0
      %v2437 = vadd.f32 0.0, %v2436
      %v2438 = vpop.f32.mrb[0].mxu0
      %2439 = vmatprep.mubr.bf16.mxu0 0
      %2440 = vmatmul.mubr.bf16.gmra.mrb[0].mxu0 %v2355
      %v2441 = vpop.f32.mrb[0].mxu0
      %v2442 = vadd.f32 0.0, %v2441
      %v2443 = vpop.f32.mrb[0].mxu0
      %v2444 = vpop.f32.mrb[0].mxu0
      %v2445 = vadd.f32 0.0, %v2444
      %v2446 = vpop.f32.mrb[0].mxu0
      %2447 = vmatprep.mubr.bf16.mxu0 0
      %2448 = vmatmul.mubr.bf16.gmra.mrb[0].mxu0 %v2358
      %v2449 = vpop.f32.mrb[0].mxu0
      %v2450 = vadd.f32 0.0, %v2449
      %v2451 = vpop.f32.mrb[0].mxu0
      %v2452 = vpop.f32.mrb[0].mxu0
      %v2453 = vadd.f32 0.0, %v2452
      %v2454 = vpop.f32.mrb[0].mxu0
      %2455 = vmatprep.mubr.bf16.mxu0 0
      %2456 = vmatmul.mubr.bf16.gmra.mrb[0].mxu0 %v2361
      %v2457 = vpop.f32.mrb[0].mxu0
      %v2458 = vadd.f32 0.0, %v2457
      %v2459 = vpop.f32.mrb[0].mxu0
      %v2460 = vpop.f32.mrb[0].mxu0
      %v2461 = vadd.f32 0.0, %v2460
      %v2462 = vpop.f32.mrb[0].mxu0
      %2463 = vmatprep.mubr.bf16.mxu0 0
      %2464 = vmatmul.mubr.bf16.gmra.mrb[0].mxu0 %v2364
      %v2465 = vpop.f32.mrb[0].mxu0
      %v2466 = vadd.f32 0.0, %v2465
      %v2467 = vpop.f32.mrb[0].mxu0
      %v2468 = vpop.f32.mrb[0].mxu0
      %v2469 = vadd.f32 0.0, %v2468
      %v2470 = vpop.f32.mrb[0].mxu0
      %2471 = vmatprep.mubr.bf16.mxu0 0
      %2472 = vmatmul.mubr.bf16.gmra.mrb[0].mxu0 %v2367
      %v2473 = vpop.f32.mrb[0].mxu0
      %v2474 = vadd.f32 0.0, %v2473
      %v2475 = vpop.f32.mrb[0].mxu0
      %v2476 = vpop.f32.mrb[0].mxu0
      %v2477 = vadd.f32 0.0, %v2476
      %v2478 = vpop.f32.mrb[0].mxu0
      %2479 = vmatprep.mubr.bf16.mxu0 0
      %2480 = vmatmul.mubr.bf16.gmra.mrb[0].mxu0 %v2370
      %v2481 = vpop.f32.mrb[0].mxu0
      %v2482 = vadd.f32 0.0, %v2481
      %v2483 = vpop.f32.mrb[0].mxu0
      %v2484 = vpop.f32.mrb[0].mxu0
      %v2485 = vadd.f32 0.0, %v2484
      %v2486 = vpop.f32.mrb[0].mxu0
      %2487 = vmatprep.mubr.bf16.mxu0 0
      %2488 = vmatmul.mubr.bf16.gmra.mrb[0].mxu0 %v2373
      %v2489 = vpop.f32.mrb[0].mxu0
      %v2490 = vadd.f32 0.0, %v2489
      %v2491 = vpop.f32.mrb[0].mxu0
      %v2492 = vpop.f32.mrb[0].mxu0
      %v2493 = vadd.f32 0.0, %v2492
      %v2494 = vpop.f32.mrb[0].mxu0
      %2495 = vdwg.mxu0
      %v2496 = vmul.f32 %v2434, 0.17677669
      %v2497 = vmul.f32 %v2437, 0.17677669
      %v2498 = vmul.f32 %v2442, 0.17677669
      %v2499 = vmul.f32 %v2445, 0.17677669
      %v2500 = vmul.f32 %v2450, 0.17677669
      %v2501 = vmul.f32 %v2453, 0.17677669
      %v2502 = vmul.f32 %v2458, 0.17677669
      %v2503 = vmul.f32 %v2461, 0.17677669
      %v2504 = vmul.f32 %v2466, 0.17677669
      %v2505 = vmul.f32 %v2469, 0.17677669
      %v2506 = vmul.f32 %v2474, 0.17677669
      %v2507 = vmul.f32 %v2477, 0.17677669
      %v2508 = vmul.f32 %v2482, 0.17677669
      %v2509 = vmul.f32 %v2485, 0.17677669
      %v2510 = vmul.f32 %v2490, 0.17677669
      %v2511 = vmul.f32 %v2493, 0.17677669
      %2512 = vmax.xlane.f32.xlu0 %v2496
      %v2513 = vpop.xlane.xlu0 %2512
      %2514 = vmax.xlane.f32.xlu0 %v2497
      %v2515 = vpop.xlane.xlu0 %2514
      %2516 = vmax.xlane.f32.xlu0 %v2498
      %v2517 = vpop.xlane.xlu0 %2516
      %2518 = vmax.xlane.f32.xlu0 %v2499
      %v2519 = vpop.xlane.xlu0 %2518
      %2520 = vmax.xlane.f32.xlu0 %v2500
      %v2521 = vpop.xlane.xlu0 %2520
      %2522 = vmax.xlane.f32.xlu0 %v2501
      %v2523 = vpop.xlane.xlu0 %2522
      %2524 = vmax.xlane.f32.xlu0 %v2502
      %v2525 = vpop.xlane.xlu0 %2524
      %2526 = vmax.xlane.f32.xlu0 %v2503
      %v2527 = vpop.xlane.xlu0 %2526
      %2528 = vmax.xlane.f32.xlu0 %v2504
      %v2529 = vpop.xlane.xlu0 %2528
      %2530 = vmax.xlane.f32.xlu0 %v2505
      %v2531 = vpop.xlane.xlu0 %2530
      %2532 = vmax.xlane.f32.xlu0 %v2506
      %v2533 = vpop.xlane.xlu0 %2532
      %2534 = vmax.xlane.f32.xlu0 %v2507
      %v2535 = vpop.xlane.xlu0 %2534
      %2536 = vmax.xlane.f32.xlu0 %v2508
      %v2537 = vpop.xlane.xlu0 %2536
      %2538 = vmax.xlane.f32.xlu0 %v2509
      %v2539 = vpop.xlane.xlu0 %2538
      %2540 = vmax.xlane.f32.xlu0 %v2510
      %v2541 = vpop.xlane.xlu0 %2540
      %2542 = vmax.xlane.f32.xlu0 %v2511
      %v2543 = vpop.xlane.xlu0 %2542
      %v2544 = vsub.f32 %v2496, %v2513
      %v2545 = vsub.f32 %v2497, %v2515
      %v2546 = vsub.f32 %v2498, %v2517
      %v2547 = vsub.f32 %v2499, %v2519
      %v2548 = vsub.f32 %v2500, %v2521
      %v2549 = vsub.f32 %v2501, %v2523
      %v2550 = vsub.f32 %v2502, %v2525
      %v2551 = vsub.f32 %v2503, %v2527
      %v2552 = vsub.f32 %v2504, %v2529
      %v2553 = vsub.f32 %v2505, %v2531
      %v2554 = vsub.f32 %v2506, %v2533
      %v2555 = vsub.f32 %v2507, %v2535
      %v2556 = vsub.f32 %v2508, %v2537
      %v2557 = vsub.f32 %v2509, %v2539
      %v2558 = vsub.f32 %v2510, %v2541
      %v2559 = vsub.f32 %v2511, %v2543
      %v2560 = vmul.f32 %v2544, 1.442695
      %v2561 = vpow.pop %v2560
      %v2562 = vmul.f32 %v2545, 1.442695
      %v2563 = vpow.pop %v2562
      %v2564 = vmul.f32 %v2546, 1.442695
      %v2565 = vpow.pop %v2564
      %v2566 = vmul.f32 %v2547, 1.442695
      %v2567 = vpow.pop %v2566
      %v2568 = vmul.f32 %v2548, 1.442695
      %v2569 = vpow.pop %v2568
      %v2570 = vmul.f32 %v2549, 1.442695
      %v2571 = vpow.pop %v2570
      %v2572 = vmul.f32 %v2550, 1.442695
      %v2573 = vpow.pop %v2572
      %v2574 = vmul.f32 %v2551, 1.442695
      %v2575 = vpow.pop %v2574
      %v2576 = vmul.f32 %v2552, 1.442695
      %v2577 = vpow.pop %v2576
      %v2578 = vmul.f32 %v2553, 1.442695
      %v2579 = vpow.pop %v2578
      %v2580 = vmul.f32 %v2554, 1.442695
      %v2581 = vpow.pop %v2580
      %v2582 = vmul.f32 %v2555, 1.442695
      %v2583 = vpow.pop %v2582
      %v2584 = vmul.f32 %v2556, 1.442695
      %v2585 = vpow.pop %v2584
      %v2586 = vmul.f32 %v2557, 1.442695
      %v2587 = vpow.pop %v2586
      %v2588 = vmul.f32 %v2558, 1.442695
      %v2589 = vpow.pop %v2588
      %v2590 = vmul.f32 %v2559, 1.442695
      %v2591 = vpow.pop %v2590
      %2592 = vadd.xlane.f32.xlu0 %v2561
      %v2593 = vpop.xlane.xlu0 %2592
      %2594 = vadd.xlane.f32.xlu0 %v2563
      %v2595 = vpop.xlane.xlu0 %2594
      %2596 = vadd.xlane.f32.xlu0 %v2565
      %v2597 = vpop.xlane.xlu0 %2596
      %2598 = vadd.xlane.f32.xlu0 %v2567
      %v2599 = vpop.xlane.xlu0 %2598
      %2600 = vadd.xlane.f32.xlu0 %v2569
      %v2601 = vpop.xlane.xlu0 %2600
      %2602 = vadd.xlane.f32.xlu0 %v2571
      %v2603 = vpop.xlane.xlu0 %2602
      %2604 = vadd.xlane.f32.xlu0 %v2573
      %v2605 = vpop.xlane.xlu0 %2604
      %2606 = vadd.xlane.f32.xlu0 %v2575
      %v2607 = vpop.xlane.xlu0 %2606
      %2608 = vadd.xlane.f32.xlu0 %v2577
      %v2609 = vpop.xlane.xlu0 %2608
      %2610 = vadd.xlane.f32.xlu0 %v2579
      %v2611 = vpop.xlane.xlu0 %2610
      %2612 = vadd.xlane.f32.xlu0 %v2581
      %v2613 = vpop.xlane.xlu0 %2612
      %2614 = vadd.xlane.f32.xlu0 %v2583
      %v2615 = vpop.xlane.xlu0 %2614
      %2616 = vadd.xlane.f32.xlu0 %v2585
      %v2617 = vpop.xlane.xlu0 %2616
      %2618 = vadd.xlane.f32.xlu0 %v2587
      %v2619 = vpop.xlane.xlu0 %2618
      %2620 = vadd.xlane.f32.xlu0 %v2589
      %v2621 = vpop.xlane.xlu0 %2620
      %2622 = vadd.xlane.f32.xlu0 %v2591
      %v2623 = vpop.xlane.xlu0 %2622
      %v2624 = vrcp.pop %v2593
      %v2625 = vrcp.pop %v2595
      %v2626 = vrcp.pop %v2597
      %v2627 = vrcp.pop %v2599
      %v2628 = vrcp.pop %v2601
      %v2629 = vrcp.pop %v2603
      %v2630 = vrcp.pop %v2605
      %v2631 = vrcp.pop %v2607
      %v2632 = vrcp.pop %v2609
      %v2633 = vrcp.pop %v2611
      %v2634 = vrcp.pop %v2613
      %v2635 = vrcp.pop %v2615
      %v2636 = vrcp.pop %v2617
      %v2637 = vrcp.pop %v2619
      %v2638 = vrcp.pop %v2621
      %v2639 = vrcp.pop %v2623
      %v2640 = vmul.f32 %v2561, %v2624
      %v2641 = vmul.f32 %v2563, %v2625
      %v2642 = vmul.f32 %v2565, %v2626
      %v2643 = vmul.f32 %v2567, %v2627
      %v2644 = vmul.f32 %v2569, %v2628
      %v2645 = vmul.f32 %v2571, %v2629
      %v2646 = vmul.f32 %v2573, %v2630
      %v2647 = vmul.f32 %v2575, %v2631
      %v2648 = vmul.f32 %v2577, %v2632
      %v2649 = vmul.f32 %v2579, %v2633
      %v2650 = vmul.f32 %v2581, %v2634
      %v2651 = vmul.f32 %v2583, %v2635
      %v2652 = vmul.f32 %v2585, %v2636
      %v2653 = vmul.f32 %v2587, %v2637
      %v2654 = vmul.f32 %v2589, %v2638
      %v2655 = vmul.f32 %v2591, %v2639
      %v2656 = vpack.c.bf16 %v2641, %v2640
      %v2657 = vpack.c.bf16 %v2643, %v2642
      %v2658 = vpack.c.bf16 %v2645, %v2644
      %v2659 = vpack.c.bf16 %v2647, %v2646
      %v2660 = vpack.c.bf16 %v2649, %v2648
      %v2661 = vpack.c.bf16 %v2651, %v2650
      %v2662 = vpack.c.bf16 %v2653, %v2652
      %v2663 = vpack.c.bf16 %v2655, %v2654
      %2664 = vrot.lane.b32.xlu0 %v766, 32
      %v2665 = vpop.permute.xlu0 %2664
      %2666 = vrot.lane.b32.xlu0 %v767, 32
      %v2667 = vpop.permute.xlu0 %2666
      %2668 = vrot.lane.b32.xlu0 %v768, 32
      %v2669 = vpop.permute.xlu0 %2668
      %2670 = vrot.lane.b32.xlu0 %v769, 32
      %v2671 = vpop.permute.xlu0 %2670
      %2672 = vrot.lane.b32.xlu0 %v770, 32
      %v2673 = vpop.permute.xlu0 %2672
      %2674 = vrot.lane.b32.xlu0 %v771, 32
      %v2675 = vpop.permute.xlu0 %2674
      %2676 = vrot.lane.b32.xlu0 %v772, 32
      %v2677 = vpop.permute.xlu0 %2676
      %2678 = vrot.lane.b32.xlu0 %v773, 32
      %v2679 = vpop.permute.xlu0 %2678
      %2688 = vmatprep.subr.bf16.mxu0 0
      %2689 = vmatpush1.bf16.msra.mxu0 %v2665
      %2690 = vmatprep.subr.bf16.mxu0 0
      %2691 = vmatpush1.bf16.msra.mxu0 %v2667
      %2692 = vmatprep.subr.bf16.mxu0 0
      %2693 = vmatpush1.bf16.msra.mxu0 %v2669
      %2694 = vmatprep.subr.bf16.mxu0 0
      %2695 = vmatpush1.bf16.msra.mxu0 %v2671
      %2696 = vmatprep.subr.bf16.mxu0 0
      %2697 = vmatpush1.bf16.msra.mxu0 %v2673
      %2698 = vmatprep.subr.bf16.mxu0 0
      %2699 = vmatpush1.bf16.msra.mxu0 %v2675
      %2700 = vmatprep.subr.bf16.mxu0 0
      %2701 = vmatpush1.bf16.msra.mxu0 %v2677
      %2702 = vmatprep.subr.bf16.mxu0 0
      %2703 = vmatpush1.bf16.msra.mxu0 %v2679
      %2704 = vmatprep.subr.bf16.mxu0 0
      %2705 = vmatpush1.bf16.msra.mxu0 0
      %2706 = vmatprep.subr.bf16.mxu0 0
      %2707 = vmatpush1.bf16.msra.mxu0 0
      %2708 = vmatprep.subr.bf16.mxu0 0
      %2709 = vmatpush1.bf16.msra.mxu0 0
      %2710 = vmatprep.subr.bf16.mxu0 0
      %2711 = vmatpush1.bf16.msra.mxu0 0
      %2712 = vmatprep.subr.bf16.mxu0 0
      %2713 = vmatpush1.bf16.msra.mxu0 0
      %2714 = vmatprep.subr.bf16.mxu0 0
      %2715 = vmatpush1.bf16.msra.mxu0 0
      %2716 = vmatprep.subr.bf16.mxu0 0
      %2717 = vmatpush1.bf16.msra.mxu0 0
      %2718 = vmatprep.subr.bf16.mxu0 0
      %2719 = vmatpush1.bf16.msra.mxu0 0
      %2720 = vmatprep.mubr.bf16.mxu0 0
      %2721 = vmatmul.mubr.bf16.gmra.mrb[0].mxu0 %v2656
      %v2722 = vpop.f32.mrb[0].mxu0
      %v2723 = vadd.f32 0.0, %v2722
      %v2724 = vpop.f32.mrb[0].mxu0
      %v2725 = vpop.f32.mrb[0].mxu0
      %v2726 = vadd.f32 0.0, %v2725
      %v2727 = vpop.f32.mrb[0].mxu0
      %2728 = vmatprep.mubr.bf16.mxu0 0
      %2729 = vmatmul.mubr.bf16.gmra.mrb[0].mxu0 %v2657
      %v2730 = vpop.f32.mrb[0].mxu0
      %v2731 = vadd.f32 0.0, %v2730
      %v2732 = vpop.f32.mrb[0].mxu0
      %v2733 = vpop.f32.mrb[0].mxu0
      %v2734 = vadd.f32 0.0, %v2733
      %v2735 = vpop.f32.mrb[0].mxu0
      %2736 = vmatprep.mubr.bf16.mxu0 0
      %2737 = vmatmul.mubr.bf16.gmra.mrb[0].mxu0 %v2658
      %v2738 = vpop.f32.mrb[0].mxu0
      %v2739 = vadd.f32 0.0, %v2738
      %v2740 = vpop.f32.mrb[0].mxu0
      %v2741 = vpop.f32.mrb[0].mxu0
      %v2742 = vadd.f32 0.0, %v2741
      %v2743 = vpop.f32.mrb[0].mxu0
      %2744 = vmatprep.mubr.bf16.mxu0 0
      %2745 = vmatmul.mubr.bf16.gmra.mrb[0].mxu0 %v2659
      %v2746 = vpop.f32.mrb[0].mxu0
      %v2747 = vadd.f32 0.0, %v2746
      %v2748 = vpop.f32.mrb[0].mxu0
      %v2749 = vpop.f32.mrb[0].mxu0
      %v2750 = vadd.f32 0.0, %v2749
      %v2751 = vpop.f32.mrb[0].mxu0
      %2752 = vmatprep.mubr.bf16.mxu0 0
      %2753 = vmatmul.mubr.bf16.gmra.mrb[0].mxu0 %v2660
      %v2754 = vpop.f32.mrb[0].mxu0
      %v2755 = vadd.f32 0.0, %v2754
      %v2756 = vpop.f32.mrb[0].mxu0
      %v2757 = vpop.f32.mrb[0].mxu0
      %v2758 = vadd.f32 0.0, %v2757
      %v2759 = vpop.f32.mrb[0].mxu0
      %2760 = vmatprep.mubr.bf16.mxu0 0
      %2761 = vmatmul.mubr.bf16.gmra.mrb[0].mxu0 %v2661
      %v2762 = vpop.f32.mrb[0].mxu0
      %v2763 = vadd.f32 0.0, %v2762
      %v2764 = vpop.f32.mrb[0].mxu0
      %v2765 = vpop.f32.mrb[0].mxu0
      %v2766 = vadd.f32 0.0, %v2765
      %v2767 = vpop.f32.mrb[0].mxu0
      %2768 = vmatprep.mubr.bf16.mxu0 0
      %2769 = vmatmul.mubr.bf16.gmra.mrb[0].mxu0 %v2662
      %v2770 = vpop.f32.mrb[0].mxu0
      %v2771 = vadd.f32 0.0, %v2770
      %v2772 = vpop.f32.mrb[0].mxu0
      %v2773 = vpop.f32.mrb[0].mxu0
      %v2774 = vadd.f32 0.0, %v2773
      %v2775 = vpop.f32.mrb[0].mxu0
      %2776 = vmatprep.mubr.bf16.mxu0 0
      %2777 = vmatmul.mubr.bf16.gmra.mrb[0].mxu0 %v2663
      %v2778 = vpop.f32.mrb[0].mxu0
      %v2779 = vadd.f32 0.0, %v2778
      %v2780 = vpop.f32.mrb[0].mxu0
      %v2781 = vpop.f32.mrb[0].mxu0
      %v2782 = vadd.f32 0.0, %v2781
      %v2783 = vpop.f32.mrb[0].mxu0
      %2784 = vdwg.mxu0
      %2801 = vrot.lane.b32.xlu0 %v2723, 96
      %v2802 = vpop.permute.xlu0 %2801
      %2803 = vrot.lane.b32.xlu0 %v2726, 96
      %v2804 = vpop.permute.xlu0 %2803
      %2805 = vrot.lane.b32.xlu0 %v2731, 96
      %v2806 = vpop.permute.xlu0 %2805
      %2807 = vrot.lane.b32.xlu0 %v2734, 96
      %v2808 = vpop.permute.xlu0 %2807
      %2809 = vrot.lane.b32.xlu0 %v2739, 96
      %v2810 = vpop.permute.xlu0 %2809
      %2811 = vrot.lane.b32.xlu0 %v2742, 96
      %v2812 = vpop.permute.xlu0 %2811
      %2813 = vrot.lane.b32.xlu0 %v2747, 96
      %v2814 = vpop.permute.xlu0 %2813
      %2815 = vrot.lane.b32.xlu0 %v2750, 96
      %v2816 = vpop.permute.xlu0 %2815
      %2817 = vrot.lane.b32.xlu0 %v2755, 96
      %v2818 = vpop.permute.xlu0 %2817
      %2819 = vrot.lane.b32.xlu0 %v2758, 96
      %v2820 = vpop.permute.xlu0 %2819
      %2821 = vrot.lane.b32.xlu0 %v2763, 96
      %v2822 = vpop.permute.xlu0 %2821
      %2823 = vrot.lane.b32.xlu0 %v2766, 96
      %v2824 = vpop.permute.xlu0 %2823
      %2825 = vrot.lane.b32.xlu0 %v2771, 96
      %v2826 = vpop.permute.xlu0 %2825
      %2827 = vrot.lane.b32.xlu0 %v2774, 96
      %v2828 = vpop.permute.xlu0 %2827
      %2829 = vrot.lane.b32.xlu0 %v2779, 96
      %v2830 = vpop.permute.xlu0 %2829
      %2831 = vrot.lane.b32.xlu0 %v2782, 96
      %v2832 = vpop.permute.xlu0 %2831
      %vm2849 = vcmask 1048320
      %2850 = vst.msk [vmem:[#allocation2] sm:$0xff] %vm2849, %v2802
      %2851 = vst.msk [vmem:[#allocation2 + $0x8] sm:$0xff] %vm2849, %v2804
      %2852 = vst.msk [vmem:[#allocation2 + $0x10] sm:$0xff] %vm2849, %v2806
      %2853 = vst.msk [vmem:[#allocation2 + $0x18] sm:$0xff] %vm2849, %v2808
      %2854 = vst.msk [vmem:[#allocation2 + $0x20] sm:$0xff] %vm2849, %v2810
      %2855 = vst.msk [vmem:[#allocation2 + $0x28] sm:$0xff] %vm2849, %v2812
      %2856 = vst.msk [vmem:[#allocation2 + $0x30] sm:$0xff] %vm2849, %v2814
      %2857 = vst.msk [vmem:[#allocation2 + $0x38] sm:$0xff] %vm2849, %v2816
      %2858 = vst.msk [vmem:[#allocation2 + $0x40] sm:$0xff] %vm2849, %v2818
      %2859 = vst.msk [vmem:[#allocation2 + $0x48] sm:$0xff] %vm2849, %v2820
      %2860 = vst.msk [vmem:[#allocation2 + $0x50] sm:$0xff] %vm2849, %v2822
      %2861 = vst.msk [vmem:[#allocation2 + $0x58] sm:$0xff] %vm2849, %v2824
      %2862 = vst.msk [vmem:[#allocation2 + $0x60] sm:$0xff] %vm2849, %v2826
      %2863 = vst.msk [vmem:[#allocation2 + $0x68] sm:$0xff] %vm2849, %v2828
      %2864 = vst.msk [vmem:[#allocation2 + $0x70] sm:$0xff] %vm2849, %v2830
      %2865 = vst.msk [vmem:[#allocation2 + $0x78] sm:$0xff] %vm2849, %v2832
      %v2866 = vld [vmem:[#allocation2] sm:$0xff]
      %v2867 = vld [vmem:[#allocation2 + $0x8] sm:$0xff]
      %v2868 = vld [vmem:[#allocation2 + $0x10] sm:$0xff]
      %v2869 = vld [vmem:[#allocation2 + $0x18] sm:$0xff]
      %v2870 = vld [vmem:[#allocation2 + $0x20] sm:$0xff]
      %v2871 = vld [vmem:[#allocation2 + $0x28] sm:$0xff]
      %v2872 = vld [vmem:[#allocation2 + $0x30] sm:$0xff]
      %v2873 = vld [vmem:[#allocation2 + $0x38] sm:$0xff]
      %v2874 = vld [vmem:[#allocation2 + $0x40] sm:$0xff]
      %v2875 = vld [vmem:[#allocation2 + $0x48] sm:$0xff]
      %v2876 = vld [vmem:[#allocation2 + $0x50] sm:$0xff]
      %v2877 = vld [vmem:[#allocation2 + $0x58] sm:$0xff]
      %v2878 = vld [vmem:[#allocation2 + $0x60] sm:$0xff]
      %v2879 = vld [vmem:[#allocation2 + $0x68] sm:$0xff]
      %v2880 = vld [vmem:[#allocation2 + $0x70] sm:$0xff]
      %v2881 = vld [vmem:[#allocation2 + $0x78] sm:$0xff]
      %v2882 = vpack.c.bf16 %v2867, %v2866
      %v2883 = vpack.c.bf16 %v2869, %v2868
      %v2884 = vpack.c.bf16 %v2871, %v2870
      %v2885 = vpack.c.bf16 %v2873, %v2872
      %v2886 = vpack.c.bf16 %v2875, %v2874
      %v2887 = vpack.c.bf16 %v2877, %v2876
      %v2888 = vpack.c.bf16 %v2879, %v2878
      %v2889 = vpack.c.bf16 %v2881, %v2880
      %v2890 = vld [vmem:[%s3] sm:$0xf]
      %v2891 = vld [vmem:[%s3 + $0x4] sm:$0xf]
      %v2892 = vld [vmem:[%s3 + $0x8] sm:$0xf]
      %v2893 = vld [vmem:[%s3 + $0xc] sm:$0xf]
      %v2894 = vld [vmem:[%s3 + $0x10] sm:$0xf]
      %v2895 = vld [vmem:[%s3 + $0x14] sm:$0xf]
      %v2896 = vld [vmem:[%s3 + $0x18] sm:$0xf]
      %v2897 = vld [vmem:[%s3 + $0x1c] sm:$0xf]
      %v2898 = vld [vmem:[%s3 + $0x20] sm:$0xf]
      %v2899 = vld [vmem:[%s3 + $0x24] sm:$0xf]
      %v2900 = vld [vmem:[%s3 + $0x28] sm:$0xf]
      %v2901 = vld [vmem:[%s3 + $0x2c] sm:$0xf]
      %v2902 = vld [vmem:[%s3 + $0x30] sm:$0xf]
      %v2903 = vld [vmem:[%s3 + $0x34] sm:$0xf]
      %v2904 = vld [vmem:[%s3 + $0x38] sm:$0xf]
      %v2905 = vld [vmem:[%s3 + $0x3c] sm:$0xf]
      %v2906 = vld [vmem:[%s4] sm:$0x1]
      %v2908 = vlaneseq
      %v2909 = vshrl.u32 %v2908, 7
      %v2910 = vsub.s32 0, %v2909
      %v2911 = vrot.slane %v2906, %v2910
      %v2929 = vunpack.c.l.b16 %v2890
      %v2930 = vunpack.c.l.b16 %v2891
      %v2931 = vunpack.c.l.b16 %v2892
      %v2932 = vunpack.c.l.b16 %v2893
      %v2933 = vunpack.c.l.b16 %v2894
      %v2934 = vunpack.c.l.b16 %v2895
      %v2935 = vunpack.c.l.b16 %v2896
      %v2936 = vunpack.c.l.b16 %v2897
      %v2937 = vunpack.c.l.b16 %v2898
      %v2938 = vunpack.c.l.b16 %v2899
      %v2939 = vunpack.c.l.b16 %v2900
      %v2940 = vunpack.c.l.b16 %v2901
      %v2941 = vunpack.c.l.b16 %v2902
      %v2942 = vunpack.c.l.b16 %v2903
      %v2943 = vunpack.c.l.b16 %v2904
      %v2944 = vunpack.c.l.b16 %v2905
      %v2945 = vpack.c.b16 %v2930, %v2929
      %v2946 = vpack.c.b16 %v2932, %v2931
      %v2947 = vpack.c.b16 %v2934, %v2933
      %v2948 = vpack.c.b16 %v2936, %v2935
      %v2949 = vpack.c.b16 %v2938, %v2937
      %v2950 = vpack.c.b16 %v2940, %v2939
      %v2951 = vpack.c.b16 %v2942, %v2941
      %v2952 = vpack.c.b16 %v2944, %v2943
      %2961 = vmatprep.subr.bf16.mxu0 0
      %2962 = vmatpush1.bf16.msra.mxu0 %v2945
      %2963 = vmatprep.subr.bf16.mxu0 0
      %2964 = vmatpush1.bf16.msra.mxu0 %v2946
      %2965 = vmatprep.subr.bf16.mxu0 0
      %2966 = vmatpush1.bf16.msra.mxu0 %v2947
      %2967 = vmatprep.subr.bf16.mxu0 0
      %2968 = vmatpush1.bf16.msra.mxu0 %v2948
      %2969 = vmatprep.subr.bf16.mxu0 0
      %2970 = vmatpush1.bf16.msra.mxu0 %v2949
      %2971 = vmatprep.subr.bf16.mxu0 0
      %2972 = vmatpush1.bf16.msra.mxu0 %v2950
      %2973 = vmatprep.subr.bf16.mxu0 0
      %2974 = vmatpush1.bf16.msra.mxu0 %v2951
      %2975 = vmatprep.subr.bf16.mxu0 0
      %2976 = vmatpush1.bf16.msra.mxu0 %v2952
      %2977 = vmatprep.subr.bf16.mxu0 0
      %2978 = vmatpush1.bf16.msra.mxu0 0
      %2979 = vmatprep.subr.bf16.mxu0 0
      %2980 = vmatpush1.bf16.msra.mxu0 0
      %2981 = vmatprep.subr.bf16.mxu0 0
      %2982 = vmatpush1.bf16.msra.mxu0 0
      %2983 = vmatprep.subr.bf16.mxu0 0
      %2984 = vmatpush1.bf16.msra.mxu0 0
      %2985 = vmatprep.subr.bf16.mxu0 0
      %2986 = vmatpush1.bf16.msra.mxu0 0
      %2987 = vmatprep.subr.bf16.mxu0 0
      %2988 = vmatpush1.bf16.msra.mxu0 0
      %2989 = vmatprep.subr.bf16.mxu0 0
      %2990 = vmatpush1.bf16.msra.mxu0 0
      %2991 = vmatprep.subr.bf16.mxu0 0
      %2992 = vmatpush1.bf16.msra.mxu0 0
      %2993 = vmatprep.mubr.bf16.mxu0 0
      %2994 = vmatmul.mubr.bf16.gmra.mrb[0].mxu0 %v2882
      %v2995 = vpop.f32.mrb[0].mxu0
      %v2996 = vadd.f32 %v2911, %v2995
      %v2997 = vpop.f32.mrb[0].mxu0
      %v2998 = vpop.f32.mrb[0].mxu0
      %v2999 = vadd.f32 %v2911, %v2998
      %v3000 = vpop.f32.mrb[0].mxu0
      %3001 = vmatprep.mubr.bf16.mxu0 0
      %3002 = vmatmul.mubr.bf16.gmra.mrb[0].mxu0 %v2883
      %v3003 = vpop.f32.mrb[0].mxu0
      %v3004 = vadd.f32 %v2911, %v3003
      %v3005 = vpop.f32.mrb[0].mxu0
      %v3006 = vpop.f32.mrb[0].mxu0
      %v3007 = vadd.f32 %v2911, %v3006
      %v3008 = vpop.f32.mrb[0].mxu0
      %3009 = vmatprep.mubr.bf16.mxu0 0
      %3010 = vmatmul.mubr.bf16.gmra.mrb[0].mxu0 %v2884
      %v3011 = vpop.f32.mrb[0].mxu0
      %v3012 = vadd.f32 %v2911, %v3011
      %v3013 = vpop.f32.mrb[0].mxu0
      %v3014 = vpop.f32.mrb[0].mxu0
      %v3015 = vadd.f32 %v2911, %v3014
      %v3016 = vpop.f32.mrb[0].mxu0
      %3017 = vmatprep.mubr.bf16.mxu0 0
      %3018 = vmatmul.mubr.bf16.gmra.mrb[0].mxu0 %v2885
      %v3019 = vpop.f32.mrb[0].mxu0
      %v3020 = vadd.f32 %v2911, %v3019
      %v3021 = vpop.f32.mrb[0].mxu0
      %v3022 = vpop.f32.mrb[0].mxu0
      %v3023 = vadd.f32 %v2911, %v3022
      %v3024 = vpop.f32.mrb[0].mxu0
      %3025 = vmatprep.mubr.bf16.mxu0 0
      %3026 = vmatmul.mubr.bf16.gmra.mrb[0].mxu0 %v2886
      %v3027 = vpop.f32.mrb[0].mxu0
      %v3028 = vadd.f32 %v2911, %v3027
      %v3029 = vpop.f32.mrb[0].mxu0
      %v3030 = vpop.f32.mrb[0].mxu0
      %v3031 = vadd.f32 %v2911, %v3030
      %v3032 = vpop.f32.mrb[0].mxu0
      %3033 = vmatprep.mubr.bf16.mxu0 0
      %3034 = vmatmul.mubr.bf16.gmra.mrb[0].mxu0 %v2887
      %v3035 = vpop.f32.mrb[0].mxu0
      %v3036 = vadd.f32 %v2911, %v3035
      %v3037 = vpop.f32.mrb[0].mxu0
      %v3038 = vpop.f32.mrb[0].mxu0
      %v3039 = vadd.f32 %v2911, %v3038
      %v3040 = vpop.f32.mrb[0].mxu0
      %3041 = vmatprep.mubr.bf16.mxu0 0
      %3042 = vmatmul.mubr.bf16.gmra.mrb[0].mxu0 %v2888
      %v3043 = vpop.f32.mrb[0].mxu0
      %v3044 = vadd.f32 %v2911, %v3043
      %v3045 = vpop.f32.mrb[0].mxu0
      %v3046 = vpop.f32.mrb[0].mxu0
      %v3047 = vadd.f32 %v2911, %v3046
      %v3048 = vpop.f32.mrb[0].mxu0
      %3049 = vmatprep.mubr.bf16.mxu0 0
      %3050 = vmatmul.mubr.bf16.gmra.mrb[0].mxu0 %v2889
      %v3051 = vpop.f32.mrb[0].mxu0
      %v3052 = vadd.f32 %v2911, %v3051
      %v3053 = vpop.f32.mrb[0].mxu0
      %v3054 = vpop.f32.mrb[0].mxu0
      %v3055 = vadd.f32 %v2911, %v3054
      %v3056 = vpop.f32.mrb[0].mxu0
      %3057 = vdwg.mxu0
      %v3058 = vadd.f32 %v299, %v2996
      %v3059 = vadd.f32 %v300, %v2999
      %v3060 = vadd.f32 %v301, %v3004
      %v3061 = vadd.f32 %v302, %v3007
      %v3062 = vadd.f32 %v303, %v3012
      %v3063 = vadd.f32 %v304, %v3015
      %v3064 = vadd.f32 %v305, %v3020
      %v3065 = vadd.f32 %v306, %v3023
      %v3066 = vadd.f32 %v307, %v3028
      %v3067 = vadd.f32 %v308, %v3031
      %v3068 = vadd.f32 %v309, %v3036
      %v3069 = vadd.f32 %v310, %v3039
      %v3070 = vadd.f32 %v311, %v3044
      %v3071 = vadd.f32 %v312, %v3047
      %v3072 = vadd.f32 %v313, %v3052
      %v3073 = vadd.f32 %v314, %v3055
      %v3074 = vld [vmem:[%s5] sm:$0x1]
      %v3075 = vld [vmem:[%s6] sm:$0x1]
      %3076 = vadd.xlane.f32.xlu0 %v3058
      %v3077 = vpop.xlane.xlu0 %3076
      %3078 = vadd.xlane.f32.xlu0 %v3059
      %v3079 = vpop.xlane.xlu0 %3078
      %3080 = vadd.xlane.f32.xlu0 %v3060
      %v3081 = vpop.xlane.xlu0 %3080
      %3082 = vadd.xlane.f32.xlu0 %v3061
      %v3083 = vpop.xlane.xlu0 %3082
      %3084 = vadd.xlane.f32.xlu0 %v3062
      %v3085 = vpop.xlane.xlu0 %3084
      %3086 = vadd.xlane.f32.xlu0 %v3063
      %v3087 = vpop.xlane.xlu0 %3086
      %3088 = vadd.xlane.f32.xlu0 %v3064
      %v3089 = vpop.xlane.xlu0 %3088
      %3090 = vadd.xlane.f32.xlu0 %v3065
      %v3091 = vpop.xlane.xlu0 %3090
      %3092 = vadd.xlane.f32.xlu0 %v3066
      %v3093 = vpop.xlane.xlu0 %3092
      %3094 = vadd.xlane.f32.xlu0 %v3067
      %v3095 = vpop.xlane.xlu0 %3094
      %3096 = vadd.xlane.f32.xlu0 %v3068
      %v3097 = vpop.xlane.xlu0 %3096
      %3098 = vadd.xlane.f32.xlu0 %v3069
      %v3099 = vpop.xlane.xlu0 %3098
      %3100 = vadd.xlane.f32.xlu0 %v3070
      %v3101 = vpop.xlane.xlu0 %3100
      %3102 = vadd.xlane.f32.xlu0 %v3071
      %v3103 = vpop.xlane.xlu0 %3102
      %3104 = vadd.xlane.f32.xlu0 %v3072
      %v3105 = vpop.xlane.xlu0 %3104
      %3106 = vadd.xlane.f32.xlu0 %v3073
      %v3107 = vpop.xlane.xlu0 %3106
      %v3108 = vrcp.pop 128.0
      %v3109 = vmul.f32 %v3077, %v3108
      %v3110 = vmul.f32 %v3079, %v3108
      %v3111 = vmul.f32 %v3081, %v3108
      %v3112 = vmul.f32 %v3083, %v3108
      %v3113 = vmul.f32 %v3085, %v3108
      %v3114 = vmul.f32 %v3087, %v3108
      %v3115 = vmul.f32 %v3089, %v3108
      %v3116 = vmul.f32 %v3091, %v3108
      %v3117 = vmul.f32 %v3093, %v3108
      %v3118 = vmul.f32 %v3095, %v3108
      %v3119 = vmul.f32 %v3097, %v3108
      %v3120 = vmul.f32 %v3099, %v3108
      %v3121 = vmul.f32 %v3101, %v3108
      %v3122 = vmul.f32 %v3103, %v3108
      %v3123 = vmul.f32 %v3105, %v3108
      %v3124 = vmul.f32 %v3107, %v3108
      %v3125 = vsub.f32 %v3058, %v3109
      %v3126 = vsub.f32 %v3059, %v3110
      %v3127 = vsub.f32 %v3060, %v3111
      %v3128 = vsub.f32 %v3061, %v3112
      %v3129 = vsub.f32 %v3062, %v3113
      %v3130 = vsub.f32 %v3063, %v3114
      %v3131 = vsub.f32 %v3064, %v3115
      %v3132 = vsub.f32 %v3065, %v3116
      %v3133 = vsub.f32 %v3066, %v3117
      %v3134 = vsub.f32 %v3067, %v3118
      %v3135 = vsub.f32 %v3068, %v3119
      %v3136 = vsub.f32 %v3069, %v3120
      %v3137 = vsub.f32 %v3070, %v3121
      %v3138 = vsub.f32 %v3071, %v3122
      %v3139 = vsub.f32 %v3072, %v3123
      %v3140 = vsub.f32 %v3073, %v3124
      %v3141 = vmul.f32 %v3125, %v3125
      %v3142 = vmul.f32 %v3126, %v3126
      %v3143 = vmul.f32 %v3127, %v3127
      %v3144 = vmul.f32 %v3128, %v3128
      %v3145 = vmul.f32 %v3129, %v3129
      %v3146 = vmul.f32 %v3130, %v3130
      %v3147 = vmul.f32 %v3131, %v3131
      %v3148 = vmul.f32 %v3132, %v3132
      %v3149 = vmul.f32 %v3133, %v3133
      %v3150 = vmul.f32 %v3134, %v3134
      %v3151 = vmul.f32 %v3135, %v3135
      %v3152 = vmul.f32 %v3136, %v3136
      %v3153 = vmul.f32 %v3137, %v3137
      %v3154 = vmul.f32 %v3138, %v3138
      %v3155 = vmul.f32 %v3139, %v3139
      %v3156 = vmul.f32 %v3140, %v3140
      %3157 = vadd.xlane.f32.xlu0 %v3141
      %v3158 = vpop.xlane.xlu0 %3157
      %3159 = vadd.xlane.f32.xlu0 %v3142
      %v3160 = vpop.xlane.xlu0 %3159
      %3161 = vadd.xlane.f32.xlu0 %v3143
      %v3162 = vpop.xlane.xlu0 %3161
      %3163 = vadd.xlane.f32.xlu0 %v3144
      %v3164 = vpop.xlane.xlu0 %3163
      %3165 = vadd.xlane.f32.xlu0 %v3145
      %v3166 = vpop.xlane.xlu0 %3165
      %3167 = vadd.xlane.f32.xlu0 %v3146
      %v3168 = vpop.xlane.xlu0 %3167
      %3169 = vadd.xlane.f32.xlu0 %v3147
      %v3170 = vpop.xlane.xlu0 %3169
      %3171 = vadd.xlane.f32.xlu0 %v3148
      %v3172 = vpop.xlane.xlu0 %3171
      %3173 = vadd.xlane.f32.xlu0 %v3149
      %v3174 = vpop.xlane.xlu0 %3173
      %3175 = vadd.xlane.f32.xlu0 %v3150
      %v3176 = vpop.xlane.xlu0 %3175
      %3177 = vadd.xlane.f32.xlu0 %v3151
      %v3178 = vpop.xlane.xlu0 %3177
      %3179 = vadd.xlane.f32.xlu0 %v3152
      %v3180 = vpop.xlane.xlu0 %3179
      %3181 = vadd.xlane.f32.xlu0 %v3153
      %v3182 = vpop.xlane.xlu0 %3181
      %3183 = vadd.xlane.f32.xlu0 %v3154
      %v3184 = vpop.xlane.xlu0 %3183
      %3185 = vadd.xlane.f32.xlu0 %v3155
      %v3186 = vpop.xlane.xlu0 %3185
      %3187 = vadd.xlane.f32.xlu0 %v3156
      %v3188 = vpop.xlane.xlu0 %3187
      %v3189 = vmul.f32 %v3158, %v3108
      %v3190 = vmul.f32 %v3160, %v3108
      %v3191 = vmul.f32 %v3162, %v3108
      %v3192 = vmul.f32 %v3164, %v3108
      %v3193 = vmul.f32 %v3166, %v3108
      %v3194 = vmul.f32 %v3168, %v3108
      %v3195 = vmul.f32 %v3170, %v3108
      %v3196 = vmul.f32 %v3172, %v3108
      %v3197 = vmul.f32 %v3174, %v3108
      %v3198 = vmul.f32 %v3176, %v3108
      %v3199 = vmul.f32 %v3178, %v3108
      %v3200 = vmul.f32 %v3180, %v3108
      %v3201 = vmul.f32 %v3182, %v3108
      %v3202 = vmul.f32 %v3184, %v3108
      %v3203 = vmul.f32 %v3186, %v3108
      %v3204 = vmul.f32 %v3188, %v3108
      %v3205 = vadd.f32 %v3189, 1e-05
      %v3206 = vadd.f32 %v3190, 1e-05
      %v3207 = vadd.f32 %v3191, 1e-05
      %v3208 = vadd.f32 %v3192, 1e-05
      %v3209 = vadd.f32 %v3193, 1e-05
      %v3210 = vadd.f32 %v3194, 1e-05
      %v3211 = vadd.f32 %v3195, 1e-05
      %v3212 = vadd.f32 %v3196, 1e-05
      %v3213 = vadd.f32 %v3197, 1e-05
      %v3214 = vadd.f32 %v3198, 1e-05
      %v3215 = vadd.f32 %v3199, 1e-05
      %v3216 = vadd.f32 %v3200, 1e-05
      %v3217 = vadd.f32 %v3201, 1e-05
      %v3218 = vadd.f32 %v3202, 1e-05
      %v3219 = vadd.f32 %v3203, 1e-05
      %v3220 = vadd.f32 %v3204, 1e-05
      %v3221 = vrsqrt.pop %v3205
      %v3222 = vrsqrt.pop %v3206
      %v3223 = vrsqrt.pop %v3207
      %v3224 = vrsqrt.pop %v3208
      %v3225 = vrsqrt.pop %v3209
      %v3226 = vrsqrt.pop %v3210
      %v3227 = vrsqrt.pop %v3211
      %v3228 = vrsqrt.pop %v3212
      %v3229 = vrsqrt.pop %v3213
      %v3230 = vrsqrt.pop %v3214
      %v3231 = vrsqrt.pop %v3215
      %v3232 = vrsqrt.pop %v3216
      %v3233 = vrsqrt.pop %v3217
      %v3234 = vrsqrt.pop %v3218
      %v3235 = vrsqrt.pop %v3219
      %v3236 = vrsqrt.pop %v3220
      %v3237 = vmul.f32 %v3125, %v3221
      %v3238 = vmul.f32 %v3126, %v3222
      %v3239 = vmul.f32 %v3127, %v3223
      %v3240 = vmul.f32 %v3128, %v3224
      %v3241 = vmul.f32 %v3129, %v3225
      %v3242 = vmul.f32 %v3130, %v3226
      %v3243 = vmul.f32 %v3131, %v3227
      %v3244 = vmul.f32 %v3132, %v3228
      %v3245 = vmul.f32 %v3133, %v3229
      %v3246 = vmul.f32 %v3134, %v3230
      %v3247 = vmul.f32 %v3135, %v3231
      %v3248 = vmul.f32 %v3136, %v3232
      %v3249 = vmul.f32 %v3137, %v3233
      %v3250 = vmul.f32 %v3138, %v3234
      %v3251 = vmul.f32 %v3139, %v3235
      %v3252 = vmul.f32 %v3140, %v3236
      %v3254 = vlaneseq
      %v3255 = vshrl.u32 %v3254, 7
      %v3256 = vsub.s32 0, %v3255
      %v3257 = vrot.slane %v3074, %v3256
      %v3259 = vmul.f32 %v3237, %v3257
      %v3260 = vmul.f32 %v3238, %v3257
      %v3261 = vmul.f32 %v3239, %v3257
      %v3262 = vmul.f32 %v3240, %v3257
      %v3263 = vmul.f32 %v3241, %v3257
      %v3264 = vmul.f32 %v3242, %v3257
      %v3265 = vmul.f32 %v3243, %v3257
      %v3266 = vmul.f32 %v3244, %v3257
      %v3267 = vmul.f32 %v3245, %v3257
      %v3268 = vmul.f32 %v3246, %v3257
      %v3269 = vmul.f32 %v3247, %v3257
      %v3270 = vmul.f32 %v3248, %v3257
      %v3271 = vmul.f32 %v3249, %v3257
      %v3272 = vmul.f32 %v3250, %v3257
      %v3273 = vmul.f32 %v3251, %v3257
      %v3274 = vmul.f32 %v3252, %v3257
      %v3276 = vlaneseq
      %v3277 = vshrl.u32 %v3276, 7
      %v3278 = vsub.s32 0, %v3277
      %v3279 = vrot.slane %v3075, %v3278
      %v3281 = vadd.f32 %v3259, %v3279
      %v3282 = vadd.f32 %v3260, %v3279
      %v3283 = vadd.f32 %v3261, %v3279
      %v3284 = vadd.f32 %v3262, %v3279
      %v3285 = vadd.f32 %v3263, %v3279
      %v3286 = vadd.f32 %v3264, %v3279
      %v3287 = vadd.f32 %v3265, %v3279
      %v3288 = vadd.f32 %v3266, %v3279
      %v3289 = vadd.f32 %v3267, %v3279
      %v3290 = vadd.f32 %v3268, %v3279
      %v3291 = vadd.f32 %v3269, %v3279
      %v3292 = vadd.f32 %v3270, %v3279
      %v3293 = vadd.f32 %v3271, %v3279
      %v3294 = vadd.f32 %v3272, %v3279
      %v3295 = vadd.f32 %v3273, %v3279
      %v3296 = vadd.f32 %v3274, %v3279
      %v3297 = vpack.c.bf16 %v3282, %v3281
      %v3298 = vpack.c.bf16 %v3284, %v3283
      %v3299 = vpack.c.bf16 %v3286, %v3285
      %v3300 = vpack.c.bf16 %v3288, %v3287
      %v3301 = vpack.c.bf16 %v3290, %v3289
      %v3302 = vpack.c.bf16 %v3292, %v3291
      %v3303 = vpack.c.bf16 %v3294, %v3293
      %v3304 = vpack.c.bf16 %v3296, %v3295
      %v3313 = vunpack.c.l.b16 %v3297
      %v3314 = vunpack.c.h.b16 %v3297
      %v3315 = vunpack.c.l.b16 %v3298
      %v3316 = vunpack.c.h.b16 %v3298
      %v3317 = vunpack.c.l.b16 %v3299
      %v3318 = vunpack.c.h.b16 %v3299
      %v3319 = vunpack.c.l.b16 %v3300
      %v3320 = vunpack.c.h.b16 %v3300
      %v3321 = vunpack.c.l.b16 %v3301
      %v3322 = vunpack.c.h.b16 %v3301
      %v3323 = vunpack.c.l.b16 %v3302
      %v3324 = vunpack.c.h.b16 %v3302
      %v3325 = vunpack.c.l.b16 %v3303
      %v3326 = vunpack.c.h.b16 %v3303
      %v3327 = vunpack.c.l.b16 %v3304
      %v3328 = vunpack.c.h.b16 %v3304
      %v3329 = vpack.c.b16 %v3313, %v3313
      %v3330 = vpack.c.b16 %v3314, %v3314
      %v3331 = vpack.c.b16 %v3315, %v3315
      %v3332 = vpack.c.b16 %v3316, %v3316
      %v3333 = vpack.c.b16 %v3317, %v3317
      %v3334 = vpack.c.b16 %v3318, %v3318
      %v3335 = vpack.c.b16 %v3319, %v3319
      %v3336 = vpack.c.b16 %v3320, %v3320
      %v3337 = vpack.c.b16 %v3321, %v3321
      %v3338 = vpack.c.b16 %v3322, %v3322
      %v3339 = vpack.c.b16 %v3323, %v3323
      %v3340 = vpack.c.b16 %v3324, %v3324
      %v3341 = vpack.c.b16 %v3325, %v3325
      %v3342 = vpack.c.b16 %v3326, %v3326
      %v3343 = vpack.c.b16 %v3327, %v3327
      %v3344 = vpack.c.b16 %v3328, %v3328
      %3361 = vst [vmem:[%s280] sm:$0xf] %v3329
      %3362 = vst [vmem:[%s280 + $0x4] sm:$0xf] %v3330
      %3363 = vst [vmem:[%s280 + $0x8] sm:$0xf] %v3331
      %3364 = vst [vmem:[%s280 + $0xc] sm:$0xf] %v3332
      %3365 = vst [vmem:[%s280 + $0x10] sm:$0xf] %v3333
      %3366 = vst [vmem:[%s280 + $0x14] sm:$0xf] %v3334
      %3367 = vst [vmem:[%s280 + $0x18] sm:$0xf] %v3335
      %3368 = vst [vmem:[%s280 + $0x1c] sm:$0xf] %v3336
      %3369 = vst [vmem:[%s280 + $0x20] sm:$0xf] %v3337
      %3370 = vst [vmem:[%s280 + $0x24] sm:$0xf] %v3338
      %3371 = vst [vmem:[%s280 + $0x28] sm:$0xf] %v3339
      %3372 = vst [vmem:[%s280 + $0x2c] sm:$0xf] %v3340
      %3373 = vst [vmem:[%s280 + $0x30] sm:$0xf] %v3341
      %3374 = vst [vmem:[%s280 + $0x34] sm:$0xf] %v3342
      %3375 = vst [vmem:[%s280 + $0x38] sm:$0xf] %v3343
      %3376 = vst [vmem:[%s280 + $0x3c] sm:$0xf] %v3344
      %s3377 = smul.u32 16, %s18
      %p3378 = scmp.lt.s32.totalorder %s3377, 31
      %s3379 = scalar_select %p3378, %s3377, 31
      %s3380 = smul.addr %s3379, 4
      %s3381 = scalar_lea.vmem %s7, %s3380
      // Predicated region
      $region49: #{bert_forward.5} parent=47 // pred_check
        %p3382 = pneg %p188
      $region50: #{bert_forward.5} parent=47 // pred_check_branch
        %3384 = sbr.rel (%p3382) target = $region52
      $region51: #{bert_forward.5} parent=47 // pred_region
        %s3385 = smul.u32 16, %s18
      $region52: #{bert_forward.5} parent=47 // pred_fallthru
        _
    $region48: #{bert_forward.5} parent=5 // pred_fallthru
      _
    %p3386 = scmp.le.s32.totalorder 2, %s13
    // Predicated region
    $region53: #{bert_forward.5} parent=5 // pred_check
      %p3387 = pneg %p3386
    $region54: #{bert_forward.5} parent=5 // pred_check_branch
      %3389 = sbr.rel (%p3387) target = $region56
    $region55: #{bert_forward.5} parent=5 // pred_region
      %s3390 = ssub.s32 %s13, 2
      // Predicated region
      $region57: #{bert_forward.5} parent=55 // pred_check
        %p3391 = pneg %p194
      $region58: #{bert_forward.5} parent=55 // pred_check_branch
        %3393 = sbr.rel (%p3391) target = $region60
      $region59: #{bert_forward.5} parent=55 // pred_region
        %s3394 = smul.u32 16, %s19
        %p3395 = scmp.lt.s32.totalorder %s3394, 31
        %s3396 = scalar_select %p3395, %s3394, 31
        %s3397 = smul.addr %s3396, 4
        %s3398 = scalar_lea.vmem %s7, %s3397
      $region60: #{bert_forward.5} parent=55 // pred_fallthru
        _
    $region56: #{bert_forward.5} parent=5 // pred_fallthru
      _
  $region6: #{bert_forward.5} parent=0 // loop_footer
    %s17 = sadd.s32 1, %s13
  $region7: #{bert_forward.5} parent=0 // loop_footer_branch
    %12 = sbr.rel target = $region3
  $region8: #{bert_forward.5} parent=0 // loop_exit
    _

</llo_original>
